<compile_context>
chip_gen: v7x
topology: tpu7x:2x2x1
jax: 0.10.0
libtpu: 0.0.40
codegen_flags: <defaults>
</compile_context>

<pallas_src>
import math

import jax
import jax.numpy as jnp
from jax.experimental import pallas as pl
from jax.experimental.pallas import tpu as pltpu

# ----------------------------- configuration --------------------------------
B, S, H, NH, F, V, NLAYERS = 2, 8, 32, 4, 128, 100, 2   # small synthetic BERT
HD = H // NH
LN_EPS = 1e-12
SOFTMAX_APPROX_RECIP = True   # set False for exact softmax normalization (bit parity)


# ----------------------------- in-kernel helpers -----------------------------
def _ln(x, gamma, beta):
    mu = jnp.mean(x, axis=-1, keepdims=True)
    var = jnp.mean((x - mu) ** 2, axis=-1, keepdims=True)
    return (x - mu) * jax.lax.rsqrt(var + LN_EPS) * gamma + beta


def _gelu(x):
    # TODO(synk): HF BERT's default GELU is the exact erf form; tanh approximation
    # used here (erf has no guaranteed Mosaic lowering).
    c = math.sqrt(2.0 / math.pi)
    return 0.5 * x * (1.0 + jnp.tanh(c * (x + 0.044715 * x * x * x)))


def _vmem_spec():
    return pl.BlockSpec(memory_space=pltpu.MemorySpace.VMEM)


def _smem_spec():
    return pl.BlockSpec(memory_space=pltpu.MemorySpace.SMEM)


# ----------------------------- fused Pallas kernel ----------------------------
def bert_qa_fused_kernel(
    ids_ref, tt_ref, amask_ref,
    word_ref, pos_ref, type_ref, eg_ref, eb_ref,
    wqkv_ref, bqkv_ref, wo_ref, bo_ref, g1_ref, be1_ref,
    w1_ref, b1_ref, w2_ref, b2_ref, g2_ref, be2_ref,
    wqa_ref, bqa_ref, sp_ref, ep_ref,
    logits_ref, loss_ref,
):
    """Embeddings + LN + NLAYERS encoder layers + QA head + CE loss, one kernel."""
    # ---- in-kernel embedding lookup ----
    # word embedding: exact one-hot MXU matmul (no XLA gather outside the kernel)
    ids = ids_ref[...]                                                # (B*S, 1) int32
    iota_v = jax.lax.broadcasted_iota(jnp.int32, (B * S, V), 1)
    onehot = jnp.where(iota_v == ids, 1.0, 0.0)                       # (B*S, V) f32
    word2 = jnp.dot(onehot, word_ref[...],
                    preferred_element_type=jnp.float32)               # (B*S, H)
    # token-type embedding: type vocab is 2 -> a select, no gather needed
    tt = tt_ref[...]                                                  # (B*S, 1) int32
    type_tbl = type_ref[...]
    typ2 = jnp.where(tt == 0, type_tbl[0:1, :], type_tbl[1:2, :])     # (B*S, H)
    # position embedding broadcast + embedding LayerNorm; keep [B*S, H] layout
    emb3 = (word2 + typ2).reshape(B, S, H) + pos_ref[...][None, :, :]
    x2 = _ln(emb3.reshape(B * S, H), eg_ref[...], eb_ref[...])        # f32

    # additive attention mask built in-kernel, broadcast once for all layers/heads
    add_mask = jnp.where(amask_ref[...] != 0, 0.0, -1e9)              # (B, S)
    mask_bss = jnp.broadcast_to(add_mask[:, None, :], (B, S, S))      # (B, S, S)

    # ---- encoder layers (weights fully VMEM-resident at these toy dims) ----
    for li in range(NLAYERS):
        # fused Q/K/V projection: one [B*S,H] x [H,3H] MXU matmul, single bias add.
        # (1/sqrt(HD) is pre-folded into the Q block of wqkv at init time.)
        x2b = x2.astype(jnp.bfloat16)
        qkv = (jnp.dot(x2b, wqkv_ref[li], preferred_element_type=jnp.float32)
               + bqkv_ref[li])
        qkv = qkv.reshape(B, S, 3 * H).astype(jnp.bfloat16)           # cast once

        wo_l = wo_ref[li]                                             # (H, H) bf16
        attn2 = jnp.zeros((B * S, H), jnp.float32)
        for hi in range(NH):                                          # static head loop
            c0 = hi * HD
            q_h = qkv[:, :, c0:c0 + HD]                               # (B, S, HD)
            k_h = qkv[:, :, H + c0:H + c0 + HD]
            v_h = qkv[:, :, 2 * H + c0:2 * H + c0 + HD]
            s = jnp.einsum('bqd,bkd->bqk', q_h, k_h,
                           preferred_element_type=jnp.float32)        # (B, S, S)
            s = s + mask_bss
            m = jnp.max(s, axis=-1, keepdims=True)
            p = jnp.exp(s - m)
            p = p * pl.reciprocal(jnp.sum(p, axis=-1, keepdims=True),
                                  approx=SOFTMAX_APPROX_RECIP)
            ctx_h = jnp.einsum('bqk,bkd->bqd', p.astype(jnp.bfloat16), v_h,
                               preferred_element_type=jnp.float32)    # (B, S, HD)
            # fold the output projection's head slice in here: the concatenated
            # context never exists -> no VMEM scratch, no masked lane stores.
            attn2 = attn2 + jnp.dot(
                ctx_h.reshape(B * S, HD).astype(jnp.bfloat16),
                wo_l[c0:c0 + HD, :],
                preferred_element_type=jnp.float32)

        attn2 = attn2 + bo_ref[li]
        h1 = _ln(x2 + attn2, g1_ref[li], be1_ref[li])

        # ---- feed-forward ----
        ff = (jnp.dot(h1.astype(jnp.bfloat16), w1_ref[li],
                      preferred_element_type=jnp.float32) + b1_ref[li])
        ff = _gelu(ff)
        ff = (jnp.dot(ff.astype(jnp.bfloat16), w2_ref[li],
                      preferred_element_type=jnp.float32) + b2_ref[li])
        x2 = _ln(h1 + ff, g2_ref[li], be2_ref[li])

    # ---- QA head: one tiny MXU matmul (A.B^T), lane-dense (2, B*S) output slab ----
    # row 0 = start logits, row 1 = end logits; wrapper reshapes to (B, S).
    logits_t = (jnp.einsum('kh,nh->kn', wqa_ref[...], x2,
                           preferred_element_type=jnp.float32)
                + bqa_ref[...])                                       # (2, B*S)
    logits_ref[...] = logits_t

    # ---- criterion: 0.5 * (CE(start) + CE(end)) with ignore_index(==S) semantics ---
    iota_s = jax.lax.broadcasted_iota(jnp.int32, (1, S), 1)

    def ce(row_idx, pos_ref_):
        tot = jnp.zeros((1, 1), jnp.float32)
        cnt = jnp.zeros((1, 1), jnp.float32)
        for b in range(B):                                            # B=2 static loop
            row = logits_t[row_idx:row_idx + 1, b * S:(b + 1) * S]    # (1, S)
            pos = jnp.clip(pos_ref_[b], 0, S)                         # scalar (SMEM)
            validf = jnp.where(pos < S, 1.0, 0.0)                     # pos==S ignored
            pos_idx = jnp.minimum(pos, S - 1)
            m = jnp.max(row, axis=-1, keepdims=True)
            lse = m + jnp.log(jnp.sum(jnp.exp(row - m), axis=-1, keepdims=True))
            picked = jnp.sum(jnp.where(iota_s == pos_idx, row, 0.0),
                             axis=-1, keepdims=True)
            tot = tot + validf * (lse - picked)
            cnt = cnt + validf
        # TODO(synk): torch returns NaN when every target is ignored; guarded here.
        return tot / jnp.maximum(cnt, 1.0)

    loss11 = 0.5 * (ce(0, sp_ref) + ce(1, ep_ref))                    # (1, 1)
    # (an SMEM (1,1) out_spec would skip the padded VMEM writeback; kept in VMEM
    #  for guaranteed lowering -- the writeback is a single 4 KiB tile.)
    loss_ref[...] = loss11


# ----------------------------- fused forward wrapper --------------------------
@jax.jit
def bert_qa_fused_forward(params, input_ids, token_type_ids, attention_mask,
                          start_positions, end_positions):
    # Only trivial layout plumbing stays outside the kernel (reshapes / dtype tags).
    ids_col = input_ids.reshape(B * S, 1).astype(jnp.int32)
    tt_col = token_type_ids.reshape(B * S, 1).astype(jnp.int32)
    amask = attention_mask.astype(jnp.int32)
    sp = start_positions.reshape(B).astype(jnp.int32)
    ep = end_positions.reshape(B).astype(jnp.int32)

    args = (ids_col, tt_col, amask,
            params['word_emb'], params['pos_emb'], params['type_emb'],
            params['emb_ln_g'], params['emb_ln_b'],
            params['wqkv'], params['bqkv'], params['wo'], params['bo'],
            params['ln1_g'], params['ln1_b'],
            params['w1'], params['b1'], params['w2'], params['b2'],
            params['ln2_g'], params['ln2_b'],
            params['qa_w'], params['qa_b'],
            sp, ep)

    flops = (2 * B * S * V * H
             + NLAYERS * (2 * B * S * H * 3 * H + 4 * B * S * S * H
                          + 2 * B * S * H * H + 4 * B * S * H * F)
             + 4 * B * S * H)
    transcendentals = NLAYERS * (B * NH * S * S + B * S * F) + 2 * B * S
    bytes_accessed = (sum(int(a.size) * a.dtype.itemsize for a in args)
                      + (2 * B * S + 1) * 4)

    logits_t, loss = pl.pallas_call(
        bert_qa_fused_kernel,
        out_shape=(jax.ShapeDtypeStruct((2, B * S), jnp.float32),
                   jax.ShapeDtypeStruct((1, 1), jnp.float32)),
        in_specs=[_vmem_spec()] * 22 + [_smem_spec(), _smem_spec()],
        out_specs=(_vmem_spec(), _vmem_spec()),
        cost_estimate=pl.CostEstimate(flops=flops,
                                      transcendentals=transcendentals,
                                      bytes_accessed=bytes_accessed),
    )(*args)

    start_logits = logits_t[0].reshape(B, S)
    end_logits = logits_t[1].reshape(B, S)
    return start_logits, end_logits, loss[0, 0]


# ----------------------------- reference CE (criterion fallback) -------------
@jax.jit
def _ce_loss_ref(start_logits, end_logits, start_positions, end_positions):
    def ce(logits, pos):
        pos = jnp.clip(pos.astype(jnp.int32), 0, S)
        valid = (pos < S).astype(jnp.float32)
        pos_idx = jnp.minimum(pos, S - 1)
        lse = jax.scipy.special.logsumexp(logits, axis=-1)
        picked = jnp.take_along_axis(logits, pos_idx[:, None], axis=-1)[:, 0]
        return jnp.sum(valid * (lse - picked)) / jnp.maximum(jnp.sum(valid), 1.0)
    return 0.5 * (ce(start_logits, start_positions) + ce(end_logits, end_positions))


# ----------------------------- params -----------------------------------------
def init_params(key):
    def nrm(k, shape):
        return 0.02 * jax.random.normal(k, shape, jnp.float32)

    keys = jax.random.split(key, 11)
    zeros_h = jnp.zeros((NLAYERS, 1, H), jnp.float32)
    attn_scale = 1.0 / math.sqrt(HD)
    # fused QKV weight with the attention scale folded into the Q block; the Q bias
    # would also need the same scaling if it were nonzero (it is zero here).
    wqkv = jnp.concatenate(
        [nrm(keys[3], (NLAYERS, H, H)) * attn_scale,
         nrm(keys[4], (NLAYERS, H, H)),
         nrm(keys[5], (NLAYERS, H, H))], axis=-1).astype(jnp.bfloat16)
    return {
        'word_emb': nrm(keys[0], (V, H)),
        'pos_emb': nrm(keys[1], (S, H)),
        'type_emb': nrm(keys[2], (2, H)),
        'emb_ln_g': jnp.ones((1, H), jnp.float32),
        'emb_ln_b': jnp.zeros((1, H), jnp.float32),
        'wqkv': wqkv,
        'bqkv': jnp.zeros((NLAYERS, 1, 3 * H), jnp.float32),
        'wo': nrm(keys[6], (NLAYERS, H, H)).astype(jnp.bfloat16), 'bo': zeros_h,
        'ln1_g': jnp.ones((NLAYERS, 1, H), jnp.float32), 'ln1_b': zeros_h,
        'w1': nrm(keys[7], (NLAYERS, H, F)).astype(jnp.bfloat16),
        'b1': jnp.zeros((NLAYERS, 1, F), jnp.float32),
        'w2': nrm(keys[8], (NLAYERS, F, H)).astype(jnp.bfloat16), 'b2': zeros_h,
        'ln2_g': jnp.ones((NLAYERS, 1, H), jnp.float32), 'ln2_b': zeros_h,
        # QA head stored as [2, H] (row 0 = start, row 1 = end) + [2, 1] bias
        'qa_w': nrm(keys[9], (2, H)),
        'qa_b': jnp.zeros((2, 1), jnp.float32),
    }


# ----------------------------- model / criterion wrappers ---------------------
class FusedBertQA:
    """Exposes `model` and `criterion` callables backed by ONE fused Pallas kernel.

    The fused kernel computes the CE loss alongside the logits, so the interface's
    criterion call costs nothing extra in the normal flow.  criterion() only reuses
    that value when it is called with exactly the tensors produced/consumed by the
    fused forward; otherwise it recomputes the loss from its arguments.
    """

    def __init__(self, params):
        self.params = params
        self._cache = None

    def model(self, *, input_ids, token_type_ids, attention_mask,
              start_positions, end_positions, **unused):
        start_logits, end_logits, loss = bert_qa_fused_forward(
            self.params, input_ids, token_type_ids, attention_mask,
            start_positions, end_positions)
        self._cache = (start_logits, end_logits, start_positions, end_positions, loss)
        return start_logits, end_logits

    def criterion(self, *, start_logits, end_logits,
                  start_positions, end_positions, **unused):
        if self._cache is not None:
            c_sl, c_el, c_sp, c_ep, c_loss = self._cache
            if (start_logits is c_sl and end_logits is c_el
                    and start_positions is c_sp and end_positions is c_ep):
                return c_loss            # fused-kernel loss, zero extra launches
        return _ce_loss_ref(start_logits, end_logits, start_positions, end_positions)


# ----------------------------- interface (mirrors the torch module) ----------
class QuestionAnsweringModelOutput:
    def __init__(self):
        self.loss = None
        self.start_logits = None
        self.end_logits = None


class BERT_Question_Answering_Interface:
    def __init__(self, model, criterion):
        self.model = model
        self.criterion = criterion

    def forward(self, **inputs):
        outputs_dict = {}
        outputs = QuestionAnsweringModelOutput()
        outputs_dict['start_positions'] = inputs['start_positions']
        outputs_dict['end_positions'] = inputs['end_positions']
        outputs_dict['start_logits'], outputs_dict['end_logits'] = self.model(**inputs)
        outputs.start_logits, outputs.end_logits = (outputs_dict['start_logits'],
                                                    outputs_dict['end_logits'])
        outputs.loss = self.criterion(**outputs_dict)
        return outputs

    __call__ = forward


# ----------------------------- main -------------------------------------------
if __name__ == "__main__":
    key = jax.random.PRNGKey(0)
    pkey, ikey, skey, ekey = jax.random.split(key, 4)

    params = init_params(pkey)
    fused = FusedBertQA(params)
    interface = BERT_Question_Answering_Interface(fused.model, fused.criterion)

    input_ids = jax.random.randint(ikey, (B, S), 0, V, dtype=jnp.int32)
    token_type_ids = jnp.zeros((B, S), jnp.int32)
    attention_mask = jnp.ones((B, S), jnp.int32)
    start_positions = jax.random.randint(skey, (B,), 0, S, dtype=jnp.int32)
    end_positions = jax.random.randint(ekey, (B,), 0, S, dtype=jnp.int32)

    out = interface(input_ids=input_ids,
                    token_type_ids=token_type_ids,
                    attention_mask=attention_mask,
                    start_positions=start_positions,
                    end_positions=end_positions)

    jax.block_until_ready((out.start_logits, out.end_logits, out.loss))
    assert out.start_logits.shape == (B, S)
    assert out.end_logits.shape == (B, S)
    assert out.loss.shape == ()
    assert bool(jnp.isfinite(out.loss))
    print("KERNEL_OK")
</pallas_src>

<mosaic_0001>
module attributes {stable_mosaic.version = 11 : i64} {
  func.func @bert_qa_fused_kernel(%arg0: memref<16x1xi32, #tpu.memory_space<vmem>>, %arg1: memref<16x1xi32, #tpu.memory_space<vmem>>, %arg2: memref<2x8xi32, #tpu.memory_space<vmem>>, %arg3: memref<100x32xf32, #tpu.memory_space<vmem>>, %arg4: memref<8x32xf32, #tpu.memory_space<vmem>>, %arg5: memref<2x32xf32, #tpu.memory_space<vmem>>, %arg6: memref<1x32xf32, #tpu.memory_space<vmem>>, %arg7: memref<1x32xf32, #tpu.memory_space<vmem>>, %arg8: memref<2x32x96xbf16, #tpu.memory_space<vmem>>, %arg9: memref<2x1x96xf32, #tpu.memory_space<vmem>>, %arg10: memref<2x32x32xbf16, #tpu.memory_space<vmem>>, %arg11: memref<2x1x32xf32, #tpu.memory_space<vmem>>, %arg12: memref<2x1x32xf32, #tpu.memory_space<vmem>>, %arg13: memref<2x1x32xf32, #tpu.memory_space<vmem>>, %arg14: memref<2x32x128xbf16, #tpu.memory_space<vmem>>, %arg15: memref<2x1x128xf32, #tpu.memory_space<vmem>>, %arg16: memref<2x128x32xbf16, #tpu.memory_space<vmem>>, %arg17: memref<2x1x32xf32, #tpu.memory_space<vmem>>, %arg18: memref<2x1x32xf32, #tpu.memory_space<vmem>>, %arg19: memref<2x1x32xf32, #tpu.memory_space<vmem>>, %arg20: memref<2x32xf32, #tpu.memory_space<vmem>>, %arg21: memref<2x1xf32, #tpu.memory_space<vmem>>, %arg22: memref<2xi32, #tpu.memory_space<smem>>, %arg23: memref<2xi32, #tpu.memory_space<smem>>, %arg24: memref<2x16xf32, #tpu.memory_space<vmem>>, %arg25: memref<1x1xf32, #tpu.memory_space<vmem>>) attributes {dimension_semantics = [], scalar_prefetch = 0 : i64, scratch_operands = 0 : i64, tpu.core_type = #tpu.core_type<tc>} {
    %c0 = arith.constant 0 : index
    %c0_0 = arith.constant 0 : index
    %0 = vector.load %arg0[%c0, %c0_0] : memref<16x1xi32, #tpu.memory_space<vmem>>, vector<16x1xi32>
    %1 = tpu.iota {dimensions = array<i32: 1>} : vector<16x100xi32>
    %2 = vector.broadcast %0 : vector<16x1xi32> to vector<16x100xi32>
    %3 = arith.cmpi eq, %1, %2 : vector<16x100xi32>
    %cst = arith.constant 1.000000e+00 : f32
    %cst_1 = arith.constant 0.000000e+00 : f32
    %4 = vector.broadcast %cst : f32 to vector<16x100xf32>
    %5 = vector.broadcast %cst_1 : f32 to vector<16x100xf32>
    %6 = arith.select %3, %4, %5 : vector<16x100xi1>, vector<16x100xf32>
    %c0_2 = arith.constant 0 : index
    %c0_3 = arith.constant 0 : index
    %7 = vector.load %arg3[%c0_2, %c0_3] : memref<100x32xf32, #tpu.memory_space<vmem>>, vector<100x32xf32>
    %cst_4 = arith.constant dense<0.000000e+00> : vector<16x32xf32>
    %8 = tpu.matmul %6, %7, %cst_4 {dimension_numbers = #tpu.dot_dimension_numbers<[1], [0], [0], [1], [0, 0, 1, 1], [], []>} : vector<16x100xf32>, vector<100x32xf32>, vector<16x32xf32> -> vector<16x32xf32>
    %c0_5 = arith.constant 0 : index
    %c0_6 = arith.constant 0 : index
    %9 = vector.load %arg1[%c0_5, %c0_6] : memref<16x1xi32, #tpu.memory_space<vmem>>, vector<16x1xi32>
    %c0_7 = arith.constant 0 : index
    %c0_8 = arith.constant 0 : index
    %10 = vector.load %arg5[%c0_7, %c0_8] : memref<2x32xf32, #tpu.memory_space<vmem>>, vector<2x32xf32>
    %c0_i32 = arith.constant 0 : i32
    %11 = vector.broadcast %c0_i32 : i32 to vector<16x1xi32>
    %12 = arith.cmpi eq, %9, %11 : vector<16x1xi32>
    %13 = vector.extract_strided_slice %10 {offsets = [0, 0], sizes = [1, 32], strides = [1, 1]} : vector<2x32xf32> to vector<1x32xf32>
    %14 = vector.extract_strided_slice %10 {offsets = [1, 0], sizes = [1, 32], strides = [1, 1]} : vector<2x32xf32> to vector<1x32xf32>
    %15 = vector.shape_cast %12 : vector<16x1xi1> to vector<16x1xi1>
    %16 = vector.broadcast %15 : vector<16x1xi1> to vector<16x32xi1>
    %17 = vector.shape_cast %13 : vector<1x32xf32> to vector<1x32xf32>
    %18 = vector.broadcast %17 : vector<1x32xf32> to vector<16x32xf32>
    %19 = vector.shape_cast %14 : vector<1x32xf32> to vector<1x32xf32>
    %20 = vector.broadcast %19 : vector<1x32xf32> to vector<16x32xf32>
    %21 = arith.select %16, %18, %20 : vector<16x32xi1>, vector<16x32xf32>
    %22 = arith.addf %8, %21 : vector<16x32xf32>
    %23 = vector.shape_cast %22 : vector<16x32xf32> to vector<2x8x32xf32>
    %c0_9 = arith.constant 0 : index
    %c0_10 = arith.constant 0 : index
    %24 = vector.load %arg4[%c0_9, %c0_10] : memref<8x32xf32, #tpu.memory_space<vmem>>, vector<8x32xf32>
    %25 = vector.shape_cast %24 : vector<8x32xf32> to vector<1x8x32xf32>
    %26 = vector.broadcast %25 : vector<1x8x32xf32> to vector<2x8x32xf32>
    %27 = arith.addf %23, %26 : vector<2x8x32xf32>
    %28 = vector.shape_cast %27 : vector<2x8x32xf32> to vector<16x32xf32>
    %c0_11 = arith.constant 0 : index
    %c0_12 = arith.constant 0 : index
    %29 = vector.load %arg6[%c0_11, %c0_12] : memref<1x32xf32, #tpu.memory_space<vmem>>, vector<1x32xf32>
    %c0_13 = arith.constant 0 : index
    %c0_14 = arith.constant 0 : index
    %30 = vector.load %arg7[%c0_13, %c0_14] : memref<1x32xf32, #tpu.memory_space<vmem>>, vector<1x32xf32>
    %cst_15 = arith.constant dense<0.000000e+00> : vector<16xf32>
    %31 = vector.multi_reduction <add>, %28, %cst_15 [1] : vector<16x32xf32> to vector<16xf32>
    %32 = vector.shape_cast %31 : vector<16xf32> to vector<16x1xf32>
    %cst_16 = arith.constant 3.200000e+01 : f32
    %33 = vector.broadcast %cst_16 : f32 to vector<16x1xf32>
    %34 = arith.divf %32, %33 : vector<16x1xf32>
    %35 = vector.broadcast %34 : vector<16x1xf32> to vector<16x32xf32>
    %36 = arith.subf %28, %35 : vector<16x32xf32>
    %37 = arith.mulf %36, %36 : vector<16x32xf32>
    %cst_17 = arith.constant dense<0.000000e+00> : vector<16xf32>
    %38 = vector.multi_reduction <add>, %37, %cst_17 [1] : vector<16x32xf32> to vector<16xf32>
    %39 = vector.shape_cast %38 : vector<16xf32> to vector<16x1xf32>
    %cst_18 = arith.constant 3.200000e+01 : f32
    %40 = vector.broadcast %cst_18 : f32 to vector<16x1xf32>
    %41 = arith.divf %39, %40 : vector<16x1xf32>
    %42 = vector.broadcast %34 : vector<16x1xf32> to vector<16x32xf32>
    %43 = arith.subf %28, %42 : vector<16x32xf32>
    %cst_19 = arith.constant 9.99999996E-13 : f32
    %44 = vector.broadcast %cst_19 : f32 to vector<16x1xf32>
    %45 = arith.addf %41, %44 : vector<16x1xf32>
    %46 = math.rsqrt %45 : vector<16x1xf32>
    %47 = vector.broadcast %46 : vector<16x1xf32> to vector<16x32xf32>
    %48 = arith.mulf %43, %47 : vector<16x32xf32>
    %49 = vector.broadcast %29 : vector<1x32xf32> to vector<16x32xf32>
    %50 = arith.mulf %48, %49 : vector<16x32xf32>
    %51 = vector.broadcast %30 : vector<1x32xf32> to vector<16x32xf32>
    %52 = arith.addf %50, %51 : vector<16x32xf32>
    %c0_20 = arith.constant 0 : index
    %c0_21 = arith.constant 0 : index
    %53 = vector.load %arg2[%c0_20, %c0_21] : memref<2x8xi32, #tpu.memory_space<vmem>>, vector<2x8xi32>
    %c0_i32_22 = arith.constant 0 : i32
    %54 = vector.broadcast %c0_i32_22 : i32 to vector<2x8xi32>
    %55 = arith.cmpi ne, %53, %54 : vector<2x8xi32>
    %cst_23 = arith.constant 0.000000e+00 : f32
    %cst_24 = arith.constant -1.000000e+09 : f32
    %56 = vector.broadcast %cst_23 : f32 to vector<2x8xf32>
    %57 = vector.broadcast %cst_24 : f32 to vector<2x8xf32>
    %58 = arith.select %55, %56, %57 : vector<2x8xi1>, vector<2x8xf32>
    %59 = vector.shape_cast %58 : vector<2x8xf32> to vector<2x1x8xf32>
    %60 = vector.shape_cast %59 : vector<2x1x8xf32> to vector<2x1x8xf32>
    %61 = vector.broadcast %60 : vector<2x1x8xf32> to vector<2x8x8xf32>
    %62 = arith.truncf %52 : vector<16x32xf32> to vector<16x32xbf16>
    %c0_25 = arith.constant 0 : index
    %c0_26 = arith.constant 0 : index
    %c0_27 = arith.constant 0 : index
    %63 = vector.load %arg8[%c0_25, %c0_26, %c0_27] : memref<2x32x96xbf16, #tpu.memory_space<vmem>>, vector<1x32x96xbf16>
    %64 = vector.shape_cast %63 : vector<1x32x96xbf16> to vector<32x96xbf16>
    %cst_28 = arith.constant dense<0.000000e+00> : vector<16x96xf32>
    %65 = tpu.matmul %62, %64, %cst_28 {dimension_numbers = #tpu.dot_dimension_numbers<[1], [0], [0], [1], [0, 0, 1, 1], [], []>} : vector<16x32xbf16>, vector<32x96xbf16>, vector<16x96xf32> -> vector<16x96xf32>
    %c0_29 = arith.constant 0 : index
    %c0_30 = arith.constant 0 : index
    %c0_31 = arith.constant 0 : index
    %66 = vector.load %arg9[%c0_29, %c0_30, %c0_31] : memref<2x1x96xf32, #tpu.memory_space<vmem>>, vector<1x1x96xf32>
    %67 = vector.shape_cast %66 : vector<1x1x96xf32> to vector<1x96xf32>
    %68 = vector.broadcast %67 : vector<1x96xf32> to vector<16x96xf32>
    %69 = arith.addf %65, %68 : vector<16x96xf32>
    %70 = vector.shape_cast %69 : vector<16x96xf32> to vector<2x8x96xf32>
    %71 = arith.truncf %70 : vector<2x8x96xf32> to vector<2x8x96xbf16>
    %c0_32 = arith.constant 0 : index
    %c0_33 = arith.constant 0 : index
    %c0_34 = arith.constant 0 : index
    %72 = vector.load %arg10[%c0_32, %c0_33, %c0_34] : memref<2x32x32xbf16, #tpu.memory_space<vmem>>, vector<1x32x32xbf16>
    %73 = vector.shape_cast %72 : vector<1x32x32xbf16> to vector<32x32xbf16>
    %cst_35 = arith.constant 0.000000e+00 : f32
    %74 = vector.broadcast %cst_35 : f32 to vector<16x32xf32>
    %75 = vector.extract_strided_slice %71 {offsets = [0, 0, 0], sizes = [2, 8, 8], strides = [1, 1, 1]} : vector<2x8x96xbf16> to vector<2x8x8xbf16>
    %76 = vector.extract_strided_slice %71 {offsets = [0, 0, 32], sizes = [2, 8, 8], strides = [1, 1, 1]} : vector<2x8x96xbf16> to vector<2x8x8xbf16>
    %77 = vector.extract_strided_slice %71 {offsets = [0, 0, 64], sizes = [2, 8, 8], strides = [1, 1, 1]} : vector<2x8x96xbf16> to vector<2x8x8xbf16>
    "tpu.trace_start"() <{level = 10 : i32, message = "bqd,bkd->bqk"}> : () -> ()
    %cst_36 = arith.constant dense<0.000000e+00> : vector<2x8x8xf32>
    %78 = tpu.matmul %75, %76, %cst_36 {dimension_numbers = #tpu.dot_dimension_numbers<[2], [2], [1], [1], [0, 0, 0, 1, 1, 1], [0], [0]>} : vector<2x8x8xbf16>, vector<2x8x8xbf16>, vector<2x8x8xf32> -> vector<2x8x8xf32>
    "tpu.trace_stop"() : () -> ()
    %79 = arith.addf %78, %61 : vector<2x8x8xf32>
    %cst_37 = arith.constant dense<0xFF800000> : vector<2x8xf32>
    %80 = vector.multi_reduction <maximumf>, %79, %cst_37 [2] : vector<2x8x8xf32> to vector<2x8xf32>
    %81 = vector.shape_cast %80 : vector<2x8xf32> to vector<2x8x1xf32>
    %82 = vector.broadcast %81 : vector<2x8x1xf32> to vector<2x8x8xf32>
    %83 = arith.subf %79, %82 : vector<2x8x8xf32>
    %84 = math.exp %83 : vector<2x8x8xf32>
    %cst_38 = arith.constant dense<0.000000e+00> : vector<2x8xf32>
    %85 = vector.multi_reduction <add>, %84, %cst_38 [2] : vector<2x8x8xf32> to vector<2x8xf32>
    %86 = vector.shape_cast %85 : vector<2x8xf32> to vector<2x8x1xf32>
    %87 = tpu.reciprocal %86 {approx = true} : vector<2x8x1xf32> -> vector<2x8x1xf32>
    %88 = vector.broadcast %87 : vector<2x8x1xf32> to vector<2x8x8xf32>
    %89 = arith.mulf %84, %88 : vector<2x8x8xf32>
    %90 = arith.truncf %89 : vector<2x8x8xf32> to vector<2x8x8xbf16>
    "tpu.trace_start"() <{level = 10 : i32, message = "bqk,bkd->bqd"}> : () -> ()
    %cst_39 = arith.constant dense<0.000000e+00> : vector<2x8x8xf32>
    %91 = tpu.matmul %90, %77, %cst_39 {dimension_numbers = #tpu.dot_dimension_numbers<[2], [1], [1], [2], [0, 0, 0, 1, 1, 2], [0], [0]>} : vector<2x8x8xbf16>, vector<2x8x8xbf16>, vector<2x8x8xf32> -> vector<2x8x8xf32>
    "tpu.trace_stop"() : () -> ()
    %92 = vector.shape_cast %91 : vector<2x8x8xf32> to vector<16x8xf32>
    %93 = arith.truncf %92 : vector<16x8xf32> to vector<16x8xbf16>
    %94 = vector.extract_strided_slice %73 {offsets = [0, 0], sizes = [8, 32], strides = [1, 1]} : vector<32x32xbf16> to vector<8x32xbf16>
    %cst_40 = arith.constant dense<0.000000e+00> : vector<16x32xf32>
    %95 = tpu.matmul %93, %94, %cst_40 {dimension_numbers = #tpu.dot_dimension_numbers<[1], [0], [0], [1], [0, 0, 1, 1], [], []>} : vector<16x8xbf16>, vector<8x32xbf16>, vector<16x32xf32> -> vector<16x32xf32>
    %96 = arith.addf %74, %95 : vector<16x32xf32>
    %97 = vector.extract_strided_slice %71 {offsets = [0, 0, 8], sizes = [2, 8, 8], strides = [1, 1, 1]} : vector<2x8x96xbf16> to vector<2x8x8xbf16>
    %98 = vector.extract_strided_slice %71 {offsets = [0, 0, 40], sizes = [2, 8, 8], strides = [1, 1, 1]} : vector<2x8x96xbf16> to vector<2x8x8xbf16>
    %99 = vector.extract_strided_slice %71 {offsets = [0, 0, 72], sizes = [2, 8, 8], strides = [1, 1, 1]} : vector<2x8x96xbf16> to vector<2x8x8xbf16>
    "tpu.trace_start"() <{level = 10 : i32, message = "bqd,bkd->bqk"}> : () -> ()
    %cst_41 = arith.constant dense<0.000000e+00> : vector<2x8x8xf32>
    %100 = tpu.matmul %97, %98, %cst_41 {dimension_numbers = #tpu.dot_dimension_numbers<[2], [2], [1], [1], [0, 0, 0, 1, 1, 1], [0], [0]>} : vector<2x8x8xbf16>, vector<2x8x8xbf16>, vector<2x8x8xf32> -> vector<2x8x8xf32>
    "tpu.trace_stop"() : () -> ()
    %101 = arith.addf %100, %61 : vector<2x8x8xf32>
    %cst_42 = arith.constant dense<0xFF800000> : vector<2x8xf32>
    %102 = vector.multi_reduction <maximumf>, %101, %cst_42 [2] : vector<2x8x8xf32> to vector<2x8xf32>
    %103 = vector.shape_cast %102 : vector<2x8xf32> to vector<2x8x1xf32>
    %104 = vector.broadcast %103 : vector<2x8x1xf32> to vector<2x8x8xf32>
    %105 = arith.subf %101, %104 : vector<2x8x8xf32>
    %106 = math.exp %105 : vector<2x8x8xf32>
    %cst_43 = arith.constant dense<0.000000e+00> : vector<2x8xf32>
    %107 = vector.multi_reduction <add>, %106, %cst_43 [2] : vector<2x8x8xf32> to vector<2x8xf32>
    %108 = vector.shape_cast %107 : vector<2x8xf32> to vector<2x8x1xf32>
    %109 = tpu.reciprocal %108 {approx = true} : vector<2x8x1xf32> -> vector<2x8x1xf32>
    %110 = vector.broadcast %109 : vector<2x8x1xf32> to vector<2x8x8xf32>
    %111 = arith.mulf %106, %110 : vector<2x8x8xf32>
    %112 = arith.truncf %111 : vector<2x8x8xf32> to vector<2x8x8xbf16>
    "tpu.trace_start"() <{level = 10 : i32, message = "bqk,bkd->bqd"}> : () -> ()
    %cst_44 = arith.constant dense<0.000000e+00> : vector<2x8x8xf32>
    %113 = tpu.matmul %112, %99, %cst_44 {dimension_numbers = #tpu.dot_dimension_numbers<[2], [1], [1], [2], [0, 0, 0, 1, 1, 2], [0], [0]>} : vector<2x8x8xbf16>, vector<2x8x8xbf16>, vector<2x8x8xf32> -> vector<2x8x8xf32>
    "tpu.trace_stop"() : () -> ()
    %114 = vector.shape_cast %113 : vector<2x8x8xf32> to vector<16x8xf32>
    %115 = arith.truncf %114 : vector<16x8xf32> to vector<16x8xbf16>
    %116 = vector.extract_strided_slice %73 {offsets = [8, 0], sizes = [8, 32], strides = [1, 1]} : vector<32x32xbf16> to vector<8x32xbf16>
    %cst_45 = arith.constant dense<0.000000e+00> : vector<16x32xf32>
    %117 = tpu.matmul %115, %116, %cst_45 {dimension_numbers = #tpu.dot_dimension_numbers<[1], [0], [0], [1], [0, 0, 1, 1], [], []>} : vector<16x8xbf16>, vector<8x32xbf16>, vector<16x32xf32> -> vector<16x32xf32>
    %118 = arith.addf %96, %117 : vector<16x32xf32>
    %119 = vector.extract_strided_slice %71 {offsets = [0, 0, 16], sizes = [2, 8, 8], strides = [1, 1, 1]} : vector<2x8x96xbf16> to vector<2x8x8xbf16>
    %120 = vector.extract_strided_slice %71 {offsets = [0, 0, 48], sizes = [2, 8, 8], strides = [1, 1, 1]} : vector<2x8x96xbf16> to vector<2x8x8xbf16>
    %121 = vector.extract_strided_slice %71 {offsets = [0, 0, 80], sizes = [2, 8, 8], strides = [1, 1, 1]} : vector<2x8x96xbf16> to vector<2x8x8xbf16>
    "tpu.trace_start"() <{level = 10 : i32, message = "bqd,bkd->bqk"}> : () -> ()
    %cst_46 = arith.constant dense<0.000000e+00> : vector<2x8x8xf32>
    %122 = tpu.matmul %119, %120, %cst_46 {dimension_numbers = #tpu.dot_dimension_numbers<[2], [2], [1], [1], [0, 0, 0, 1, 1, 1], [0], [0]>} : vector<2x8x8xbf16>, vector<2x8x8xbf16>, vector<2x8x8xf32> -> vector<2x8x8xf32>
    "tpu.trace_stop"() : () -> ()
    %123 = arith.addf %122, %61 : vector<2x8x8xf32>
    %cst_47 = arith.constant dense<0xFF800000> : vector<2x8xf32>
    %124 = vector.multi_reduction <maximumf>, %123, %cst_47 [2] : vector<2x8x8xf32> to vector<2x8xf32>
    %125 = vector.shape_cast %124 : vector<2x8xf32> to vector<2x8x1xf32>
    %126 = vector.broadcast %125 : vector<2x8x1xf32> to vector<2x8x8xf32>
    %127 = arith.subf %123, %126 : vector<2x8x8xf32>
    %128 = math.exp %127 : vector<2x8x8xf32>
    %cst_48 = arith.constant dense<0.000000e+00> : vector<2x8xf32>
    %129 = vector.multi_reduction <add>, %128, %cst_48 [2] : vector<2x8x8xf32> to vector<2x8xf32>
    %130 = vector.shape_cast %129 : vector<2x8xf32> to vector<2x8x1xf32>
    %131 = tpu.reciprocal %130 {approx = true} : vector<2x8x1xf32> -> vector<2x8x1xf32>
    %132 = vector.broadcast %131 : vector<2x8x1xf32> to vector<2x8x8xf32>
    %133 = arith.mulf %128, %132 : vector<2x8x8xf32>
    %134 = arith.truncf %133 : vector<2x8x8xf32> to vector<2x8x8xbf16>
    "tpu.trace_start"() <{level = 10 : i32, message = "bqk,bkd->bqd"}> : () -> ()
    %cst_49 = arith.constant dense<0.000000e+00> : vector<2x8x8xf32>
    %135 = tpu.matmul %134, %121, %cst_49 {dimension_numbers = #tpu.dot_dimension_numbers<[2], [1], [1], [2], [0, 0, 0, 1, 1, 2], [0], [0]>} : vector<2x8x8xbf16>, vector<2x8x8xbf16>, vector<2x8x8xf32> -> vector<2x8x8xf32>
    "tpu.trace_stop"() : () -> ()
    %136 = vector.shape_cast %135 : vector<2x8x8xf32> to vector<16x8xf32>
    %137 = arith.truncf %136 : vector<16x8xf32> to vector<16x8xbf16>
    %138 = vector.extract_strided_slice %73 {offsets = [16, 0], sizes = [8, 32], strides = [1, 1]} : vector<32x32xbf16> to vector<8x32xbf16>
    %cst_50 = arith.constant dense<0.000000e+00> : vector<16x32xf32>
    %139 = tpu.matmul %137, %138, %cst_50 {dimension_numbers = #tpu.dot_dimension_numbers<[1], [0], [0], [1], [0, 0, 1, 1], [], []>} : vector<16x8xbf16>, vector<8x32xbf16>, vector<16x32xf32> -> vector<16x32xf32>
    %140 = arith.addf %118, %139 : vector<16x32xf32>
    %141 = vector.extract_strided_slice %71 {offsets = [0, 0, 24], sizes = [2, 8, 8], strides = [1, 1, 1]} : vector<2x8x96xbf16> to vector<2x8x8xbf16>
    %142 = vector.extract_strided_slice %71 {offsets = [0, 0, 56], sizes = [2, 8, 8], strides = [1, 1, 1]} : vector<2x8x96xbf16> to vector<2x8x8xbf16>
    %143 = vector.extract_strided_slice %71 {offsets = [0, 0, 88], sizes = [2, 8, 8], strides = [1, 1, 1]} : vector<2x8x96xbf16> to vector<2x8x8xbf16>
    "tpu.trace_start"() <{level = 10 : i32, message = "bqd,bkd->bqk"}> : () -> ()
    %cst_51 = arith.constant dense<0.000000e+00> : vector<2x8x8xf32>
    %144 = tpu.matmul %141, %142, %cst_51 {dimension_numbers = #tpu.dot_dimension_numbers<[2], [2], [1], [1], [0, 0, 0, 1, 1, 1], [0], [0]>} : vector<2x8x8xbf16>, vector<2x8x8xbf16>, vector<2x8x8xf32> -> vector<2x8x8xf32>
    "tpu.trace_stop"() : () -> ()
    %145 = arith.addf %144, %61 : vector<2x8x8xf32>
    %cst_52 = arith.constant dense<0xFF800000> : vector<2x8xf32>
    %146 = vector.multi_reduction <maximumf>, %145, %cst_52 [2] : vector<2x8x8xf32> to vector<2x8xf32>
    %147 = vector.shape_cast %146 : vector<2x8xf32> to vector<2x8x1xf32>
    %148 = vector.broadcast %147 : vector<2x8x1xf32> to vector<2x8x8xf32>
    %149 = arith.subf %145, %148 : vector<2x8x8xf32>
    %150 = math.exp %149 : vector<2x8x8xf32>
    %cst_53 = arith.constant dense<0.000000e+00> : vector<2x8xf32>
    %151 = vector.multi_reduction <add>, %150, %cst_53 [2] : vector<2x8x8xf32> to vector<2x8xf32>
    %152 = vector.shape_cast %151 : vector<2x8xf32> to vector<2x8x1xf32>
    %153 = tpu.reciprocal %152 {approx = true} : vector<2x8x1xf32> -> vector<2x8x1xf32>
    %154 = vector.broadcast %153 : vector<2x8x1xf32> to vector<2x8x8xf32>
    %155 = arith.mulf %150, %154 : vector<2x8x8xf32>
    %156 = arith.truncf %155 : vector<2x8x8xf32> to vector<2x8x8xbf16>
    "tpu.trace_start"() <{level = 10 : i32, message = "bqk,bkd->bqd"}> : () -> ()
    %cst_54 = arith.constant dense<0.000000e+00> : vector<2x8x8xf32>
    %157 = tpu.matmul %156, %143, %cst_54 {dimension_numbers = #tpu.dot_dimension_numbers<[2], [1], [1], [2], [0, 0, 0, 1, 1, 2], [0], [0]>} : vector<2x8x8xbf16>, vector<2x8x8xbf16>, vector<2x8x8xf32> -> vector<2x8x8xf32>
    "tpu.trace_stop"() : () -> ()
    %158 = vector.shape_cast %157 : vector<2x8x8xf32> to vector<16x8xf32>
    %159 = arith.truncf %158 : vector<16x8xf32> to vector<16x8xbf16>
    %160 = vector.extract_strided_slice %73 {offsets = [24, 0], sizes = [8, 32], strides = [1, 1]} : vector<32x32xbf16> to vector<8x32xbf16>
    %cst_55 = arith.constant dense<0.000000e+00> : vector<16x32xf32>
    %161 = tpu.matmul %159, %160, %cst_55 {dimension_numbers = #tpu.dot_dimension_numbers<[1], [0], [0], [1], [0, 0, 1, 1], [], []>} : vector<16x8xbf16>, vector<8x32xbf16>, vector<16x32xf32> -> vector<16x32xf32>
    %162 = arith.addf %140, %161 : vector<16x32xf32>
    %c0_56 = arith.constant 0 : index
    %c0_57 = arith.constant 0 : index
    %c0_58 = arith.constant 0 : index
    %163 = vector.load %arg11[%c0_56, %c0_57, %c0_58] : memref<2x1x32xf32, #tpu.memory_space<vmem>>, vector<1x1x32xf32>
    %164 = vector.shape_cast %163 : vector<1x1x32xf32> to vector<1x32xf32>
    %165 = vector.broadcast %164 : vector<1x32xf32> to vector<16x32xf32>
    %166 = arith.addf %162, %165 : vector<16x32xf32>
    %167 = arith.addf %52, %166 : vector<16x32xf32>
    %c0_59 = arith.constant 0 : index
    %c0_60 = arith.constant 0 : index
    %c0_61 = arith.constant 0 : index
    %168 = vector.load %arg12[%c0_59, %c0_60, %c0_61] : memref<2x1x32xf32, #tpu.memory_space<vmem>>, vector<1x1x32xf32>
    %169 = vector.shape_cast %168 : vector<1x1x32xf32> to vector<1x32xf32>
    %c0_62 = arith.constant 0 : index
    %c0_63 = arith.constant 0 : index
    %c0_64 = arith.constant 0 : index
    %170 = vector.load %arg13[%c0_62, %c0_63, %c0_64] : memref<2x1x32xf32, #tpu.memory_space<vmem>>, vector<1x1x32xf32>
    %171 = vector.shape_cast %170 : vector<1x1x32xf32> to vector<1x32xf32>
    %cst_65 = arith.constant dense<0.000000e+00> : vector<16xf32>
    %172 = vector.multi_reduction <add>, %167, %cst_65 [1] : vector<16x32xf32> to vector<16xf32>
    %173 = vector.shape_cast %172 : vector<16xf32> to vector<16x1xf32>
    %cst_66 = arith.constant 3.200000e+01 : f32
    %174 = vector.broadcast %cst_66 : f32 to vector<16x1xf32>
    %175 = arith.divf %173, %174 : vector<16x1xf32>
    %176 = vector.broadcast %175 : vector<16x1xf32> to vector<16x32xf32>
    %177 = arith.subf %167, %176 : vector<16x32xf32>
    %178 = arith.mulf %177, %177 : vector<16x32xf32>
    %cst_67 = arith.constant dense<0.000000e+00> : vector<16xf32>
    %179 = vector.multi_reduction <add>, %178, %cst_67 [1] : vector<16x32xf32> to vector<16xf32>
    %180 = vector.shape_cast %179 : vector<16xf32> to vector<16x1xf32>
    %cst_68 = arith.constant 3.200000e+01 : f32
    %181 = vector.broadcast %cst_68 : f32 to vector<16x1xf32>
    %182 = arith.divf %180, %181 : vector<16x1xf32>
    %183 = vector.broadcast %175 : vector<16x1xf32> to vector<16x32xf32>
    %184 = arith.subf %167, %183 : vector<16x32xf32>
    %cst_69 = arith.constant 9.99999996E-13 : f32
    %185 = vector.broadcast %cst_69 : f32 to vector<16x1xf32>
    %186 = arith.addf %182, %185 : vector<16x1xf32>
    %187 = math.rsqrt %186 : vector<16x1xf32>
    %188 = vector.broadcast %187 : vector<16x1xf32> to vector<16x32xf32>
    %189 = arith.mulf %184, %188 : vector<16x32xf32>
    %190 = vector.broadcast %169 : vector<1x32xf32> to vector<16x32xf32>
    %191 = arith.mulf %189, %190 : vector<16x32xf32>
    %192 = vector.broadcast %171 : vector<1x32xf32> to vector<16x32xf32>
    %193 = arith.addf %191, %192 : vector<16x32xf32>
    %194 = arith.truncf %193 : vector<16x32xf32> to vector<16x32xbf16>
    %c0_70 = arith.constant 0 : index
    %c0_71 = arith.constant 0 : index
    %c0_72 = arith.constant 0 : index
    %195 = vector.load %arg14[%c0_70, %c0_71, %c0_72] : memref<2x32x128xbf16, #tpu.memory_space<vmem>>, vector<1x32x128xbf16>
    %196 = vector.shape_cast %195 : vector<1x32x128xbf16> to vector<32x128xbf16>
    %cst_73 = arith.constant dense<0.000000e+00> : vector<16x128xf32>
    %197 = tpu.matmul %194, %196, %cst_73 {dimension_numbers = #tpu.dot_dimension_numbers<[1], [0], [0], [1], [0, 0, 1, 1], [], []>} : vector<16x32xbf16>, vector<32x128xbf16>, vector<16x128xf32> -> vector<16x128xf32>
    %c0_74 = arith.constant 0 : index
    %c0_75 = arith.constant 0 : index
    %c0_76 = arith.constant 0 : index
    %198 = vector.load %arg15[%c0_74, %c0_75, %c0_76] : memref<2x1x128xf32, #tpu.memory_space<vmem>>, vector<1x1x128xf32>
    %199 = vector.shape_cast %198 : vector<1x1x128xf32> to vector<1x128xf32>
    %200 = vector.broadcast %199 : vector<1x128xf32> to vector<16x128xf32>
    %201 = arith.addf %197, %200 : vector<16x128xf32>
    %cst_77 = arith.constant 5.000000e-01 : f32
    %202 = vector.broadcast %cst_77 : f32 to vector<16x128xf32>
    %203 = arith.mulf %202, %201 : vector<16x128xf32>
    %cst_78 = arith.constant 4.471500e-02 : f32
    %204 = vector.broadcast %cst_78 : f32 to vector<16x128xf32>
    %205 = arith.mulf %204, %201 : vector<16x128xf32>
    %206 = arith.mulf %205, %201 : vector<16x128xf32>
    %207 = arith.mulf %206, %201 : vector<16x128xf32>
    %208 = arith.addf %201, %207 : vector<16x128xf32>
    %cst_79 = arith.constant 0.797884583 : f32
    %209 = vector.broadcast %cst_79 : f32 to vector<16x128xf32>
    %210 = arith.mulf %209, %208 : vector<16x128xf32>
    %211 = math.tanh %210 : vector<16x128xf32>
    %cst_80 = arith.constant 1.000000e+00 : f32
    %212 = vector.broadcast %cst_80 : f32 to vector<16x128xf32>
    %213 = arith.addf %212, %211 : vector<16x128xf32>
    %214 = arith.mulf %203, %213 : vector<16x128xf32>
    %215 = arith.truncf %214 : vector<16x128xf32> to vector<16x128xbf16>
    %c0_81 = arith.constant 0 : index
    %c0_82 = arith.constant 0 : index
    %c0_83 = arith.constant 0 : index
    %216 = vector.load %arg16[%c0_81, %c0_82, %c0_83] : memref<2x128x32xbf16, #tpu.memory_space<vmem>>, vector<1x128x32xbf16>
    %217 = vector.shape_cast %216 : vector<1x128x32xbf16> to vector<128x32xbf16>
    %cst_84 = arith.constant dense<0.000000e+00> : vector<16x32xf32>
    %218 = tpu.matmul %215, %217, %cst_84 {dimension_numbers = #tpu.dot_dimension_numbers<[1], [0], [0], [1], [0, 0, 1, 1], [], []>} : vector<16x128xbf16>, vector<128x32xbf16>, vector<16x32xf32> -> vector<16x32xf32>
    %c0_85 = arith.constant 0 : index
    %c0_86 = arith.constant 0 : index
    %c0_87 = arith.constant 0 : index
    %219 = vector.load %arg17[%c0_85, %c0_86, %c0_87] : memref<2x1x32xf32, #tpu.memory_space<vmem>>, vector<1x1x32xf32>
    %220 = vector.shape_cast %219 : vector<1x1x32xf32> to vector<1x32xf32>
    %221 = vector.broadcast %220 : vector<1x32xf32> to vector<16x32xf32>
    %222 = arith.addf %218, %221 : vector<16x32xf32>
    %223 = arith.addf %193, %222 : vector<16x32xf32>
    %c0_88 = arith.constant 0 : index
    %c0_89 = arith.constant 0 : index
    %c0_90 = arith.constant 0 : index
    %224 = vector.load %arg18[%c0_88, %c0_89, %c0_90] : memref<2x1x32xf32, #tpu.memory_space<vmem>>, vector<1x1x32xf32>
    %225 = vector.shape_cast %224 : vector<1x1x32xf32> to vector<1x32xf32>
    %c0_91 = arith.constant 0 : index
    %c0_92 = arith.constant 0 : index
    %c0_93 = arith.constant 0 : index
    %226 = vector.load %arg19[%c0_91, %c0_92, %c0_93] : memref<2x1x32xf32, #tpu.memory_space<vmem>>, vector<1x1x32xf32>
    %227 = vector.shape_cast %226 : vector<1x1x32xf32> to vector<1x32xf32>
    %cst_94 = arith.constant dense<0.000000e+00> : vector<16xf32>
    %228 = vector.multi_reduction <add>, %223, %cst_94 [1] : vector<16x32xf32> to vector<16xf32>
    %229 = vector.shape_cast %228 : vector<16xf32> to vector<16x1xf32>
    %cst_95 = arith.constant 3.200000e+01 : f32
    %230 = vector.broadcast %cst_95 : f32 to vector<16x1xf32>
    %231 = arith.divf %229, %230 : vector<16x1xf32>
    %232 = vector.broadcast %231 : vector<16x1xf32> to vector<16x32xf32>
    %233 = arith.subf %223, %232 : vector<16x32xf32>
    %234 = arith.mulf %233, %233 : vector<16x32xf32>
    %cst_96 = arith.constant dense<0.000000e+00> : vector<16xf32>
    %235 = vector.multi_reduction <add>, %234, %cst_96 [1] : vector<16x32xf32> to vector<16xf32>
    %236 = vector.shape_cast %235 : vector<16xf32> to vector<16x1xf32>
    %cst_97 = arith.constant 3.200000e+01 : f32
    %237 = vector.broadcast %cst_97 : f32 to vector<16x1xf32>
    %238 = arith.divf %236, %237 : vector<16x1xf32>
    %239 = vector.broadcast %231 : vector<16x1xf32> to vector<16x32xf32>
    %240 = arith.subf %223, %239 : vector<16x32xf32>
    %cst_98 = arith.constant 9.99999996E-13 : f32
    %241 = vector.broadcast %cst_98 : f32 to vector<16x1xf32>
    %242 = arith.addf %238, %241 : vector<16x1xf32>
    %243 = math.rsqrt %242 : vector<16x1xf32>
    %244 = vector.broadcast %243 : vector<16x1xf32> to vector<16x32xf32>
    %245 = arith.mulf %240, %244 : vector<16x32xf32>
    %246 = vector.broadcast %225 : vector<1x32xf32> to vector<16x32xf32>
    %247 = arith.mulf %245, %246 : vector<16x32xf32>
    %248 = vector.broadcast %227 : vector<1x32xf32> to vector<16x32xf32>
    %249 = arith.addf %247, %248 : vector<16x32xf32>
    %250 = arith.truncf %249 : vector<16x32xf32> to vector<16x32xbf16>
    %c1 = arith.constant 1 : index
    %c0_99 = arith.constant 0 : index
    %c0_100 = arith.constant 0 : index
    %251 = vector.load %arg8[%c1, %c0_99, %c0_100] : memref<2x32x96xbf16, #tpu.memory_space<vmem>>, vector<1x32x96xbf16>
    %252 = vector.shape_cast %251 : vector<1x32x96xbf16> to vector<32x96xbf16>
    %cst_101 = arith.constant dense<0.000000e+00> : vector<16x96xf32>
    %253 = tpu.matmul %250, %252, %cst_101 {dimension_numbers = #tpu.dot_dimension_numbers<[1], [0], [0], [1], [0, 0, 1, 1], [], []>} : vector<16x32xbf16>, vector<32x96xbf16>, vector<16x96xf32> -> vector<16x96xf32>
    %c1_102 = arith.constant 1 : index
    %c0_103 = arith.constant 0 : index
    %c0_104 = arith.constant 0 : index
    %254 = vector.load %arg9[%c1_102, %c0_103, %c0_104] : memref<2x1x96xf32, #tpu.memory_space<vmem>>, vector<1x1x96xf32>
    %255 = vector.shape_cast %254 : vector<1x1x96xf32> to vector<1x96xf32>
    %256 = vector.broadcast %255 : vector<1x96xf32> to vector<16x96xf32>
    %257 = arith.addf %253, %256 : vector<16x96xf32>
    %258 = vector.shape_cast %257 : vector<16x96xf32> to vector<2x8x96xf32>
    %259 = arith.truncf %258 : vector<2x8x96xf32> to vector<2x8x96xbf16>
    %c1_105 = arith.constant 1 : index
    %c0_106 = arith.constant 0 : index
    %c0_107 = arith.constant 0 : index
    %260 = vector.load %arg10[%c1_105, %c0_106, %c0_107] : memref<2x32x32xbf16, #tpu.memory_space<vmem>>, vector<1x32x32xbf16>
    %261 = vector.shape_cast %260 : vector<1x32x32xbf16> to vector<32x32xbf16>
    %cst_108 = arith.constant 0.000000e+00 : f32
    %262 = vector.broadcast %cst_108 : f32 to vector<16x32xf32>
    %263 = vector.extract_strided_slice %259 {offsets = [0, 0, 0], sizes = [2, 8, 8], strides = [1, 1, 1]} : vector<2x8x96xbf16> to vector<2x8x8xbf16>
    %264 = vector.extract_strided_slice %259 {offsets = [0, 0, 32], sizes = [2, 8, 8], strides = [1, 1, 1]} : vector<2x8x96xbf16> to vector<2x8x8xbf16>
    %265 = vector.extract_strided_slice %259 {offsets = [0, 0, 64], sizes = [2, 8, 8], strides = [1, 1, 1]} : vector<2x8x96xbf16> to vector<2x8x8xbf16>
    "tpu.trace_start"() <{level = 10 : i32, message = "bqd,bkd->bqk"}> : () -> ()
    %cst_109 = arith.constant dense<0.000000e+00> : vector<2x8x8xf32>
    %266 = tpu.matmul %263, %264, %cst_109 {dimension_numbers = #tpu.dot_dimension_numbers<[2], [2], [1], [1], [0, 0, 0, 1, 1, 1], [0], [0]>} : vector<2x8x8xbf16>, vector<2x8x8xbf16>, vector<2x8x8xf32> -> vector<2x8x8xf32>
    "tpu.trace_stop"() : () -> ()
    %267 = arith.addf %266, %61 : vector<2x8x8xf32>
    %cst_110 = arith.constant dense<0xFF800000> : vector<2x8xf32>
    %268 = vector.multi_reduction <maximumf>, %267, %cst_110 [2] : vector<2x8x8xf32> to vector<2x8xf32>
    %269 = vector.shape_cast %268 : vector<2x8xf32> to vector<2x8x1xf32>
    %270 = vector.broadcast %269 : vector<2x8x1xf32> to vector<2x8x8xf32>
    %271 = arith.subf %267, %270 : vector<2x8x8xf32>
    %272 = math.exp %271 : vector<2x8x8xf32>
    %cst_111 = arith.constant dense<0.000000e+00> : vector<2x8xf32>
    %273 = vector.multi_reduction <add>, %272, %cst_111 [2] : vector<2x8x8xf32> to vector<2x8xf32>
    %274 = vector.shape_cast %273 : vector<2x8xf32> to vector<2x8x1xf32>
    %275 = tpu.reciprocal %274 {approx = true} : vector<2x8x1xf32> -> vector<2x8x1xf32>
    %276 = vector.broadcast %275 : vector<2x8x1xf32> to vector<2x8x8xf32>
    %277 = arith.mulf %272, %276 : vector<2x8x8xf32>
    %278 = arith.truncf %277 : vector<2x8x8xf32> to vector<2x8x8xbf16>
    "tpu.trace_start"() <{level = 10 : i32, message = "bqk,bkd->bqd"}> : () -> ()
    %cst_112 = arith.constant dense<0.000000e+00> : vector<2x8x8xf32>
    %279 = tpu.matmul %278, %265, %cst_112 {dimension_numbers = #tpu.dot_dimension_numbers<[2], [1], [1], [2], [0, 0, 0, 1, 1, 2], [0], [0]>} : vector<2x8x8xbf16>, vector<2x8x8xbf16>, vector<2x8x8xf32> -> vector<2x8x8xf32>
    "tpu.trace_stop"() : () -> ()
    %280 = vector.shape_cast %279 : vector<2x8x8xf32> to vector<16x8xf32>
    %281 = arith.truncf %280 : vector<16x8xf32> to vector<16x8xbf16>
    %282 = vector.extract_strided_slice %261 {offsets = [0, 0], sizes = [8, 32], strides = [1, 1]} : vector<32x32xbf16> to vector<8x32xbf16>
    %cst_113 = arith.constant dense<0.000000e+00> : vector<16x32xf32>
    %283 = tpu.matmul %281, %282, %cst_113 {dimension_numbers = #tpu.dot_dimension_numbers<[1], [0], [0], [1], [0, 0, 1, 1], [], []>} : vector<16x8xbf16>, vector<8x32xbf16>, vector<16x32xf32> -> vector<16x32xf32>
    %284 = arith.addf %262, %283 : vector<16x32xf32>
    %285 = vector.extract_strided_slice %259 {offsets = [0, 0, 8], sizes = [2, 8, 8], strides = [1, 1, 1]} : vector<2x8x96xbf16> to vector<2x8x8xbf16>
    %286 = vector.extract_strided_slice %259 {offsets = [0, 0, 40], sizes = [2, 8, 8], strides = [1, 1, 1]} : vector<2x8x96xbf16> to vector<2x8x8xbf16>
    %287 = vector.extract_strided_slice %259 {offsets = [0, 0, 72], sizes = [2, 8, 8], strides = [1, 1, 1]} : vector<2x8x96xbf16> to vector<2x8x8xbf16>
    "tpu.trace_start"() <{level = 10 : i32, message = "bqd,bkd->bqk"}> : () -> ()
    %cst_114 = arith.constant dense<0.000000e+00> : vector<2x8x8xf32>
    %288 = tpu.matmul %285, %286, %cst_114 {dimension_numbers = #tpu.dot_dimension_numbers<[2], [2], [1], [1], [0, 0, 0, 1, 1, 1], [0], [0]>} : vector<2x8x8xbf16>, vector<2x8x8xbf16>, vector<2x8x8xf32> -> vector<2x8x8xf32>
    "tpu.trace_stop"() : () -> ()
    %289 = arith.addf %288, %61 : vector<2x8x8xf32>
    %cst_115 = arith.constant dense<0xFF800000> : vector<2x8xf32>
    %290 = vector.multi_reduction <maximumf>, %289, %cst_115 [2] : vector<2x8x8xf32> to vector<2x8xf32>
    %291 = vector.shape_cast %290 : vector<2x8xf32> to vector<2x8x1xf32>
    %292 = vector.broadcast %291 : vector<2x8x1xf32> to vector<2x8x8xf32>
    %293 = arith.subf %289, %292 : vector<2x8x8xf32>
    %294 = math.exp %293 : vector<2x8x8xf32>
    %cst_116 = arith.constant dense<0.000000e+00> : vector<2x8xf32>
    %295 = vector.multi_reduction <add>, %294, %cst_116 [2] : vector<2x8x8xf32> to vector<2x8xf32>
    %296 = vector.shape_cast %295 : vector<2x8xf32> to vector<2x8x1xf32>
    %297 = tpu.reciprocal %296 {approx = true} : vector<2x8x1xf32> -> vector<2x8x1xf32>
    %298 = vector.broadcast %297 : vector<2x8x1xf32> to vector<2x8x8xf32>
    %299 = arith.mulf %294, %298 : vector<2x8x8xf32>
    %300 = arith.truncf %299 : vector<2x8x8xf32> to vector<2x8x8xbf16>
    "tpu.trace_start"() <{level = 10 : i32, message = "bqk,bkd->bqd"}> : () -> ()
    %cst_117 = arith.constant dense<0.000000e+00> : vector<2x8x8xf32>
    %301 = tpu.matmul %300, %287, %cst_117 {dimension_numbers = #tpu.dot_dimension_numbers<[2], [1], [1], [2], [0, 0, 0, 1, 1, 2], [0], [0]>} : vector<2x8x8xbf16>, vector<2x8x8xbf16>, vector<2x8x8xf32> -> vector<2x8x8xf32>
    "tpu.trace_stop"() : () -> ()
    %302 = vector.shape_cast %301 : vector<2x8x8xf32> to vector<16x8xf32>
    %303 = arith.truncf %302 : vector<16x8xf32> to vector<16x8xbf16>
    %304 = vector.extract_strided_slice %261 {offsets = [8, 0], sizes = [8, 32], strides = [1, 1]} : vector<32x32xbf16> to vector<8x32xbf16>
    %cst_118 = arith.constant dense<0.000000e+00> : vector<16x32xf32>
    %305 = tpu.matmul %303, %304, %cst_118 {dimension_numbers = #tpu.dot_dimension_numbers<[1], [0], [0], [1], [0, 0, 1, 1], [], []>} : vector<16x8xbf16>, vector<8x32xbf16>, vector<16x32xf32> -> vector<16x32xf32>
    %306 = arith.addf %284, %305 : vector<16x32xf32>
    %307 = vector.extract_strided_slice %259 {offsets = [0, 0, 16], sizes = [2, 8, 8], strides = [1, 1, 1]} : vector<2x8x96xbf16> to vector<2x8x8xbf16>
    %308 = vector.extract_strided_slice %259 {offsets = [0, 0, 48], sizes = [2, 8, 8], strides = [1, 1, 1]} : vector<2x8x96xbf16> to vector<2x8x8xbf16>
    %309 = vector.extract_strided_slice %259 {offsets = [0, 0, 80], sizes = [2, 8, 8], strides = [1, 1, 1]} : vector<2x8x96xbf16> to vector<2x8x8xbf16>
    "tpu.trace_start"() <{level = 10 : i32, message = "bqd,bkd->bqk"}> : () -> ()
    %cst_119 = arith.constant dense<0.000000e+00> : vector<2x8x8xf32>
    %310 = tpu.matmul %307, %308, %cst_119 {dimension_numbers = #tpu.dot_dimension_numbers<[2], [2], [1], [1], [0, 0, 0, 1, 1, 1], [0], [0]>} : vector<2x8x8xbf16>, vector<2x8x8xbf16>, vector<2x8x8xf32> -> vector<2x8x8xf32>
    "tpu.trace_stop"() : () -> ()
    %311 = arith.addf %310, %61 : vector<2x8x8xf32>
    %cst_120 = arith.constant dense<0xFF800000> : vector<2x8xf32>
    %312 = vector.multi_reduction <maximumf>, %311, %cst_120 [2] : vector<2x8x8xf32> to vector<2x8xf32>
    %313 = vector.shape_cast %312 : vector<2x8xf32> to vector<2x8x1xf32>
    %314 = vector.broadcast %313 : vector<2x8x1xf32> to vector<2x8x8xf32>
    %315 = arith.subf %311, %314 : vector<2x8x8xf32>
    %316 = math.exp %315 : vector<2x8x8xf32>
    %cst_121 = arith.constant dense<0.000000e+00> : vector<2x8xf32>
    %317 = vector.multi_reduction <add>, %316, %cst_121 [2] : vector<2x8x8xf32> to vector<2x8xf32>
    %318 = vector.shape_cast %317 : vector<2x8xf32> to vector<2x8x1xf32>
    %319 = tpu.reciprocal %318 {approx = true} : vector<2x8x1xf32> -> vector<2x8x1xf32>
    %320 = vector.broadcast %319 : vector<2x8x1xf32> to vector<2x8x8xf32>
    %321 = arith.mulf %316, %320 : vector<2x8x8xf32>
    %322 = arith.truncf %321 : vector<2x8x8xf32> to vector<2x8x8xbf16>
    "tpu.trace_start"() <{level = 10 : i32, message = "bqk,bkd->bqd"}> : () -> ()
    %cst_122 = arith.constant dense<0.000000e+00> : vector<2x8x8xf32>
    %323 = tpu.matmul %322, %309, %cst_122 {dimension_numbers = #tpu.dot_dimension_numbers<[2], [1], [1], [2], [0, 0, 0, 1, 1, 2], [0], [0]>} : vector<2x8x8xbf16>, vector<2x8x8xbf16>, vector<2x8x8xf32> -> vector<2x8x8xf32>
    "tpu.trace_stop"() : () -> ()
    %324 = vector.shape_cast %323 : vector<2x8x8xf32> to vector<16x8xf32>
    %325 = arith.truncf %324 : vector<16x8xf32> to vector<16x8xbf16>
    %326 = vector.extract_strided_slice %261 {offsets = [16, 0], sizes = [8, 32], strides = [1, 1]} : vector<32x32xbf16> to vector<8x32xbf16>
    %cst_123 = arith.constant dense<0.000000e+00> : vector<16x32xf32>
    %327 = tpu.matmul %325, %326, %cst_123 {dimension_numbers = #tpu.dot_dimension_numbers<[1], [0], [0], [1], [0, 0, 1, 1], [], []>} : vector<16x8xbf16>, vector<8x32xbf16>, vector<16x32xf32> -> vector<16x32xf32>
    %328 = arith.addf %306, %327 : vector<16x32xf32>
    %329 = vector.extract_strided_slice %259 {offsets = [0, 0, 24], sizes = [2, 8, 8], strides = [1, 1, 1]} : vector<2x8x96xbf16> to vector<2x8x8xbf16>
    %330 = vector.extract_strided_slice %259 {offsets = [0, 0, 56], sizes = [2, 8, 8], strides = [1, 1, 1]} : vector<2x8x96xbf16> to vector<2x8x8xbf16>
    %331 = vector.extract_strided_slice %259 {offsets = [0, 0, 88], sizes = [2, 8, 8], strides = [1, 1, 1]} : vector<2x8x96xbf16> to vector<2x8x8xbf16>
    "tpu.trace_start"() <{level = 10 : i32, message = "bqd,bkd->bqk"}> : () -> ()
    %cst_124 = arith.constant dense<0.000000e+00> : vector<2x8x8xf32>
    %332 = tpu.matmul %329, %330, %cst_124 {dimension_numbers = #tpu.dot_dimension_numbers<[2], [2], [1], [1], [0, 0, 0, 1, 1, 1], [0], [0]>} : vector<2x8x8xbf16>, vector<2x8x8xbf16>, vector<2x8x8xf32> -> vector<2x8x8xf32>
    "tpu.trace_stop"() : () -> ()
    %333 = arith.addf %332, %61 : vector<2x8x8xf32>
    %cst_125 = arith.constant dense<0xFF800000> : vector<2x8xf32>
    %334 = vector.multi_reduction <maximumf>, %333, %cst_125 [2] : vector<2x8x8xf32> to vector<2x8xf32>
    %335 = vector.shape_cast %334 : vector<2x8xf32> to vector<2x8x1xf32>
    %336 = vector.broadcast %335 : vector<2x8x1xf32> to vector<2x8x8xf32>
    %337 = arith.subf %333, %336 : vector<2x8x8xf32>
    %338 = math.exp %337 : vector<2x8x8xf32>
    %cst_126 = arith.constant dense<0.000000e+00> : vector<2x8xf32>
    %339 = vector.multi_reduction <add>, %338, %cst_126 [2] : vector<2x8x8xf32> to vector<2x8xf32>
    %340 = vector.shape_cast %339 : vector<2x8xf32> to vector<2x8x1xf32>
    %341 = tpu.reciprocal %340 {approx = true} : vector<2x8x1xf32> -> vector<2x8x1xf32>
    %342 = vector.broadcast %341 : vector<2x8x1xf32> to vector<2x8x8xf32>
    %343 = arith.mulf %338, %342 : vector<2x8x8xf32>
    %344 = arith.truncf %343 : vector<2x8x8xf32> to vector<2x8x8xbf16>
    "tpu.trace_start"() <{level = 10 : i32, message = "bqk,bkd->bqd"}> : () -> ()
    %cst_127 = arith.constant dense<0.000000e+00> : vector<2x8x8xf32>
    %345 = tpu.matmul %344, %331, %cst_127 {dimension_numbers = #tpu.dot_dimension_numbers<[2], [1], [1], [2], [0, 0, 0, 1, 1, 2], [0], [0]>} : vector<2x8x8xbf16>, vector<2x8x8xbf16>, vector<2x8x8xf32> -> vector<2x8x8xf32>
    "tpu.trace_stop"() : () -> ()
    %346 = vector.shape_cast %345 : vector<2x8x8xf32> to vector<16x8xf32>
    %347 = arith.truncf %346 : vector<16x8xf32> to vector<16x8xbf16>
    %348 = vector.extract_strided_slice %261 {offsets = [24, 0], sizes = [8, 32], strides = [1, 1]} : vector<32x32xbf16> to vector<8x32xbf16>
    %cst_128 = arith.constant dense<0.000000e+00> : vector<16x32xf32>
    %349 = tpu.matmul %347, %348, %cst_128 {dimension_numbers = #tpu.dot_dimension_numbers<[1], [0], [0], [1], [0, 0, 1, 1], [], []>} : vector<16x8xbf16>, vector<8x32xbf16>, vector<16x32xf32> -> vector<16x32xf32>
    %350 = arith.addf %328, %349 : vector<16x32xf32>
    %c1_129 = arith.constant 1 : index
    %c0_130 = arith.constant 0 : index
    %c0_131 = arith.constant 0 : index
    %351 = vector.load %arg11[%c1_129, %c0_130, %c0_131] : memref<2x1x32xf32, #tpu.memory_space<vmem>>, vector<1x1x32xf32>
    %352 = vector.shape_cast %351 : vector<1x1x32xf32> to vector<1x32xf32>
    %353 = vector.broadcast %352 : vector<1x32xf32> to vector<16x32xf32>
    %354 = arith.addf %350, %353 : vector<16x32xf32>
    %355 = arith.addf %249, %354 : vector<16x32xf32>
    %c1_132 = arith.constant 1 : index
    %c0_133 = arith.constant 0 : index
    %c0_134 = arith.constant 0 : index
    %356 = vector.load %arg12[%c1_132, %c0_133, %c0_134] : memref<2x1x32xf32, #tpu.memory_space<vmem>>, vector<1x1x32xf32>
    %357 = vector.shape_cast %356 : vector<1x1x32xf32> to vector<1x32xf32>
    %c1_135 = arith.constant 1 : index
    %c0_136 = arith.constant 0 : index
    %c0_137 = arith.constant 0 : index
    %358 = vector.load %arg13[%c1_135, %c0_136, %c0_137] : memref<2x1x32xf32, #tpu.memory_space<vmem>>, vector<1x1x32xf32>
    %359 = vector.shape_cast %358 : vector<1x1x32xf32> to vector<1x32xf32>
    %cst_138 = arith.constant dense<0.000000e+00> : vector<16xf32>
    %360 = vector.multi_reduction <add>, %355, %cst_138 [1] : vector<16x32xf32> to vector<16xf32>
    %361 = vector.shape_cast %360 : vector<16xf32> to vector<16x1xf32>
    %cst_139 = arith.constant 3.200000e+01 : f32
    %362 = vector.broadcast %cst_139 : f32 to vector<16x1xf32>
    %363 = arith.divf %361, %362 : vector<16x1xf32>
    %364 = vector.broadcast %363 : vector<16x1xf32> to vector<16x32xf32>
    %365 = arith.subf %355, %364 : vector<16x32xf32>
    %366 = arith.mulf %365, %365 : vector<16x32xf32>
    %cst_140 = arith.constant dense<0.000000e+00> : vector<16xf32>
    %367 = vector.multi_reduction <add>, %366, %cst_140 [1] : vector<16x32xf32> to vector<16xf32>
    %368 = vector.shape_cast %367 : vector<16xf32> to vector<16x1xf32>
    %cst_141 = arith.constant 3.200000e+01 : f32
    %369 = vector.broadcast %cst_141 : f32 to vector<16x1xf32>
    %370 = arith.divf %368, %369 : vector<16x1xf32>
    %371 = vector.broadcast %363 : vector<16x1xf32> to vector<16x32xf32>
    %372 = arith.subf %355, %371 : vector<16x32xf32>
    %cst_142 = arith.constant 9.99999996E-13 : f32
    %373 = vector.broadcast %cst_142 : f32 to vector<16x1xf32>
    %374 = arith.addf %370, %373 : vector<16x1xf32>
    %375 = math.rsqrt %374 : vector<16x1xf32>
    %376 = vector.broadcast %375 : vector<16x1xf32> to vector<16x32xf32>
    %377 = arith.mulf %372, %376 : vector<16x32xf32>
    %378 = vector.broadcast %357 : vector<1x32xf32> to vector<16x32xf32>
    %379 = arith.mulf %377, %378 : vector<16x32xf32>
    %380 = vector.broadcast %359 : vector<1x32xf32> to vector<16x32xf32>
    %381 = arith.addf %379, %380 : vector<16x32xf32>
    %382 = arith.truncf %381 : vector<16x32xf32> to vector<16x32xbf16>
    %c1_143 = arith.constant 1 : index
    %c0_144 = arith.constant 0 : index
    %c0_145 = arith.constant 0 : index
    %383 = vector.load %arg14[%c1_143, %c0_144, %c0_145] : memref<2x32x128xbf16, #tpu.memory_space<vmem>>, vector<1x32x128xbf16>
    %384 = vector.shape_cast %383 : vector<1x32x128xbf16> to vector<32x128xbf16>
    %cst_146 = arith.constant dense<0.000000e+00> : vector<16x128xf32>
    %385 = tpu.matmul %382, %384, %cst_146 {dimension_numbers = #tpu.dot_dimension_numbers<[1], [0], [0], [1], [0, 0, 1, 1], [], []>} : vector<16x32xbf16>, vector<32x128xbf16>, vector<16x128xf32> -> vector<16x128xf32>
    %c1_147 = arith.constant 1 : index
    %c0_148 = arith.constant 0 : index
    %c0_149 = arith.constant 0 : index
    %386 = vector.load %arg15[%c1_147, %c0_148, %c0_149] : memref<2x1x128xf32, #tpu.memory_space<vmem>>, vector<1x1x128xf32>
    %387 = vector.shape_cast %386 : vector<1x1x128xf32> to vector<1x128xf32>
    %388 = vector.broadcast %387 : vector<1x128xf32> to vector<16x128xf32>
    %389 = arith.addf %385, %388 : vector<16x128xf32>
    %cst_150 = arith.constant 5.000000e-01 : f32
    %390 = vector.broadcast %cst_150 : f32 to vector<16x128xf32>
    %391 = arith.mulf %390, %389 : vector<16x128xf32>
    %cst_151 = arith.constant 4.471500e-02 : f32
    %392 = vector.broadcast %cst_151 : f32 to vector<16x128xf32>
    %393 = arith.mulf %392, %389 : vector<16x128xf32>
    %394 = arith.mulf %393, %389 : vector<16x128xf32>
    %395 = arith.mulf %394, %389 : vector<16x128xf32>
    %396 = arith.addf %389, %395 : vector<16x128xf32>
    %cst_152 = arith.constant 0.797884583 : f32
    %397 = vector.broadcast %cst_152 : f32 to vector<16x128xf32>
    %398 = arith.mulf %397, %396 : vector<16x128xf32>
    %399 = math.tanh %398 : vector<16x128xf32>
    %cst_153 = arith.constant 1.000000e+00 : f32
    %400 = vector.broadcast %cst_153 : f32 to vector<16x128xf32>
    %401 = arith.addf %400, %399 : vector<16x128xf32>
    %402 = arith.mulf %391, %401 : vector<16x128xf32>
    %403 = arith.truncf %402 : vector<16x128xf32> to vector<16x128xbf16>
    %c1_154 = arith.constant 1 : index
    %c0_155 = arith.constant 0 : index
    %c0_156 = arith.constant 0 : index
    %404 = vector.load %arg16[%c1_154, %c0_155, %c0_156] : memref<2x128x32xbf16, #tpu.memory_space<vmem>>, vector<1x128x32xbf16>
    %405 = vector.shape_cast %404 : vector<1x128x32xbf16> to vector<128x32xbf16>
    %cst_157 = arith.constant dense<0.000000e+00> : vector<16x32xf32>
    %406 = tpu.matmul %403, %405, %cst_157 {dimension_numbers = #tpu.dot_dimension_numbers<[1], [0], [0], [1], [0, 0, 1, 1], [], []>} : vector<16x128xbf16>, vector<128x32xbf16>, vector<16x32xf32> -> vector<16x32xf32>
    %c1_158 = arith.constant 1 : index
    %c0_159 = arith.constant 0 : index
    %c0_160 = arith.constant 0 : index
    %407 = vector.load %arg17[%c1_158, %c0_159, %c0_160] : memref<2x1x32xf32, #tpu.memory_space<vmem>>, vector<1x1x32xf32>
    %408 = vector.shape_cast %407 : vector<1x1x32xf32> to vector<1x32xf32>
    %409 = vector.broadcast %408 : vector<1x32xf32> to vector<16x32xf32>
    %410 = arith.addf %406, %409 : vector<16x32xf32>
    %411 = arith.addf %381, %410 : vector<16x32xf32>
    %c1_161 = arith.constant 1 : index
    %c0_162 = arith.constant 0 : index
    %c0_163 = arith.constant 0 : index
    %412 = vector.load %arg18[%c1_161, %c0_162, %c0_163] : memref<2x1x32xf32, #tpu.memory_space<vmem>>, vector<1x1x32xf32>
    %413 = vector.shape_cast %412 : vector<1x1x32xf32> to vector<1x32xf32>
    %c1_164 = arith.constant 1 : index
    %c0_165 = arith.constant 0 : index
    %c0_166 = arith.constant 0 : index
    %414 = vector.load %arg19[%c1_164, %c0_165, %c0_166] : memref<2x1x32xf32, #tpu.memory_space<vmem>>, vector<1x1x32xf32>
    %415 = vector.shape_cast %414 : vector<1x1x32xf32> to vector<1x32xf32>
    %cst_167 = arith.constant dense<0.000000e+00> : vector<16xf32>
    %416 = vector.multi_reduction <add>, %411, %cst_167 [1] : vector<16x32xf32> to vector<16xf32>
    %417 = vector.shape_cast %416 : vector<16xf32> to vector<16x1xf32>
    %cst_168 = arith.constant 3.200000e+01 : f32
    %418 = vector.broadcast %cst_168 : f32 to vector<16x1xf32>
    %419 = arith.divf %417, %418 : vector<16x1xf32>
    %420 = vector.broadcast %419 : vector<16x1xf32> to vector<16x32xf32>
    %421 = arith.subf %411, %420 : vector<16x32xf32>
    %422 = arith.mulf %421, %421 : vector<16x32xf32>
    %cst_169 = arith.constant dense<0.000000e+00> : vector<16xf32>
    %423 = vector.multi_reduction <add>, %422, %cst_169 [1] : vector<16x32xf32> to vector<16xf32>
    %424 = vector.shape_cast %423 : vector<16xf32> to vector<16x1xf32>
    %cst_170 = arith.constant 3.200000e+01 : f32
    %425 = vector.broadcast %cst_170 : f32 to vector<16x1xf32>
    %426 = arith.divf %424, %425 : vector<16x1xf32>
    %427 = vector.broadcast %419 : vector<16x1xf32> to vector<16x32xf32>
    %428 = arith.subf %411, %427 : vector<16x32xf32>
    %cst_171 = arith.constant 9.99999996E-13 : f32
    %429 = vector.broadcast %cst_171 : f32 to vector<16x1xf32>
    %430 = arith.addf %426, %429 : vector<16x1xf32>
    %431 = math.rsqrt %430 : vector<16x1xf32>
    %432 = vector.broadcast %431 : vector<16x1xf32> to vector<16x32xf32>
    %433 = arith.mulf %428, %432 : vector<16x32xf32>
    %434 = vector.broadcast %413 : vector<1x32xf32> to vector<16x32xf32>
    %435 = arith.mulf %433, %434 : vector<16x32xf32>
    %436 = vector.broadcast %415 : vector<1x32xf32> to vector<16x32xf32>
    %437 = arith.addf %435, %436 : vector<16x32xf32>
    %c0_172 = arith.constant 0 : index
    %c0_173 = arith.constant 0 : index
    %438 = vector.load %arg20[%c0_172, %c0_173] : memref<2x32xf32, #tpu.memory_space<vmem>>, vector<2x32xf32>
    "tpu.trace_start"() <{level = 10 : i32, message = "kh,nh->kn"}> : () -> ()
    %cst_174 = arith.constant dense<0.000000e+00> : vector<2x16xf32>
    %439 = tpu.matmul %438, %437, %cst_174 {dimension_numbers = #tpu.dot_dimension_numbers<[1], [1], [0], [0], [0, 0, 1, 0], [], []>} : vector<2x32xf32>, vector<16x32xf32>, vector<2x16xf32> -> vector<2x16xf32>
    "tpu.trace_stop"() : () -> ()
    %c0_175 = arith.constant 0 : index
    %c0_176 = arith.constant 0 : index
    %440 = vector.load %arg21[%c0_175, %c0_176] : memref<2x1xf32, #tpu.memory_space<vmem>>, vector<2x1xf32>
    %441 = vector.broadcast %440 : vector<2x1xf32> to vector<2x16xf32>
    %442 = arith.addf %439, %441 : vector<2x16xf32>
    %c0_177 = arith.constant 0 : index
    %c0_178 = arith.constant 0 : index
    %443 = vector.load %arg24[%c0_177, %c0_178] : memref<2x16xf32, #tpu.memory_space<vmem>>, vector<2x16xf32>
    tpu.vector_store %arg24[%c0_177, %c0_178], %442 {strides = array<i32>} : memref<2x16xf32, #tpu.memory_space<vmem>>, vector<2x16xf32>,
    %444 = tpu.iota {dimensions = array<i32: 1>} : vector<1x8xi32>
    %cst_179 = arith.constant 0.000000e+00 : f32
    %445 = vector.broadcast %cst_179 : f32 to vector<1x1xf32>
    %cst_180 = arith.constant 0.000000e+00 : f32
    %446 = vector.broadcast %cst_180 : f32 to vector<1x1xf32>
    %447 = vector.extract_strided_slice %442 {offsets = [0, 0], sizes = [1, 8], strides = [1, 1]} : vector<2x16xf32> to vector<1x8xf32>
    %c0_181 = arith.constant 0 : index
    %448 = memref.load %arg22[%c0_181] : memref<2xi32, #tpu.memory_space<smem>>
    %c0_i32_182 = arith.constant 0 : i32
    %c8_i32 = arith.constant 8 : i32
    %449 = arith.maxsi %c0_i32_182, %448 : i32
    %450 = arith.minsi %c8_i32, %449 : i32
    %c8_i32_183 = arith.constant 8 : i32
    %451 = arith.cmpi slt, %450, %c8_i32_183 : i32
    %cst_184 = arith.constant 1.000000e+00 : f32
    %cst_185 = arith.constant 0.000000e+00 : f32
    %452 = arith.select %451, %cst_184, %cst_185 : f32
    %c7_i32 = arith.constant 7 : i32
    %453 = arith.minsi %450, %c7_i32 : i32
    %cst_186 = arith.constant dense<0xFF800000> : vector<1xf32>
    %454 = vector.multi_reduction <maximumf>, %447, %cst_186 [1] : vector<1x8xf32> to vector<1xf32>
    %455 = vector.shape_cast %454 : vector<1xf32> to vector<1x1xf32>
    %456 = vector.broadcast %455 : vector<1x1xf32> to vector<1x8xf32>
    %457 = arith.subf %447, %456 : vector<1x8xf32>
    %458 = math.exp %457 : vector<1x8xf32>
    %cst_187 = arith.constant dense<0.000000e+00> : vector<1xf32>
    %459 = vector.multi_reduction <add>, %458, %cst_187 [1] : vector<1x8xf32> to vector<1xf32>
    %460 = vector.shape_cast %459 : vector<1xf32> to vector<1x1xf32>
    %461 = math.log %460 : vector<1x1xf32>
    %462 = arith.addf %455, %461 : vector<1x1xf32>
    %463 = vector.broadcast %453 : i32 to vector<1x8xi32>
    %464 = arith.cmpi eq, %444, %463 : vector<1x8xi32>
    %cst_188 = arith.constant 0.000000e+00 : f32
    %465 = vector.broadcast %cst_188 : f32 to vector<1x8xf32>
    %466 = arith.select %464, %447, %465 : vector<1x8xi1>, vector<1x8xf32>
    %cst_189 = arith.constant dense<0.000000e+00> : vector<1xf32>
    %467 = vector.multi_reduction <add>, %466, %cst_189 [1] : vector<1x8xf32> to vector<1xf32>
    %468 = vector.shape_cast %467 : vector<1xf32> to vector<1x1xf32>
    %469 = arith.subf %462, %468 : vector<1x1xf32>
    %470 = vector.broadcast %452 : f32 to vector<1x1xf32>
    %471 = arith.mulf %470, %469 : vector<1x1xf32>
    %472 = arith.addf %445, %471 : vector<1x1xf32>
    %473 = vector.broadcast %452 : f32 to vector<1x1xf32>
    %474 = arith.addf %446, %473 : vector<1x1xf32>
    %475 = vector.extract_strided_slice %442 {offsets = [0, 8], sizes = [1, 8], strides = [1, 1]} : vector<2x16xf32> to vector<1x8xf32>
    %c1_190 = arith.constant 1 : index
    %476 = memref.load %arg22[%c1_190] : memref<2xi32, #tpu.memory_space<smem>>
    %c0_i32_191 = arith.constant 0 : i32
    %c8_i32_192 = arith.constant 8 : i32
    %477 = arith.maxsi %c0_i32_191, %476 : i32
    %478 = arith.minsi %c8_i32_192, %477 : i32
    %c8_i32_193 = arith.constant 8 : i32
    %479 = arith.cmpi slt, %478, %c8_i32_193 : i32
    %cst_194 = arith.constant 1.000000e+00 : f32
    %cst_195 = arith.constant 0.000000e+00 : f32
    %480 = arith.select %479, %cst_194, %cst_195 : f32
    %c7_i32_196 = arith.constant 7 : i32
    %481 = arith.minsi %478, %c7_i32_196 : i32
    %cst_197 = arith.constant dense<0xFF800000> : vector<1xf32>
    %482 = vector.multi_reduction <maximumf>, %475, %cst_197 [1] : vector<1x8xf32> to vector<1xf32>
    %483 = vector.shape_cast %482 : vector<1xf32> to vector<1x1xf32>
    %484 = vector.broadcast %483 : vector<1x1xf32> to vector<1x8xf32>
    %485 = arith.subf %475, %484 : vector<1x8xf32>
    %486 = math.exp %485 : vector<1x8xf32>
    %cst_198 = arith.constant dense<0.000000e+00> : vector<1xf32>
    %487 = vector.multi_reduction <add>, %486, %cst_198 [1] : vector<1x8xf32> to vector<1xf32>
    %488 = vector.shape_cast %487 : vector<1xf32> to vector<1x1xf32>
    %489 = math.log %488 : vector<1x1xf32>
    %490 = arith.addf %483, %489 : vector<1x1xf32>
    %491 = vector.broadcast %481 : i32 to vector<1x8xi32>
    %492 = arith.cmpi eq, %444, %491 : vector<1x8xi32>
    %cst_199 = arith.constant 0.000000e+00 : f32
    %493 = vector.broadcast %cst_199 : f32 to vector<1x8xf32>
    %494 = arith.select %492, %475, %493 : vector<1x8xi1>, vector<1x8xf32>
    %cst_200 = arith.constant dense<0.000000e+00> : vector<1xf32>
    %495 = vector.multi_reduction <add>, %494, %cst_200 [1] : vector<1x8xf32> to vector<1xf32>
    %496 = vector.shape_cast %495 : vector<1xf32> to vector<1x1xf32>
    %497 = arith.subf %490, %496 : vector<1x1xf32>
    %498 = vector.broadcast %480 : f32 to vector<1x1xf32>
    %499 = arith.mulf %498, %497 : vector<1x1xf32>
    %500 = arith.addf %472, %499 : vector<1x1xf32>
    %501 = vector.broadcast %480 : f32 to vector<1x1xf32>
    %502 = arith.addf %474, %501 : vector<1x1xf32>
    %cst_201 = arith.constant 1.000000e+00 : f32
    %503 = vector.broadcast %cst_201 : f32 to vector<1x1xf32>
    %504 = arith.maximumf %502, %503 : vector<1x1xf32>
    %505 = arith.divf %500, %504 : vector<1x1xf32>
    %cst_202 = arith.constant 0.000000e+00 : f32
    %506 = vector.broadcast %cst_202 : f32 to vector<1x1xf32>
    %cst_203 = arith.constant 0.000000e+00 : f32
    %507 = vector.broadcast %cst_203 : f32 to vector<1x1xf32>
    %508 = vector.extract_strided_slice %442 {offsets = [1, 0], sizes = [1, 8], strides = [1, 1]} : vector<2x16xf32> to vector<1x8xf32>
    %c0_204 = arith.constant 0 : index
    %509 = memref.load %arg23[%c0_204] : memref<2xi32, #tpu.memory_space<smem>>
    %c0_i32_205 = arith.constant 0 : i32
    %c8_i32_206 = arith.constant 8 : i32
    %510 = arith.maxsi %c0_i32_205, %509 : i32
    %511 = arith.minsi %c8_i32_206, %510 : i32
    %c8_i32_207 = arith.constant 8 : i32
    %512 = arith.cmpi slt, %511, %c8_i32_207 : i32
    %cst_208 = arith.constant 1.000000e+00 : f32
    %cst_209 = arith.constant 0.000000e+00 : f32
    %513 = arith.select %512, %cst_208, %cst_209 : f32
    %c7_i32_210 = arith.constant 7 : i32
    %514 = arith.minsi %511, %c7_i32_210 : i32
    %cst_211 = arith.constant dense<0xFF800000> : vector<1xf32>
    %515 = vector.multi_reduction <maximumf>, %508, %cst_211 [1] : vector<1x8xf32> to vector<1xf32>
    %516 = vector.shape_cast %515 : vector<1xf32> to vector<1x1xf32>
    %517 = vector.broadcast %516 : vector<1x1xf32> to vector<1x8xf32>
    %518 = arith.subf %508, %517 : vector<1x8xf32>
    %519 = math.exp %518 : vector<1x8xf32>
    %cst_212 = arith.constant dense<0.000000e+00> : vector<1xf32>
    %520 = vector.multi_reduction <add>, %519, %cst_212 [1] : vector<1x8xf32> to vector<1xf32>
    %521 = vector.shape_cast %520 : vector<1xf32> to vector<1x1xf32>
    %522 = math.log %521 : vector<1x1xf32>
    %523 = arith.addf %516, %522 : vector<1x1xf32>
    %524 = vector.broadcast %514 : i32 to vector<1x8xi32>
    %525 = arith.cmpi eq, %444, %524 : vector<1x8xi32>
    %cst_213 = arith.constant 0.000000e+00 : f32
    %526 = vector.broadcast %cst_213 : f32 to vector<1x8xf32>
    %527 = arith.select %525, %508, %526 : vector<1x8xi1>, vector<1x8xf32>
    %cst_214 = arith.constant dense<0.000000e+00> : vector<1xf32>
    %528 = vector.multi_reduction <add>, %527, %cst_214 [1] : vector<1x8xf32> to vector<1xf32>
    %529 = vector.shape_cast %528 : vector<1xf32> to vector<1x1xf32>
    %530 = arith.subf %523, %529 : vector<1x1xf32>
    %531 = vector.broadcast %513 : f32 to vector<1x1xf32>
    %532 = arith.mulf %531, %530 : vector<1x1xf32>
    %533 = arith.addf %506, %532 : vector<1x1xf32>
    %534 = vector.broadcast %513 : f32 to vector<1x1xf32>
    %535 = arith.addf %507, %534 : vector<1x1xf32>
    %536 = vector.extract_strided_slice %442 {offsets = [1, 8], sizes = [1, 8], strides = [1, 1]} : vector<2x16xf32> to vector<1x8xf32>
    %c1_215 = arith.constant 1 : index
    %537 = memref.load %arg23[%c1_215] : memref<2xi32, #tpu.memory_space<smem>>
    %c0_i32_216 = arith.constant 0 : i32
    %c8_i32_217 = arith.constant 8 : i32
    %538 = arith.maxsi %c0_i32_216, %537 : i32
    %539 = arith.minsi %c8_i32_217, %538 : i32
    %c8_i32_218 = arith.constant 8 : i32
    %540 = arith.cmpi slt, %539, %c8_i32_218 : i32
    %cst_219 = arith.constant 1.000000e+00 : f32
    %cst_220 = arith.constant 0.000000e+00 : f32
    %541 = arith.select %540, %cst_219, %cst_220 : f32
    %c7_i32_221 = arith.constant 7 : i32
    %542 = arith.minsi %539, %c7_i32_221 : i32
    %cst_222 = arith.constant dense<0xFF800000> : vector<1xf32>
    %543 = vector.multi_reduction <maximumf>, %536, %cst_222 [1] : vector<1x8xf32> to vector<1xf32>
    %544 = vector.shape_cast %543 : vector<1xf32> to vector<1x1xf32>
    %545 = vector.broadcast %544 : vector<1x1xf32> to vector<1x8xf32>
    %546 = arith.subf %536, %545 : vector<1x8xf32>
    %547 = math.exp %546 : vector<1x8xf32>
    %cst_223 = arith.constant dense<0.000000e+00> : vector<1xf32>
    %548 = vector.multi_reduction <add>, %547, %cst_223 [1] : vector<1x8xf32> to vector<1xf32>
    %549 = vector.shape_cast %548 : vector<1xf32> to vector<1x1xf32>
    %550 = math.log %549 : vector<1x1xf32>
    %551 = arith.addf %544, %550 : vector<1x1xf32>
    %552 = vector.broadcast %542 : i32 to vector<1x8xi32>
    %553 = arith.cmpi eq, %444, %552 : vector<1x8xi32>
    %cst_224 = arith.constant 0.000000e+00 : f32
    %554 = vector.broadcast %cst_224 : f32 to vector<1x8xf32>
    %555 = arith.select %553, %536, %554 : vector<1x8xi1>, vector<1x8xf32>
    %cst_225 = arith.constant dense<0.000000e+00> : vector<1xf32>
    %556 = vector.multi_reduction <add>, %555, %cst_225 [1] : vector<1x8xf32> to vector<1xf32>
    %557 = vector.shape_cast %556 : vector<1xf32> to vector<1x1xf32>
    %558 = arith.subf %551, %557 : vector<1x1xf32>
    %559 = vector.broadcast %541 : f32 to vector<1x1xf32>
    %560 = arith.mulf %559, %558 : vector<1x1xf32>
    %561 = arith.addf %533, %560 : vector<1x1xf32>
    %562 = vector.broadcast %541 : f32 to vector<1x1xf32>
    %563 = arith.addf %535, %562 : vector<1x1xf32>
    %cst_226 = arith.constant 1.000000e+00 : f32
    %564 = vector.broadcast %cst_226 : f32 to vector<1x1xf32>
    %565 = arith.maximumf %563, %564 : vector<1x1xf32>
    %566 = arith.divf %561, %565 : vector<1x1xf32>
    %567 = arith.addf %505, %566 : vector<1x1xf32>
    %cst_227 = arith.constant 5.000000e-01 : f32
    %568 = vector.broadcast %cst_227 : f32 to vector<1x1xf32>
    %569 = arith.mulf %568, %567 : vector<1x1xf32>
    %c0_228 = arith.constant 0 : index
    %c0_229 = arith.constant 0 : index
    %570 = vector.load %arg25[%c0_228, %c0_229] : memref<1x1xf32, #tpu.memory_space<vmem>>, vector<1x1xf32>
    tpu.vector_store %arg25[%c0_228, %c0_229], %569 {strides = array<i32>} : memref<1x1xf32, #tpu.memory_space<vmem>>, vector<1x1xf32>,
    return
  }
}

</mosaic_0001>

<llo_original>
// kernel: squeeze.4
$region0: #{squeeze.4}
  %s0 = inlined_call_operand.vmem [shape: f32[16], index: 0, kind: input, shape index: {}]
  %s1 = inlined_call_operand.hbm [shape: f32[2,8], index: 1, kind: output, shape index: {}]
  $region1: #{squeeze.4} parent=0
    #allocation0 [shape = 'u8[1024]{0}', space=vmem, size = 0x400, scoped, tag = 'operand span for operand 1']
    #allocation1 [shape = 's32[1]{0}', space=sflag, size = 0x4, scoped, tag = 'scoped memory for squeeze.4']
    #allocation2 [shape = 'u8[4096]{0}', space=vmem, size = 0x1000, scoped, tag = 'scoped mem for output reshape']
    #allocation3 [shape = 'u8[4096]{0}', space=vmem, size = 0x1000, scoped, tag = 'scoped mem for input reshape']
    %2 = vsyncpa [#allocation1], 0
    %s4 = sshllo.u32 0, 1
    %v5 = vld [vmem:[%s0] sm:%s4]
    %6 = vst [vmem:[#allocation3] sm:%s4] %v5
    %v7 = vld [vmem:[#allocation3] sm:$0x1]
    %vm8 = vcmask 64512
    %9 = vst.msk [vmem:[#allocation2] sm:$0x1] %vm8, %v7
    %v10 = vld [vmem:[#allocation3] sm:$0x1]
    %11 = vrot.lane.b32.xlu0 %v10, 120
    %v12 = vpop.permute.xlu0 %11
    %vm13 = vcmask 64512
    %s14 = scalar_lea.vmem [#allocation2], 1
    %15 = vst.msk [vmem:[%s14] sm:$0x1] %vm13, %v12
    %s17 = sshllo.u32 0, 2
    %v19 = vld [vmem:[#allocation2] sm:%s17]
    %s20 = sshllo.u32 0, 2
    %21 = vst [vmem:[#allocation0] sm:%s20] %v19
    %s23 = ssub.s32 32, 32
    %24 = vsyncadd [#allocation1], %s23
    %s26 = sshll.u32 [#allocation0], 4
    %s27 = int_to_ptr.vmem [resolvable:$true] %s26
    %29 = dma.vmem_to_hbm [thread:$0]  %s27, 32, %s1, [#allocation1]
    %30 = dma.done [#allocation1], 32
    %31 = vsyncpa [#allocation1], 1

// kernel: bert_qa_fused_forward.1
$region0: #{bert_qa_fused_forward.1}
  #allocation0 [shape = 'u32[]', space=smem, size = 0x4, offset = 0x4, fixed_abs, tag = 'smem constant byte address 0x4 - core index']
  #allocation1 [shape = 'u32[144,128]{1,0:T(1,128)}', space=vmem, size = 0x12000, scoped, tag = 'internal scratch']
  %s0 = inlined_call_operand.vmem [shape: s32[16,1], index: 0, kind: input, shape index: {}]
  %s1 = inlined_call_operand.vmem [shape: s32[16,1], index: 1, kind: input, shape index: {}]
  %s2 = inlined_call_operand.vmem [shape: s32[2,8], index: 2, kind: input, shape index: {}]
  %s3 = inlined_call_operand.vmem [shape: f32[100,32], index: 3, kind: input, shape index: {}]
  %s4 = inlined_call_operand.vmem [shape: f32[8,32], index: 4, kind: input, shape index: {}]
  %s5 = inlined_call_operand.vmem [shape: f32[2,32], index: 5, kind: input, shape index: {}]
  %s6 = inlined_call_operand.vmem [shape: f32[1,32], index: 6, kind: input, shape index: {}]
  %s7 = inlined_call_operand.vmem [shape: f32[1,32], index: 7, kind: input, shape index: {}]
  %s8 = inlined_call_operand.vmem [shape: bf16[2,32,96], index: 8, kind: input, shape index: {}]
  %s9 = inlined_call_operand.vmem [shape: f32[2,1,96], index: 9, kind: input, shape index: {}]
  %s10 = inlined_call_operand.vmem [shape: bf16[2,32,32], index: 10, kind: input, shape index: {}]
  %s11 = inlined_call_operand.vmem [shape: f32[2,1,32], index: 11, kind: input, shape index: {}]
  %s12 = inlined_call_operand.vmem [shape: f32[2,1,32], index: 12, kind: input, shape index: {}]
  %s13 = inlined_call_operand.vmem [shape: f32[2,1,32], index: 13, kind: input, shape index: {}]
  %s14 = inlined_call_operand.vmem [shape: bf16[2,32,128], index: 14, kind: input, shape index: {}]
  %s15 = inlined_call_operand.vmem [shape: f32[2,1,128], index: 15, kind: input, shape index: {}]
  %s16 = inlined_call_operand.vmem [shape: bf16[2,128,32], index: 16, kind: input, shape index: {}]
  %s17 = inlined_call_operand.vmem [shape: f32[2,1,32], index: 17, kind: input, shape index: {}]
  %s18 = inlined_call_operand.vmem [shape: f32[2,1,32], index: 18, kind: input, shape index: {}]
  %s19 = inlined_call_operand.vmem [shape: f32[2,1,32], index: 19, kind: input, shape index: {}]
  %s20 = inlined_call_operand.vmem [shape: f32[2,32], index: 20, kind: input, shape index: {}]
  %s21 = inlined_call_operand.vmem [shape: f32[2,1], index: 21, kind: input, shape index: {}]
  %s22 = inlined_call_operand.vmem [shape: s32[2], index: 22, kind: input, shape index: {}]
  %s23 = inlined_call_operand.vmem [shape: s32[2], index: 23, kind: input, shape index: {}]
  %s24 = inlined_call_operand.vmem [shape: f32[2,16], index: 24, kind: output, shape index: {0}]
  %s25 = inlined_call_operand.hbm [shape: f32[1,1], index: 25, kind: output, shape index: {1}]
  %26 = xla_tuple %s24, %s25
  %s27 = sld [smem:[#allocation0]]
  $region122: #{bert_qa_fused_forward.1} parent=0
    _
  %s29 = ssub.s32 1, %s27
  %s30 = scalar_select 0, %s29, %s27
  $region1: #{bert_qa_fused_forward.1} parent=0
    #allocation2 [shape = 'u8[512]{0}', space=smem, size = 0x200, scoped, tag = 'input window, operand 22, single buffered']
    #allocation3 [shape = 's32[1]{0}', space=sflag, size = 0x4, scoped, tag = 'scoped memory for bert_qa_fused_forward.1']
    #allocation4 [shape = 's32[1]{0}', space=sflag, size = 0x4, scoped, tag = 'scoped memory for bert_qa_fused_forward.1']
    #allocation5 [shape = 'u8[512]{0}', space=smem, size = 0x200, scoped, tag = 'input window, operand 23, single buffered']
    #allocation6 [shape = 's32[1]{0}', space=sflag, size = 0x4, scoped, tag = 'scoped memory for bert_qa_fused_forward.1']
    #allocation7 [shape = 'u8[512]{0}', space=vmem, size = 0x400, scoped, tag = 'output window, operand 1, single buffered']
    %31 = vsyncpa [#allocation4], 0
    %32 = vsyncpa [#allocation6], 0
    %33 = vsyncpa [#allocation3], 0
    // Predicated region
    $region2: #{bert_qa_fused_forward.1} parent=1 // pred_check
      _
    $region3: #{bert_qa_fused_forward.1} parent=1 // pred_check_branch
      %35 = sbr.rel (0) target = $region5
    $region4: #{bert_qa_fused_forward.1} parent=1 // pred_region
      _
    $region5: #{bert_qa_fused_forward.1} parent=1 // pred_fallthru
      _
    // Predicated region
    $region6: #{bert_qa_fused_forward.1} parent=1 // pred_check
      _
    $region7: #{bert_qa_fused_forward.1} parent=1 // pred_check_branch
      %37 = sbr.rel (0) target = $region9
    $region8: #{bert_qa_fused_forward.1} parent=1 // pred_region
      _
    $region9: #{bert_qa_fused_forward.1} parent=1 // pred_fallthru
      _
    // Predicated region
    $region10: #{bert_qa_fused_forward.1} parent=1 // pred_check
      _
    $region11: #{bert_qa_fused_forward.1} parent=1 // pred_check_branch
      %39 = sbr.rel (0) target = $region13
    $region12: #{bert_qa_fused_forward.1} parent=1 // pred_region
      _
    $region13: #{bert_qa_fused_forward.1} parent=1 // pred_fallthru
      _
    // Predicated region
    $region14: #{bert_qa_fused_forward.1} parent=1 // pred_check
      _
    $region15: #{bert_qa_fused_forward.1} parent=1 // pred_check_branch
      %41 = sbr.rel (0) target = $region17
    $region16: #{bert_qa_fused_forward.1} parent=1 // pred_region
      _
    $region17: #{bert_qa_fused_forward.1} parent=1 // pred_fallthru
      _
    // Predicated region
    $region18: #{bert_qa_fused_forward.1} parent=1 // pred_check
      _
    $region19: #{bert_qa_fused_forward.1} parent=1 // pred_check_branch
      %43 = sbr.rel (0) target = $region21
    $region20: #{bert_qa_fused_forward.1} parent=1 // pred_region
      _
    $region21: #{bert_qa_fused_forward.1} parent=1 // pred_fallthru
      _
    // Predicated region
    $region22: #{bert_qa_fused_forward.1} parent=1 // pred_check
      _
    $region23: #{bert_qa_fused_forward.1} parent=1 // pred_check_branch
      %45 = sbr.rel (0) target = $region25
    $region24: #{bert_qa_fused_forward.1} parent=1 // pred_region
      _
    $region25: #{bert_qa_fused_forward.1} parent=1 // pred_fallthru
      _
    // Predicated region
    $region26: #{bert_qa_fused_forward.1} parent=1 // pred_check
      _
    $region27: #{bert_qa_fused_forward.1} parent=1 // pred_check_branch
      %47 = sbr.rel (0) target = $region29
    $region28: #{bert_qa_fused_forward.1} parent=1 // pred_region
      _
    $region29: #{bert_qa_fused_forward.1} parent=1 // pred_fallthru
      _
    // Predicated region
    $region30: #{bert_qa_fused_forward.1} parent=1 // pred_check
      _
    $region31: #{bert_qa_fused_forward.1} parent=1 // pred_check_branch
      %49 = sbr.rel (0) target = $region33
    $region32: #{bert_qa_fused_forward.1} parent=1 // pred_region
      _
    $region33: #{bert_qa_fused_forward.1} parent=1 // pred_fallthru
      _
    // Predicated region
    $region34: #{bert_qa_fused_forward.1} parent=1 // pred_check
      _
    $region35: #{bert_qa_fused_forward.1} parent=1 // pred_check_branch
      %51 = sbr.rel (0) target = $region37
    $region36: #{bert_qa_fused_forward.1} parent=1 // pred_region
      _
    $region37: #{bert_qa_fused_forward.1} parent=1 // pred_fallthru
      _
    // Predicated region
    $region38: #{bert_qa_fused_forward.1} parent=1 // pred_check
      _
    $region39: #{bert_qa_fused_forward.1} parent=1 // pred_check_branch
      %53 = sbr.rel (0) target = $region41
    $region40: #{bert_qa_fused_forward.1} parent=1 // pred_region
      _
    $region41: #{bert_qa_fused_forward.1} parent=1 // pred_fallthru
      _
    // Predicated region
    $region42: #{bert_qa_fused_forward.1} parent=1 // pred_check
      _
    $region43: #{bert_qa_fused_forward.1} parent=1 // pred_check_branch
      %55 = sbr.rel (0) target = $region45
    $region44: #{bert_qa_fused_forward.1} parent=1 // pred_region
      _
    $region45: #{bert_qa_fused_forward.1} parent=1 // pred_fallthru
      _
    // Predicated region
    $region46: #{bert_qa_fused_forward.1} parent=1 // pred_check
      _
    $region47: #{bert_qa_fused_forward.1} parent=1 // pred_check_branch
      %57 = sbr.rel (0) target = $region49
    $region48: #{bert_qa_fused_forward.1} parent=1 // pred_region
      _
    $region49: #{bert_qa_fused_forward.1} parent=1 // pred_fallthru
      _
    // Predicated region
    $region50: #{bert_qa_fused_forward.1} parent=1 // pred_check
      _
    $region51: #{bert_qa_fused_forward.1} parent=1 // pred_check_branch
      %59 = sbr.rel (0) target = $region53
    $region52: #{bert_qa_fused_forward.1} parent=1 // pred_region
      _
    $region53: #{bert_qa_fused_forward.1} parent=1 // pred_fallthru
      _
    // Predicated region
    $region54: #{bert_qa_fused_forward.1} parent=1 // pred_check
      _
    $region55: #{bert_qa_fused_forward.1} parent=1 // pred_check_branch
      %61 = sbr.rel (0) target = $region57
    $region56: #{bert_qa_fused_forward.1} parent=1 // pred_region
      _
    $region57: #{bert_qa_fused_forward.1} parent=1 // pred_fallthru
      _
    // Predicated region
    $region58: #{bert_qa_fused_forward.1} parent=1 // pred_check
      _
    $region59: #{bert_qa_fused_forward.1} parent=1 // pred_check_branch
      %63 = sbr.rel (0) target = $region61
    $region60: #{bert_qa_fused_forward.1} parent=1 // pred_region
      _
    $region61: #{bert_qa_fused_forward.1} parent=1 // pred_fallthru
      _
    // Predicated region
    $region62: #{bert_qa_fused_forward.1} parent=1 // pred_check
      _
    $region63: #{bert_qa_fused_forward.1} parent=1 // pred_check_branch
      %65 = sbr.rel (0) target = $region65
    $region64: #{bert_qa_fused_forward.1} parent=1 // pred_region
      _
    $region65: #{bert_qa_fused_forward.1} parent=1 // pred_fallthru
      _
    // Predicated region
    $region66: #{bert_qa_fused_forward.1} parent=1 // pred_check
      _
    $region67: #{bert_qa_fused_forward.1} parent=1 // pred_check_branch
      %67 = sbr.rel (0) target = $region69
    $region68: #{bert_qa_fused_forward.1} parent=1 // pred_region
      _
    $region69: #{bert_qa_fused_forward.1} parent=1 // pred_fallthru
      _
    // Predicated region
    $region70: #{bert_qa_fused_forward.1} parent=1 // pred_check
      _
    $region71: #{bert_qa_fused_forward.1} parent=1 // pred_check_branch
      %69 = sbr.rel (0) target = $region73
    $region72: #{bert_qa_fused_forward.1} parent=1 // pred_region
      _
    $region73: #{bert_qa_fused_forward.1} parent=1 // pred_fallthru
      _
    // Predicated region
    $region74: #{bert_qa_fused_forward.1} parent=1 // pred_check
      _
    $region75: #{bert_qa_fused_forward.1} parent=1 // pred_check_branch
      %71 = sbr.rel (0) target = $region77
    $region76: #{bert_qa_fused_forward.1} parent=1 // pred_region
      _
    $region77: #{bert_qa_fused_forward.1} parent=1 // pred_fallthru
      _
    // Predicated region
    $region78: #{bert_qa_fused_forward.1} parent=1 // pred_check
      _
    $region79: #{bert_qa_fused_forward.1} parent=1 // pred_check_branch
      %73 = sbr.rel (0) target = $region81
    $region80: #{bert_qa_fused_forward.1} parent=1 // pred_region
      _
    $region81: #{bert_qa_fused_forward.1} parent=1 // pred_fallthru
      _
    // Predicated region
    $region82: #{bert_qa_fused_forward.1} parent=1 // pred_check
      _
    $region83: #{bert_qa_fused_forward.1} parent=1 // pred_check_branch
      %75 = sbr.rel (0) target = $region85
    $region84: #{bert_qa_fused_forward.1} parent=1 // pred_region
      _
    $region85: #{bert_qa_fused_forward.1} parent=1 // pred_fallthru
      _
    // Predicated region
    $region86: #{bert_qa_fused_forward.1} parent=1 // pred_check
      _
    $region87: #{bert_qa_fused_forward.1} parent=1 // pred_check_branch
      %77 = sbr.rel (0) target = $region89
    $region88: #{bert_qa_fused_forward.1} parent=1 // pred_region
      _
    $region89: #{bert_qa_fused_forward.1} parent=1 // pred_fallthru
      _
    // Predicated region
    $region90: #{bert_qa_fused_forward.1} parent=1 // pred_check
      _
    $region91: #{bert_qa_fused_forward.1} parent=1 // pred_check_branch
      %79 = sbr.rel (0) target = $region93
    $region92: #{bert_qa_fused_forward.1} parent=1 // pred_region
      %s81 = ssub.s32 16, 16
      %82 = vsyncadd [#allocation4], %s81
      %s84 = sshll.u32 %s22, 4
      %s85 = int_to_ptr.vmem [resolvable:$true] %s84
      %87 = dma.vmem_to_smem %s85, 16, [#allocation2], [#allocation4]
    $region93: #{bert_qa_fused_forward.1} parent=1 // pred_fallthru
      _
    // Predicated region
    $region94: #{bert_qa_fused_forward.1} parent=1 // pred_check
      _
    $region95: #{bert_qa_fused_forward.1} parent=1 // pred_check_branch
      %89 = sbr.rel (0) target = $region97
    $region96: #{bert_qa_fused_forward.1} parent=1 // pred_region
      %s91 = ssub.s32 16, 16
      %92 = vsyncadd [#allocation6], %s91
      %s94 = sshll.u32 %s23, 4
      %s95 = int_to_ptr.vmem [resolvable:$true] %s94
      %97 = dma.vmem_to_smem %s95, 16, [#allocation5], [#allocation6]
    $region97: #{bert_qa_fused_forward.1} parent=1 // pred_fallthru
      _
    // Predicated region
    $region98: #{bert_qa_fused_forward.1} parent=1 // pred_check
      _
    $region99: #{bert_qa_fused_forward.1} parent=1 // pred_check_branch
      %99 = sbr.rel (0) target = $region101
    $region100: #{bert_qa_fused_forward.1} parent=1 // pred_region
      %100 = dma.done [#allocation4], 16
    $region101: #{bert_qa_fused_forward.1} parent=1 // pred_fallthru
      _
    // Predicated region
    $region102: #{bert_qa_fused_forward.1} parent=1 // pred_check
      _
    $region103: #{bert_qa_fused_forward.1} parent=1 // pred_check_branch
      %102 = sbr.rel (0) target = $region105
    $region104: #{bert_qa_fused_forward.1} parent=1 // pred_region
      %103 = dma.done [#allocation6], 16
    $region105: #{bert_qa_fused_forward.1} parent=1 // pred_fallthru
      _
    %104 = sfence
    %v106 = vld [vmem:[%s0] sm:$0xff]
    %v107 = vld [vmem:[%s0 + $0x8] sm:$0xff]
    %v108 = vlaneseq
    %v109 = vand.u32 %v108, 127
    %110 = vset.pattern.permute.xlu0 0
    %111 = vperm.xlu0 %110, %v106
    %v112 = vpop.permute.xlu0 %111
    %113 = vset.pattern.permute.xlu0 0
    %114 = vperm.xlu0 %113, %v107
    %v115 = vpop.permute.xlu0 %114
    %vm116 = vcmp.eq.s32.totalorder %v109, %v112
    %vm117 = vcmp.eq.s32.totalorder %v109, %v115
    %v118 = vsel %vm116, 1.0, 0.0
    %v119 = vsel %vm117, 1.0, 0.0
    %v120 = vld [vmem:[%s3] sm:$0xff]
    %v121 = vld [vmem:[%s3 + $0x8] sm:$0xff]
    %v122 = vld [vmem:[%s3 + $0x10] sm:$0xff]
    %v123 = vld [vmem:[%s3 + $0x18] sm:$0xff]
    %v124 = vld [vmem:[%s3 + $0x20] sm:$0xff]
    %v125 = vld [vmem:[%s3 + $0x28] sm:$0xff]
    %v126 = vld [vmem:[%s3 + $0x30] sm:$0xff]
    %v127 = vld [vmem:[%s3 + $0x38] sm:$0xff]
    %v128 = vld [vmem:[%s3 + $0x40] sm:$0xff]
    %v129 = vld [vmem:[%s3 + $0x48] sm:$0xff]
    %v130 = vld [vmem:[%s3 + $0x50] sm:$0xff]
    %v131 = vld [vmem:[%s3 + $0x58] sm:$0xff]
    %v132 = vld [vmem:[%s3 + $0x60] sm:$0xf]
    %v133 = vld [vmem:[%s1] sm:$0xff]
    %v134 = vld [vmem:[%s1 + $0x8] sm:$0xff]
    %v135 = vld [vmem:[%s5] sm:$0x3]
    %vm136 = vcmp.eq.s32.totalorder %v133, 0
    %vm137 = vcmp.eq.s32.totalorder %v134, 0
    %v138 = vsel %vm136, 1, 0
    %v139 = vsel %vm137, 1, 0
    %140 = vset.pattern.permute.xlu0 0
    %141 = vperm.xlu0 %140, %v138
    %v142 = vpop.permute.xlu0 %141
    %143 = vset.pattern.permute.xlu0 0
    %144 = vperm.xlu0 %143, %v139
    %v145 = vpop.permute.xlu0 %144
    %vm146 = vcmp.eq.s32.totalorder %v142, 1
    %vm147 = vcmp.eq.s32.totalorder %v145, 1
    %v148 = vlaneseq
    %v149 = vshrl.u32 %v148, 7
    %v150 = vsub.s32 0, %v149
    %v151 = vrot.slane %v135, %v150
    %v152 = vlaneseq
    %v153 = vshrl.u32 %v152, 7
    %v154 = vsub.s32 1, %v153
    %v155 = vrot.slane %v135, %v154
    %v156 = vsel %vm146, %v151, %v155
    %v157 = vsel %vm147, %v151, %v155
    %vm158 = vcmask 818176
    %v160 = vsel %vm158, %v118, 0
    %v163 = vsel %vm158, %v119, 0
    %vm165 = vcmask 1043456
    %v167 = vsel %vm165, %v132, 0
    %169 = vmatprep.subr.mxu0 0.0
    %170 = vmatpush1.msra.mxu0 %v120
    %171 = vmatprep.subr.mxu0 0.0
    %172 = vmatpush1.msra.mxu0 %v121
    %173 = vmatprep.subr.mxu0 0.0
    %174 = vmatpush1.msra.mxu0 %v122
    %175 = vmatprep.subr.mxu0 0.0
    %176 = vmatpush1.msra.mxu0 %v123
    %177 = vmatprep.subr.mxu0 0.0
    %178 = vmatpush1.msra.mxu0 %v124
    %179 = vmatprep.subr.mxu0 0.0
    %180 = vmatpush1.msra.mxu0 %v125
    %181 = vmatprep.subr.mxu0 0.0
    %182 = vmatpush1.msra.mxu0 %v126
    %183 = vmatprep.subr.mxu0 0.0
    %184 = vmatpush1.msra.mxu0 %v127
    %185 = vmatprep.subr.mxu0 0.0
    %186 = vmatpush1.msra.mxu0 %v128
    %187 = vmatprep.subr.mxu0 0.0
    %188 = vmatpush1.msra.mxu0 %v129
    %189 = vmatprep.subr.mxu0 0.0
    %190 = vmatpush1.msra.mxu0 %v130
    %191 = vmatprep.subr.mxu0 0.0
    %192 = vmatpush1.msra.mxu0 %v131
    %193 = vmatprep.subr.mxu0 0.0
    %194 = vmatpush1.msra.mxu0 %v167
    %195 = vmatprep.subr.mxu0 0.0
    %196 = vmatpush1.msra.mxu0 0.0
    %197 = vmatprep.subr.mxu0 0.0
    %198 = vmatpush1.msra.mxu0 0.0
    %199 = vmatprep.subr.mxu0 0.0
    %200 = vmatpush1.msra.mxu0 0.0
    %201 = vmatprep.subr.mxu0 0.0
    %202 = vmatpush1.msra.mxu0 0.0
    %203 = vmatprep.subr.mxu0 0.0
    %204 = vmatpush1.msra.mxu0 0.0
    %205 = vmatprep.subr.mxu0 0.0
    %206 = vmatpush1.msra.mxu0 0.0
    %207 = vmatprep.subr.mxu0 0.0
    %208 = vmatpush1.msra.mxu0 0.0
    %209 = vmatprep.subr.mxu0 0.0
    %210 = vmatpush1.msra.mxu0 0.0
    %211 = vmatprep.subr.mxu0 0.0
    %212 = vmatpush1.msra.mxu0 0.0
    %213 = vmatprep.subr.mxu0 0.0
    %214 = vmatpush1.msra.mxu0 0.0
    %215 = vmatprep.subr.mxu0 0.0
    %216 = vmatpush1.msra.mxu0 0.0
    %217 = vmatprep.subr.mxu0 0.0
    %218 = vmatpush1.msra.mxu0 0.0
    %219 = vmatprep.subr.mxu0 0.0
    %220 = vmatpush1.msra.mxu0 0.0
    %221 = vmatprep.subr.mxu0 0.0
    %222 = vmatpush1.msra.mxu0 0.0
    %223 = vmatprep.subr.mxu0 0.0
    %224 = vmatpush1.msra.mxu0 0.0
    %225 = vmatprep.subr.mxu0 0.0
    %226 = vmatpush1.msra.mxu0 0.0
    %227 = vmatprep.subr.mxu0 0.0
    %228 = vmatpush1.msra.mxu0 0.0
    %229 = vmatprep.subr.mxu0 0.0
    %230 = vmatpush1.msra.mxu0 0.0
    %231 = vmatprep.subr.mxu0 0.0
    %232 = vmatpush1.msra.mxu0 0.0
    %233 = vmatprep.mubr.f32.mxu0 0.0
    %234 = vmatmul.mubr.f32.gmra.mrb[0].mxu0 %v160
    %v235 = vpop.f32.mrb[0].mxu0
    %v236 = vadd.f32 %v156, %v235
    %v237 = vpop.f32.mrb[0].mxu0
    %238 = vmatprep.mubr.f32.mxu0 0.0
    %239 = vmatmul.mubr.f32.gmra.mrb[0].mxu0 %v163
    %v240 = vpop.f32.mrb[0].mxu0
    %v241 = vadd.f32 %v157, %v240
    %v242 = vpop.f32.mrb[0].mxu0
    %243 = vdwg.mxu0
    %v244 = vld [vmem:[%s4] sm:$0xff]
    %v245 = vadd.f32 %v236, %v244
    %v246 = vadd.f32 %v241, %v244
    %v247 = vld [vmem:[%s6] sm:$0x1]
    %v248 = vld [vmem:[%s7] sm:$0x1]
    %vm249 = vcmask 261120
    %v250 = vsel %vm249, %v245, 0.0
    %251 = vadd.xlane.f32.xlu0 %v250
    %v252 = vpop.xlane.xlu0 %251
    %v253 = vsel %vm249, %v246, 0.0
    %254 = vadd.xlane.f32.xlu0 %v253
    %v255 = vpop.xlane.xlu0 %254
    %v256 = vrcp.pop 32.0
    %v257 = vmul.f32 %v252, %v256
    %v258 = vmul.f32 %v255, %v256
    %v259 = vsub.f32 %v245, %v257
    %v260 = vsub.f32 %v246, %v258
    %v261 = vmul.f32 %v259, %v259
    %v262 = vmul.f32 %v260, %v260
    %v263 = vsel %vm249, %v261, 0.0
    %264 = vadd.xlane.f32.xlu0 %v263
    %v265 = vpop.xlane.xlu0 %264
    %v266 = vsel %vm249, %v262, 0.0
    %267 = vadd.xlane.f32.xlu0 %v266
    %v268 = vpop.xlane.xlu0 %267
    %v269 = vmul.f32 %v265, %v256
    %v270 = vmul.f32 %v268, %v256
    %v271 = vadd.f32 %v269, 1e-12
    %v272 = vadd.f32 %v270, 1e-12
    %v273 = vrsqrt.pop %v271
    %v274 = vrsqrt.pop %v272
    %v275 = vmul.f32 %v259, %v273
    %v276 = vmul.f32 %v260, %v274
    %v278 = vlaneseq
    %v279 = vshrl.u32 %v278, 7
    %v280 = vsub.s32 0, %v279
    %v281 = vrot.slane %v247, %v280
    %v283 = vmul.f32 %v275, %v281
    %v284 = vmul.f32 %v276, %v281
    %v286 = vlaneseq
    %v287 = vshrl.u32 %v286, 7
    %v288 = vsub.s32 0, %v287
    %v289 = vrot.slane %v248, %v288
    %v291 = vadd.f32 %v283, %v289
    %v292 = vadd.f32 %v284, %v289
    %v293 = vld [vmem:[%s2] sm:$0x3]
    %vm294 = vcmp.ne.s32.totalorder %v293, 0
    %v295 = vsel %vm294, 0.0, -1e+09
    %v298 = vunpack.c.l.s4 1966171168
    %v299 = vunpack.c.0.s8 %v298
    %v300 = vlaneseq
    %v301 = vshrl.u32 %v300, 7
    %v302 = vsub.s32 %v299, %v301
    %v303 = vrot.slane %v295, %v302
    %v304 = vcombine.high %v303, %v303
    %v306 = vunpack.c.l.s4 1966171168
    %v307 = vunpack.c.0.s8 %v306
    %v308 = vlaneseq
    %v309 = vshrl.u32 %v308, 7
    %v310 = vsub.s32 %v307, %v309
    %v311 = vrot.slane %v303, %v310
    %v313 = vunpack.c.l.s4 1966171168
    %v314 = vunpack.c.0.s8 %v313
    %v315 = vlaneseq
    %v316 = vshrl.u32 %v315, 7
    %v317 = vsub.s32 %v314, %v316
    %v318 = vrot.slane %v304, %v317
    %v319 = vlaneseq
    %v320 = vshrl.u32 %v319, 7
    %v321 = vsub.s32 0, %v320
    %v322 = vrot.slane %v311, %v321
    %v323 = vlaneseq
    %v324 = vshrl.u32 %v323, 7
    %v325 = vsub.s32 0, %v324
    %v326 = vrot.slane %v318, %v325
    %v329 = vpack.c.bf16 %v292, %v291
    %v330 = vld [vmem:[%s8] sm:$0xf]
    %v331 = vld [vmem:[%s8 + $0x4] sm:$0xf]
    %v332 = vld [vmem:[%s8 + $0x8] sm:$0xf]
    %v333 = vld [vmem:[%s8 + $0xc] sm:$0xf]
    %v334 = vld [vmem:[%s9] sm:$0x1]
    %v336 = vlaneseq
    %v337 = vshrl.u32 %v336, 7
    %v338 = vsub.s32 0, %v337
    %v339 = vrot.slane %v334, %v338
    %v345 = vunpack.c.l.b16 %v330
    %v346 = vunpack.c.l.b16 %v331
    %v347 = vunpack.c.l.b16 %v332
    %v348 = vunpack.c.l.b16 %v333
    %v349 = vpack.c.b16 %v346, %v345
    %v350 = vpack.c.b16 %v348, %v347
    %v354 = vsel %vm249, %v329, 0
    %356 = vmatprep.subr.bf16.mxu0 0
    %357 = vmatpush1.bf16.msra.mxu0 %v349
    %358 = vmatprep.subr.bf16.mxu0 0
    %359 = vmatpush1.bf16.msra.mxu0 %v350
    %360 = vmatprep.subr.bf16.mxu0 0
    %361 = vmatpush1.bf16.msra.mxu0 0
    %362 = vmatprep.subr.bf16.mxu0 0
    %363 = vmatpush1.bf16.msra.mxu0 0
    %364 = vmatprep.subr.bf16.mxu0 0
    %365 = vmatpush1.bf16.msra.mxu0 0
    %366 = vmatprep.subr.bf16.mxu0 0
    %367 = vmatpush1.bf16.msra.mxu0 0
    %368 = vmatprep.subr.bf16.mxu0 0
    %369 = vmatpush1.bf16.msra.mxu0 0
    %370 = vmatprep.subr.bf16.mxu0 0
    %371 = vmatpush1.bf16.msra.mxu0 0
    %372 = vmatprep.subr.bf16.mxu0 0
    %373 = vmatpush1.bf16.msra.mxu0 0
    %374 = vmatprep.subr.bf16.mxu0 0
    %375 = vmatpush1.bf16.msra.mxu0 0
    %376 = vmatprep.subr.bf16.mxu0 0
    %377 = vmatpush1.bf16.msra.mxu0 0
    %378 = vmatprep.subr.bf16.mxu0 0
    %379 = vmatpush1.bf16.msra.mxu0 0
    %380 = vmatprep.subr.bf16.mxu0 0
    %381 = vmatpush1.bf16.msra.mxu0 0
    %382 = vmatprep.subr.bf16.mxu0 0
    %383 = vmatpush1.bf16.msra.mxu0 0
    %384 = vmatprep.subr.bf16.mxu0 0
    %385 = vmatpush1.bf16.msra.mxu0 0
    %386 = vmatprep.subr.bf16.mxu0 0
    %387 = vmatpush1.bf16.msra.mxu0 0
    %388 = vmatprep.mubr.bf16.mxu0 0
    %389 = vmatmul.mubr.bf16.gmra.mrb[0].mxu0 %v354
    %v390 = vpop.f32.mrb[0].mxu0
    %v391 = vadd.f32 %v339, %v390
    %v392 = vpop.f32.mrb[0].mxu0
    %v393 = vpop.f32.mrb[0].mxu0
    %v394 = vadd.f32 %v339, %v393
    %v395 = vpop.f32.mrb[0].mxu0
    %396 = vdwg.mxu0
    %v397 = vpack.c.bf16 %v391, %v391
    %v398 = vpack.c.bf16 %v394, %v394
    %v399 = vld [vmem:[%s10] sm:$0xf]
    %v400 = vld [vmem:[%s10 + $0x4] sm:$0xf]
    %v401 = vld [vmem:[%s10 + $0x8] sm:$0xf]
    %v402 = vld [vmem:[%s10 + $0xc] sm:$0xf]
    %404 = vrot.lane.b32.xlu0 %v397, 96
    %v405 = vpop.permute.xlu0 %404
    %vm406 = vcmask 64512
    %v408 = vsel %vm406, %v397, 0
    %v411 = vsel %vm406, %v405, 0
    %413 = vmatprep.subr.bf16.mxu0 0
    %414 = vmatpush1.bf16.xpose.msra.mxu0 %v411
    %415 = vmatprep.subr.bf16.mxu0 0
    %416 = vmatpush1.bf16.xpose.msra.mxu0 0
    %417 = vmatprep.subr.bf16.mxu0 0
    %418 = vmatpush1.bf16.xpose.msra.mxu0 0
    %419 = vmatprep.subr.bf16.mxu0 0
    %420 = vmatpush1.bf16.xpose.msra.mxu0 0
    %421 = vmatprep.subr.bf16.mxu0 0
    %422 = vmatpush1.bf16.xpose.msra.mxu0 0
    %423 = vmatprep.subr.bf16.mxu0 0
    %424 = vmatpush1.bf16.xpose.msra.mxu0 0
    %425 = vmatprep.subr.bf16.mxu0 0
    %426 = vmatpush1.bf16.xpose.msra.mxu0 0
    %427 = vmatprep.subr.bf16.mxu0 0
    %428 = vmatpush1.bf16.xpose.msra.mxu0 0
    %429 = vmatprep.subr.bf16.mxu0 0
    %430 = vmatpush1.bf16.xpose.msra.mxu0 0
    %431 = vmatprep.subr.bf16.mxu0 0
    %432 = vmatpush1.bf16.xpose.msra.mxu0 0
    %433 = vmatprep.subr.bf16.mxu0 0
    %434 = vmatpush1.bf16.xpose.msra.mxu0 0
    %435 = vmatprep.subr.bf16.mxu0 0
    %436 = vmatpush1.bf16.xpose.msra.mxu0 0
    %437 = vmatprep.subr.bf16.mxu0 0
    %438 = vmatpush1.bf16.xpose.msra.mxu0 0
    %439 = vmatprep.subr.bf16.mxu0 0
    %440 = vmatpush1.bf16.xpose.msra.mxu0 0
    %441 = vmatprep.subr.bf16.mxu0 0
    %442 = vmatpush1.bf16.xpose.msra.mxu0 0
    %443 = vmatprep.subr.bf16.mxu0 0
    %444 = vmatpush1.bf16.xpose.msra.mxu0 0
    %445 = vmatprep.mubr.bf16.mxu0 0
    %446 = vmatmul.mubr.bf16.gmra.mrb[0].mxu0 %v408
    %v447 = vpop.f32.mrb[0].mxu0
    %v448 = vadd.f32 %v322, %v447
    %v449 = vpop.f32.mrb[0].mxu0
    %v450 = vpop.f32.mrb[0].mxu0
    %v451 = vpop.f32.mrb[0].mxu0
    %452 = vdwg.mxu0
    %454 = vrot.lane.b32.xlu0 %v398, 96
    %v455 = vpop.permute.xlu0 %454
    %v457 = vsel %vm406, %v398, 0
    %v460 = vsel %vm406, %v455, 0
    %462 = vmatprep.subr.bf16.mxu0 0
    %463 = vmatpush1.bf16.xpose.msra.mxu0 %v460
    %464 = vmatprep.subr.bf16.mxu0 0
    %465 = vmatpush1.bf16.xpose.msra.mxu0 0
    %466 = vmatprep.subr.bf16.mxu0 0
    %467 = vmatpush1.bf16.xpose.msra.mxu0 0
    %468 = vmatprep.subr.bf16.mxu0 0
    %469 = vmatpush1.bf16.xpose.msra.mxu0 0
    %470 = vmatprep.subr.bf16.mxu0 0
    %471 = vmatpush1.bf16.xpose.msra.mxu0 0
    %472 = vmatprep.subr.bf16.mxu0 0
    %473 = vmatpush1.bf16.xpose.msra.mxu0 0
    %474 = vmatprep.subr.bf16.mxu0 0
    %475 = vmatpush1.bf16.xpose.msra.mxu0 0
    %476 = vmatprep.subr.bf16.mxu0 0
    %477 = vmatpush1.bf16.xpose.msra.mxu0 0
    %478 = vmatprep.subr.bf16.mxu0 0
    %479 = vmatpush1.bf16.xpose.msra.mxu0 0
    %480 = vmatprep.subr.bf16.mxu0 0
    %481 = vmatpush1.bf16.xpose.msra.mxu0 0
    %482 = vmatprep.subr.bf16.mxu0 0
    %483 = vmatpush1.bf16.xpose.msra.mxu0 0
    %484 = vmatprep.subr.bf16.mxu0 0
    %485 = vmatpush1.bf16.xpose.msra.mxu0 0
    %486 = vmatprep.subr.bf16.mxu0 0
    %487 = vmatpush1.bf16.xpose.msra.mxu0 0
    %488 = vmatprep.subr.bf16.mxu0 0
    %489 = vmatpush1.bf16.xpose.msra.mxu0 0
    %490 = vmatprep.subr.bf16.mxu0 0
    %491 = vmatpush1.bf16.xpose.msra.mxu0 0
    %492 = vmatprep.subr.bf16.mxu0 0
    %493 = vmatpush1.bf16.xpose.msra.mxu0 0
    %494 = vmatprep.mubr.bf16.mxu0 0
    %495 = vmatmul.mubr.bf16.gmra.mrb[0].mxu0 %v457
    %v496 = vpop.f32.mrb[0].mxu0
    %v497 = vadd.f32 %v326, %v496
    %v498 = vpop.f32.mrb[0].mxu0
    %v499 = vpop.f32.mrb[0].mxu0
    %v500 = vpop.f32.mrb[0].mxu0
    %501 = vdwg.mxu0
    %v502 = vsel %vm406, %v448, -inf
    %503 = vmax.xlane.f32.xlu0 %v502
    %v504 = vpop.xlane.xlu0 %503
    %v505 = vsel %vm406, %v497, -inf
    %506 = vmax.xlane.f32.xlu0 %v505
    %v507 = vpop.xlane.xlu0 %506
    %v508 = vsub.f32 %v448, %v504
    %v509 = vsub.f32 %v497, %v507
    %v510 = vmul.f32 %v508, 1.442695
    %v511 = vpow.pop %v510
    %v512 = vmul.f32 %v509, 1.442695
    %v513 = vpow.pop %v512
    %v514 = vsel %vm406, %v511, 0.0
    %515 = vadd.xlane.f32.xlu0 %v514
    %v516 = vpop.xlane.xlu0 %515
    %v517 = vsel %vm406, %v513, 0.0
    %518 = vadd.xlane.f32.xlu0 %v517
    %v519 = vpop.xlane.xlu0 %518
    %v520 = vrcp.pop %v516
    %v521 = vrcp.pop %v519
    %v522 = vmul.f32 %v511, %v520
    %v523 = vmul.f32 %v513, %v521
    %v524 = vpack.c.bf16 %v522, %v522
    %v525 = vpack.c.bf16 %v523, %v523
    %526 = vrot.lane.b32.xlu0 %v397, 64
    %v527 = vpop.permute.xlu0 %526
    %v529 = vsel %vm406, %v524, 0
    %v532 = vsel %vm165, %v527, 0
    %534 = vmatprep.subr.bf16.mxu0 0
    %535 = vmatpush1.bf16.msra.mxu0 %v532
    %536 = vmatprep.subr.bf16.mxu0 0
    %537 = vmatpush1.bf16.msra.mxu0 0
    %538 = vmatprep.subr.bf16.mxu0 0
    %539 = vmatpush1.bf16.msra.mxu0 0
    %540 = vmatprep.subr.bf16.mxu0 0
    %541 = vmatpush1.bf16.msra.mxu0 0
    %542 = vmatprep.subr.bf16.mxu0 0
    %543 = vmatpush1.bf16.msra.mxu0 0
    %544 = vmatprep.subr.bf16.mxu0 0
    %545 = vmatpush1.bf16.msra.mxu0 0
    %546 = vmatprep.subr.bf16.mxu0 0
    %547 = vmatpush1.bf16.msra.mxu0 0
    %548 = vmatprep.subr.bf16.mxu0 0
    %549 = vmatpush1.bf16.msra.mxu0 0
    %550 = vmatprep.subr.bf16.mxu0 0
    %551 = vmatpush1.bf16.msra.mxu0 0
    %552 = vmatprep.subr.bf16.mxu0 0
    %553 = vmatpush1.bf16.msra.mxu0 0
    %554 = vmatprep.subr.bf16.mxu0 0
    %555 = vmatpush1.bf16.msra.mxu0 0
    %556 = vmatprep.subr.bf16.mxu0 0
    %557 = vmatpush1.bf16.msra.mxu0 0
    %558 = vmatprep.subr.bf16.mxu0 0
    %559 = vmatpush1.bf16.msra.mxu0 0
    %560 = vmatprep.subr.bf16.mxu0 0
    %561 = vmatpush1.bf16.msra.mxu0 0
    %562 = vmatprep.subr.bf16.mxu0 0
    %563 = vmatpush1.bf16.msra.mxu0 0
    %564 = vmatprep.subr.bf16.mxu0 0
    %565 = vmatpush1.bf16.msra.mxu0 0
    %566 = vmatprep.mubr.bf16.mxu0 0
    %567 = vmatmul.mubr.bf16.gmra.mrb[0].mxu0 %v529
    %v568 = vpop.f32.mrb[0].mxu0
    %v569 = vadd.f32 0.0, %v568
    %v570 = vpop.f32.mrb[0].mxu0
    %v571 = vpop.f32.mrb[0].mxu0
    %v572 = vpop.f32.mrb[0].mxu0
    %573 = vdwg.mxu0
    %574 = vrot.lane.b32.xlu0 %v398, 64
    %v575 = vpop.permute.xlu0 %574
    %v577 = vsel %vm406, %v525, 0
    %v580 = vsel %vm165, %v575, 0
    %582 = vmatprep.subr.bf16.mxu0 0
    %583 = vmatpush1.bf16.msra.mxu0 %v580
    %584 = vmatprep.subr.bf16.mxu0 0
    %585 = vmatpush1.bf16.msra.mxu0 0
    %586 = vmatprep.subr.bf16.mxu0 0
    %587 = vmatpush1.bf16.msra.mxu0 0
    %588 = vmatprep.subr.bf16.mxu0 0
    %589 = vmatpush1.bf16.msra.mxu0 0
    %590 = vmatprep.subr.bf16.mxu0 0
    %591 = vmatpush1.bf16.msra.mxu0 0
    %592 = vmatprep.subr.bf16.mxu0 0
    %593 = vmatpush1.bf16.msra.mxu0 0
    %594 = vmatprep.subr.bf16.mxu0 0
    %595 = vmatpush1.bf16.msra.mxu0 0
    %596 = vmatprep.subr.bf16.mxu0 0
    %597 = vmatpush1.bf16.msra.mxu0 0
    %598 = vmatprep.subr.bf16.mxu0 0
    %599 = vmatpush1.bf16.msra.mxu0 0
    %600 = vmatprep.subr.bf16.mxu0 0
    %601 = vmatpush1.bf16.msra.mxu0 0
    %602 = vmatprep.subr.bf16.mxu0 0
    %603 = vmatpush1.bf16.msra.mxu0 0
    %604 = vmatprep.subr.bf16.mxu0 0
    %605 = vmatpush1.bf16.msra.mxu0 0
    %606 = vmatprep.subr.bf16.mxu0 0
    %607 = vmatpush1.bf16.msra.mxu0 0
    %608 = vmatprep.subr.bf16.mxu0 0
    %609 = vmatpush1.bf16.msra.mxu0 0
    %610 = vmatprep.subr.bf16.mxu0 0
    %611 = vmatpush1.bf16.msra.mxu0 0
    %612 = vmatprep.subr.bf16.mxu0 0
    %613 = vmatpush1.bf16.msra.mxu0 0
    %614 = vmatprep.mubr.bf16.mxu0 0
    %615 = vmatmul.mubr.bf16.gmra.mrb[0].mxu0 %v577
    %v616 = vpop.f32.mrb[0].mxu0
    %v617 = vadd.f32 0.0, %v616
    %v618 = vpop.f32.mrb[0].mxu0
    %v619 = vpop.f32.mrb[0].mxu0
    %v620 = vpop.f32.mrb[0].mxu0
    %621 = vdwg.mxu0
    %v622 = vpack.c.bf16 %v617, %v569
    %623 = vrot.lane.b32.xlu0 %v397, 120
    %v624 = vpop.permute.xlu0 %623
    %625 = vrot.lane.b32.xlu0 %v397, 88
    %v626 = vpop.permute.xlu0 %625
    %v628 = vsel %vm406, %v624, 0
    %v631 = vsel %vm406, %v626, 0
    %633 = vmatprep.subr.bf16.mxu0 0
    %634 = vmatpush1.bf16.xpose.msra.mxu0 %v631
    %635 = vmatprep.subr.bf16.mxu0 0
    %636 = vmatpush1.bf16.xpose.msra.mxu0 0
    %637 = vmatprep.subr.bf16.mxu0 0
    %638 = vmatpush1.bf16.xpose.msra.mxu0 0
    %639 = vmatprep.subr.bf16.mxu0 0
    %640 = vmatpush1.bf16.xpose.msra.mxu0 0
    %641 = vmatprep.subr.bf16.mxu0 0
    %642 = vmatpush1.bf16.xpose.msra.mxu0 0
    %643 = vmatprep.subr.bf16.mxu0 0
    %644 = vmatpush1.bf16.xpose.msra.mxu0 0
    %645 = vmatprep.subr.bf16.mxu0 0
    %646 = vmatpush1.bf16.xpose.msra.mxu0 0
    %647 = vmatprep.subr.bf16.mxu0 0
    %648 = vmatpush1.bf16.xpose.msra.mxu0 0
    %649 = vmatprep.subr.bf16.mxu0 0
    %650 = vmatpush1.bf16.xpose.msra.mxu0 0
    %651 = vmatprep.subr.bf16.mxu0 0
    %652 = vmatpush1.bf16.xpose.msra.mxu0 0
    %653 = vmatprep.subr.bf16.mxu0 0
    %654 = vmatpush1.bf16.xpose.msra.mxu0 0
    %655 = vmatprep.subr.bf16.mxu0 0
    %656 = vmatpush1.bf16.xpose.msra.mxu0 0
    %657 = vmatprep.subr.bf16.mxu0 0
    %658 = vmatpush1.bf16.xpose.msra.mxu0 0
    %659 = vmatprep.subr.bf16.mxu0 0
    %660 = vmatpush1.bf16.xpose.msra.mxu0 0
    %661 = vmatprep.subr.bf16.mxu0 0
    %662 = vmatpush1.bf16.xpose.msra.mxu0 0
    %663 = vmatprep.subr.bf16.mxu0 0
    %664 = vmatpush1.bf16.xpose.msra.mxu0 0
    %665 = vmatprep.mubr.bf16.mxu0 0
    %666 = vmatmul.mubr.bf16.gmra.mrb[0].mxu0 %v628
    %v667 = vpop.f32.mrb[0].mxu0
    %v668 = vadd.f32 %v322, %v667
    %v669 = vpop.f32.mrb[0].mxu0
    %v670 = vpop.f32.mrb[0].mxu0
    %v671 = vpop.f32.mrb[0].mxu0
    %672 = vdwg.mxu0
    %673 = vrot.lane.b32.xlu0 %v398, 120
    %v674 = vpop.permute.xlu0 %673
    %675 = vrot.lane.b32.xlu0 %v398, 88
    %v676 = vpop.permute.xlu0 %675
    %v678 = vsel %vm406, %v674, 0
    %v681 = vsel %vm406, %v676, 0
    %683 = vmatprep.subr.bf16.mxu0 0
    %684 = vmatpush1.bf16.xpose.msra.mxu0 %v681
    %685 = vmatprep.subr.bf16.mxu0 0
    %686 = vmatpush1.bf16.xpose.msra.mxu0 0
    %687 = vmatprep.subr.bf16.mxu0 0
    %688 = vmatpush1.bf16.xpose.msra.mxu0 0
    %689 = vmatprep.subr.bf16.mxu0 0
    %690 = vmatpush1.bf16.xpose.msra.mxu0 0
    %691 = vmatprep.subr.bf16.mxu0 0
    %692 = vmatpush1.bf16.xpose.msra.mxu0 0
    %693 = vmatprep.subr.bf16.mxu0 0
    %694 = vmatpush1.bf16.xpose.msra.mxu0 0
    %695 = vmatprep.subr.bf16.mxu0 0
    %696 = vmatpush1.bf16.xpose.msra.mxu0 0
    %697 = vmatprep.subr.bf16.mxu0 0
    %698 = vmatpush1.bf16.xpose.msra.mxu0 0
    %699 = vmatprep.subr.bf16.mxu0 0
    %700 = vmatpush1.bf16.xpose.msra.mxu0 0
    %701 = vmatprep.subr.bf16.mxu0 0
    %702 = vmatpush1.bf16.xpose.msra.mxu0 0
    %703 = vmatprep.subr.bf16.mxu0 0
    %704 = vmatpush1.bf16.xpose.msra.mxu0 0
    %705 = vmatprep.subr.bf16.mxu0 0
    %706 = vmatpush1.bf16.xpose.msra.mxu0 0
    %707 = vmatprep.subr.bf16.mxu0 0
    %708 = vmatpush1.bf16.xpose.msra.mxu0 0
    %709 = vmatprep.subr.bf16.mxu0 0
    %710 = vmatpush1.bf16.xpose.msra.mxu0 0
    %711 = vmatprep.subr.bf16.mxu0 0
    %712 = vmatpush1.bf16.xpose.msra.mxu0 0
    %713 = vmatprep.subr.bf16.mxu0 0
    %714 = vmatpush1.bf16.xpose.msra.mxu0 0
    %715 = vmatprep.mubr.bf16.mxu0 0
    %716 = vmatmul.mubr.bf16.gmra.mrb[0].mxu0 %v678
    %v717 = vpop.f32.mrb[0].mxu0
    %v718 = vadd.f32 %v326, %v717
    %v719 = vpop.f32.mrb[0].mxu0
    %v720 = vpop.f32.mrb[0].mxu0
    %v721 = vpop.f32.mrb[0].mxu0
    %722 = vdwg.mxu0
    %v723 = vsel %vm406, %v668, -inf
    %724 = vmax.xlane.f32.xlu0 %v723
    %v725 = vpop.xlane.xlu0 %724
    %v726 = vsel %vm406, %v718, -inf
    %727 = vmax.xlane.f32.xlu0 %v726
    %v728 = vpop.xlane.xlu0 %727
    %v729 = vsub.f32 %v668, %v725
    %v730 = vsub.f32 %v718, %v728
    %v731 = vmul.f32 %v729, 1.442695
    %v732 = vpow.pop %v731
    %v733 = vmul.f32 %v730, 1.442695
    %v734 = vpow.pop %v733
    %v735 = vsel %vm406, %v732, 0.0
    %736 = vadd.xlane.f32.xlu0 %v735
    %v737 = vpop.xlane.xlu0 %736
    %v738 = vsel %vm406, %v734, 0.0
    %739 = vadd.xlane.f32.xlu0 %v738
    %v740 = vpop.xlane.xlu0 %739
    %v741 = vrcp.pop %v737
    %v742 = vrcp.pop %v740
    %v743 = vmul.f32 %v732, %v741
    %v744 = vmul.f32 %v734, %v742
    %v745 = vpack.c.bf16 %v743, %v743
    %v746 = vpack.c.bf16 %v744, %v744
    %747 = vrot.lane.b32.xlu0 %v397, 56
    %v748 = vpop.permute.xlu0 %747
    %v750 = vsel %vm406, %v745, 0
    %v753 = vsel %vm165, %v748, 0
    %755 = vmatprep.subr.bf16.mxu0 0
    %756 = vmatpush1.bf16.msra.mxu0 %v753
    %757 = vmatprep.subr.bf16.mxu0 0
    %758 = vmatpush1.bf16.msra.mxu0 0
    %759 = vmatprep.subr.bf16.mxu0 0
    %760 = vmatpush1.bf16.msra.mxu0 0
    %761 = vmatprep.subr.bf16.mxu0 0
    %762 = vmatpush1.bf16.msra.mxu0 0
    %763 = vmatprep.subr.bf16.mxu0 0
    %764 = vmatpush1.bf16.msra.mxu0 0
    %765 = vmatprep.subr.bf16.mxu0 0
    %766 = vmatpush1.bf16.msra.mxu0 0
    %767 = vmatprep.subr.bf16.mxu0 0
    %768 = vmatpush1.bf16.msra.mxu0 0
    %769 = vmatprep.subr.bf16.mxu0 0
    %770 = vmatpush1.bf16.msra.mxu0 0
    %771 = vmatprep.subr.bf16.mxu0 0
    %772 = vmatpush1.bf16.msra.mxu0 0
    %773 = vmatprep.subr.bf16.mxu0 0
    %774 = vmatpush1.bf16.msra.mxu0 0
    %775 = vmatprep.subr.bf16.mxu0 0
    %776 = vmatpush1.bf16.msra.mxu0 0
    %777 = vmatprep.subr.bf16.mxu0 0
    %778 = vmatpush1.bf16.msra.mxu0 0
    %779 = vmatprep.subr.bf16.mxu0 0
    %780 = vmatpush1.bf16.msra.mxu0 0
    %781 = vmatprep.subr.bf16.mxu0 0
    %782 = vmatpush1.bf16.msra.mxu0 0
    %783 = vmatprep.subr.bf16.mxu0 0
    %784 = vmatpush1.bf16.msra.mxu0 0
    %785 = vmatprep.subr.bf16.mxu0 0
    %786 = vmatpush1.bf16.msra.mxu0 0
    %787 = vmatprep.mubr.bf16.mxu0 0
    %788 = vmatmul.mubr.bf16.gmra.mrb[0].mxu0 %v750
    %v789 = vpop.f32.mrb[0].mxu0
    %v790 = vadd.f32 0.0, %v789
    %v791 = vpop.f32.mrb[0].mxu0
    %v792 = vpop.f32.mrb[0].mxu0
    %v793 = vpop.f32.mrb[0].mxu0
    %794 = vdwg.mxu0
    %795 = vrot.lane.b32.xlu0 %v398, 56
    %v796 = vpop.permute.xlu0 %795
    %v798 = vsel %vm406, %v746, 0
    %v801 = vsel %vm165, %v796, 0
    %803 = vmatprep.subr.bf16.mxu0 0
    %804 = vmatpush1.bf16.msra.mxu0 %v801
    %805 = vmatprep.subr.bf16.mxu0 0
    %806 = vmatpush1.bf16.msra.mxu0 0
    %807 = vmatprep.subr.bf16.mxu0 0
    %808 = vmatpush1.bf16.msra.mxu0 0
    %809 = vmatprep.subr.bf16.mxu0 0
    %810 = vmatpush1.bf16.msra.mxu0 0
    %811 = vmatprep.subr.bf16.mxu0 0
    %812 = vmatpush1.bf16.msra.mxu0 0
    %813 = vmatprep.subr.bf16.mxu0 0
    %814 = vmatpush1.bf16.msra.mxu0 0
    %815 = vmatprep.subr.bf16.mxu0 0
    %816 = vmatpush1.bf16.msra.mxu0 0
    %817 = vmatprep.subr.bf16.mxu0 0
    %818 = vmatpush1.bf16.msra.mxu0 0
    %819 = vmatprep.subr.bf16.mxu0 0
    %820 = vmatpush1.bf16.msra.mxu0 0
    %821 = vmatprep.subr.bf16.mxu0 0
    %822 = vmatpush1.bf16.msra.mxu0 0
    %823 = vmatprep.subr.bf16.mxu0 0
    %824 = vmatpush1.bf16.msra.mxu0 0
    %825 = vmatprep.subr.bf16.mxu0 0
    %826 = vmatpush1.bf16.msra.mxu0 0
    %827 = vmatprep.subr.bf16.mxu0 0
    %828 = vmatpush1.bf16.msra.mxu0 0
    %829 = vmatprep.subr.bf16.mxu0 0
    %830 = vmatpush1.bf16.msra.mxu0 0
    %831 = vmatprep.subr.bf16.mxu0 0
    %832 = vmatpush1.bf16.msra.mxu0 0
    %833 = vmatprep.subr.bf16.mxu0 0
    %834 = vmatpush1.bf16.msra.mxu0 0
    %835 = vmatprep.mubr.bf16.mxu0 0
    %836 = vmatmul.mubr.bf16.gmra.mrb[0].mxu0 %v798
    %v837 = vpop.f32.mrb[0].mxu0
    %v838 = vadd.f32 0.0, %v837
    %v839 = vpop.f32.mrb[0].mxu0
    %v840 = vpop.f32.mrb[0].mxu0
    %v841 = vpop.f32.mrb[0].mxu0
    %842 = vdwg.mxu0
    %v843 = vpack.c.bf16 %v838, %v790
    %v845 = vsel %vm406, %v843, 0
    %v848 = vsel %vm165, %v400, 0
    %850 = vmatprep.subr.bf16.mxu0 0
    %851 = vmatpush1.bf16.msra.mxu0 %v848
    %852 = vmatprep.subr.bf16.mxu0 0
    %853 = vmatpush1.bf16.msra.mxu0 0
    %854 = vmatprep.subr.bf16.mxu0 0
    %855 = vmatpush1.bf16.msra.mxu0 0
    %856 = vmatprep.subr.bf16.mxu0 0
    %857 = vmatpush1.bf16.msra.mxu0 0
    %858 = vmatprep.subr.bf16.mxu0 0
    %859 = vmatpush1.bf16.msra.mxu0 0
    %860 = vmatprep.subr.bf16.mxu0 0
    %861 = vmatpush1.bf16.msra.mxu0 0
    %862 = vmatprep.subr.bf16.mxu0 0
    %863 = vmatpush1.bf16.msra.mxu0 0
    %864 = vmatprep.subr.bf16.mxu0 0
    %865 = vmatpush1.bf16.msra.mxu0 0
    %866 = vmatprep.subr.bf16.mxu0 0
    %867 = vmatpush1.bf16.msra.mxu0 0
    %868 = vmatprep.subr.bf16.mxu0 0
    %869 = vmatpush1.bf16.msra.mxu0 0
    %870 = vmatprep.subr.bf16.mxu0 0
    %871 = vmatpush1.bf16.msra.mxu0 0
    %872 = vmatprep.subr.bf16.mxu0 0
    %873 = vmatpush1.bf16.msra.mxu0 0
    %874 = vmatprep.subr.bf16.mxu0 0
    %875 = vmatpush1.bf16.msra.mxu0 0
    %876 = vmatprep.subr.bf16.mxu0 0
    %877 = vmatpush1.bf16.msra.mxu0 0
    %878 = vmatprep.subr.bf16.mxu0 0
    %879 = vmatpush1.bf16.msra.mxu0 0
    %880 = vmatprep.subr.bf16.mxu0 0
    %881 = vmatpush1.bf16.msra.mxu0 0
    %882 = vmatprep.mubr.bf16.mxu0 0
    %883 = vmatmul.mubr.bf16.gmra.mrb[0].mxu0 %v845
    %v884 = vpop.f32.mrb[0].mxu0
    %v885 = vadd.f32 0.0, %v884
    %v886 = vpop.f32.mrb[0].mxu0
    %v887 = vpop.f32.mrb[0].mxu0
    %v888 = vadd.f32 0.0, %v887
    %v889 = vpop.f32.mrb[0].mxu0
    %890 = vdwg.mxu0
    %v892 = vsel %vm406, %v622, 0
    %v895 = vsel %vm165, %v399, 0
    %897 = vmatprep.subr.bf16.mxu0 0
    %898 = vmatpush1.bf16.msra.mxu0 %v895
    %899 = vmatprep.subr.bf16.mxu0 0
    %900 = vmatpush1.bf16.msra.mxu0 0
    %901 = vmatprep.subr.bf16.mxu0 0
    %902 = vmatpush1.bf16.msra.mxu0 0
    %903 = vmatprep.subr.bf16.mxu0 0
    %904 = vmatpush1.bf16.msra.mxu0 0
    %905 = vmatprep.subr.bf16.mxu0 0
    %906 = vmatpush1.bf16.msra.mxu0 0
    %907 = vmatprep.subr.bf16.mxu0 0
    %908 = vmatpush1.bf16.msra.mxu0 0
    %909 = vmatprep.subr.bf16.mxu0 0
    %910 = vmatpush1.bf16.msra.mxu0 0
    %911 = vmatprep.subr.bf16.mxu0 0
    %912 = vmatpush1.bf16.msra.mxu0 0
    %913 = vmatprep.subr.bf16.mxu0 0
    %914 = vmatpush1.bf16.msra.mxu0 0
    %915 = vmatprep.subr.bf16.mxu0 0
    %916 = vmatpush1.bf16.msra.mxu0 0
    %917 = vmatprep.subr.bf16.mxu0 0
    %918 = vmatpush1.bf16.msra.mxu0 0
    %919 = vmatprep.subr.bf16.mxu0 0
    %920 = vmatpush1.bf16.msra.mxu0 0
    %921 = vmatprep.subr.bf16.mxu0 0
    %922 = vmatpush1.bf16.msra.mxu0 0
    %923 = vmatprep.subr.bf16.mxu0 0
    %924 = vmatpush1.bf16.msra.mxu0 0
    %925 = vmatprep.subr.bf16.mxu0 0
    %926 = vmatpush1.bf16.msra.mxu0 0
    %927 = vmatprep.subr.bf16.mxu0 0
    %928 = vmatpush1.bf16.msra.mxu0 0
    %929 = vmatprep.mubr.bf16.mxu0 0
    %930 = vmatmul.mubr.bf16.gmra.mrb[0].mxu0 %v892
    %v931 = vpop.f32.mrb[0].mxu0
    %v932 = vadd.f32 %v885, %v931
    %v933 = vpop.f32.mrb[0].mxu0
    %v934 = vpop.f32.mrb[0].mxu0
    %v935 = vadd.f32 %v888, %v934
    %v936 = vpop.f32.mrb[0].mxu0
    %937 = vdwg.mxu0
    %938 = vrot.lane.b32.xlu0 %v397, 112
    %v939 = vpop.permute.xlu0 %938
    %940 = vrot.lane.b32.xlu0 %v397, 80
    %v941 = vpop.permute.xlu0 %940
    %v943 = vsel %vm406, %v939, 0
    %v946 = vsel %vm406, %v941, 0
    %948 = vmatprep.subr.bf16.mxu0 0
    %949 = vmatpush1.bf16.xpose.msra.mxu0 %v946
    %950 = vmatprep.subr.bf16.mxu0 0
    %951 = vmatpush1.bf16.xpose.msra.mxu0 0
    %952 = vmatprep.subr.bf16.mxu0 0
    %953 = vmatpush1.bf16.xpose.msra.mxu0 0
    %954 = vmatprep.subr.bf16.mxu0 0
    %955 = vmatpush1.bf16.xpose.msra.mxu0 0
    %956 = vmatprep.subr.bf16.mxu0 0
    %957 = vmatpush1.bf16.xpose.msra.mxu0 0
    %958 = vmatprep.subr.bf16.mxu0 0
    %959 = vmatpush1.bf16.xpose.msra.mxu0 0
    %960 = vmatprep.subr.bf16.mxu0 0
    %961 = vmatpush1.bf16.xpose.msra.mxu0 0
    %962 = vmatprep.subr.bf16.mxu0 0
    %963 = vmatpush1.bf16.xpose.msra.mxu0 0
    %964 = vmatprep.subr.bf16.mxu0 0
    %965 = vmatpush1.bf16.xpose.msra.mxu0 0
    %966 = vmatprep.subr.bf16.mxu0 0
    %967 = vmatpush1.bf16.xpose.msra.mxu0 0
    %968 = vmatprep.subr.bf16.mxu0 0
    %969 = vmatpush1.bf16.xpose.msra.mxu0 0
    %970 = vmatprep.subr.bf16.mxu0 0
    %971 = vmatpush1.bf16.xpose.msra.mxu0 0
    %972 = vmatprep.subr.bf16.mxu0 0
    %973 = vmatpush1.bf16.xpose.msra.mxu0 0
    %974 = vmatprep.subr.bf16.mxu0 0
    %975 = vmatpush1.bf16.xpose.msra.mxu0 0
    %976 = vmatprep.subr.bf16.mxu0 0
    %977 = vmatpush1.bf16.xpose.msra.mxu0 0
    %978 = vmatprep.subr.bf16.mxu0 0
    %979 = vmatpush1.bf16.xpose.msra.mxu0 0
    %980 = vmatprep.mubr.bf16.mxu0 0
    %981 = vmatmul.mubr.bf16.gmra.mrb[0].mxu0 %v943
    %v982 = vpop.f32.mrb[0].mxu0
    %v983 = vadd.f32 %v322, %v982
    %v984 = vpop.f32.mrb[0].mxu0
    %v985 = vpop.f32.mrb[0].mxu0
    %v986 = vpop.f32.mrb[0].mxu0
    %987 = vdwg.mxu0
    %988 = vrot.lane.b32.xlu0 %v398, 112
    %v989 = vpop.permute.xlu0 %988
    %990 = vrot.lane.b32.xlu0 %v398, 80
    %v991 = vpop.permute.xlu0 %990
    %v993 = vsel %vm406, %v989, 0
    %v996 = vsel %vm406, %v991, 0
    %998 = vmatprep.subr.bf16.mxu0 0
    %999 = vmatpush1.bf16.xpose.msra.mxu0 %v996
    %1000 = vmatprep.subr.bf16.mxu0 0
    %1001 = vmatpush1.bf16.xpose.msra.mxu0 0
    %1002 = vmatprep.subr.bf16.mxu0 0
    %1003 = vmatpush1.bf16.xpose.msra.mxu0 0
    %1004 = vmatprep.subr.bf16.mxu0 0
    %1005 = vmatpush1.bf16.xpose.msra.mxu0 0
    %1006 = vmatprep.subr.bf16.mxu0 0
    %1007 = vmatpush1.bf16.xpose.msra.mxu0 0
    %1008 = vmatprep.subr.bf16.mxu0 0
    %1009 = vmatpush1.bf16.xpose.msra.mxu0 0
    %1010 = vmatprep.subr.bf16.mxu0 0
    %1011 = vmatpush1.bf16.xpose.msra.mxu0 0
    %1012 = vmatprep.subr.bf16.mxu0 0
    %1013 = vmatpush1.bf16.xpose.msra.mxu0 0
    %1014 = vmatprep.subr.bf16.mxu0 0
    %1015 = vmatpush1.bf16.xpose.msra.mxu0 0
    %1016 = vmatprep.subr.bf16.mxu0 0
    %1017 = vmatpush1.bf16.xpose.msra.mxu0 0
    %1018 = vmatprep.subr.bf16.mxu0 0
    %1019 = vmatpush1.bf16.xpose.msra.mxu0 0
    %1020 = vmatprep.subr.bf16.mxu0 0
    %1021 = vmatpush1.bf16.xpose.msra.mxu0 0
    %1022 = vmatprep.subr.bf16.mxu0 0
    %1023 = vmatpush1.bf16.xpose.msra.mxu0 0
    %1024 = vmatprep.subr.bf16.mxu0 0
    %1025 = vmatpush1.bf16.xpose.msra.mxu0 0
    %1026 = vmatprep.subr.bf16.mxu0 0
    %1027 = vmatpush1.bf16.xpose.msra.mxu0 0
    %1028 = vmatprep.subr.bf16.mxu0 0
    %1029 = vmatpush1.bf16.xpose.msra.mxu0 0
    %1030 = vmatprep.mubr.bf16.mxu0 0
    %1031 = vmatmul.mubr.bf16.gmra.mrb[0].mxu0 %v993
    %v1032 = vpop.f32.mrb[0].mxu0
    %v1033 = vadd.f32 %v326, %v1032
    %v1034 = vpop.f32.mrb[0].mxu0
    %v1035 = vpop.f32.mrb[0].mxu0
    %v1036 = vpop.f32.mrb[0].mxu0
    %1037 = vdwg.mxu0
    %v1038 = vsel %vm406, %v983, -inf
    %1039 = vmax.xlane.f32.xlu0 %v1038
    %v1040 = vpop.xlane.xlu0 %1039
    %v1041 = vsel %vm406, %v1033, -inf
    %1042 = vmax.xlane.f32.xlu0 %v1041
    %v1043 = vpop.xlane.xlu0 %1042
    %v1044 = vsub.f32 %v983, %v1040
    %v1045 = vsub.f32 %v1033, %v1043
    %v1046 = vmul.f32 %v1044, 1.442695
    %v1047 = vpow.pop %v1046
    %v1048 = vmul.f32 %v1045, 1.442695
    %v1049 = vpow.pop %v1048
    %v1050 = vsel %vm406, %v1047, 0.0
    %1051 = vadd.xlane.f32.xlu0 %v1050
    %v1052 = vpop.xlane.xlu0 %1051
    %v1053 = vsel %vm406, %v1049, 0.0
    %1054 = vadd.xlane.f32.xlu0 %v1053
    %v1055 = vpop.xlane.xlu0 %1054
    %v1056 = vrcp.pop %v1052
    %v1057 = vrcp.pop %v1055
    %v1058 = vmul.f32 %v1047, %v1056
    %v1059 = vmul.f32 %v1049, %v1057
    %v1060 = vpack.c.bf16 %v1058, %v1058
    %v1061 = vpack.c.bf16 %v1059, %v1059
    %1062 = vrot.lane.b32.xlu0 %v397, 48
    %v1063 = vpop.permute.xlu0 %1062
    %v1065 = vsel %vm406, %v1060, 0
    %v1068 = vsel %vm165, %v1063, 0
    %1070 = vmatprep.subr.bf16.mxu0 0
    %1071 = vmatpush1.bf16.msra.mxu0 %v1068
    %1072 = vmatprep.subr.bf16.mxu0 0
    %1073 = vmatpush1.bf16.msra.mxu0 0
    %1074 = vmatprep.subr.bf16.mxu0 0
    %1075 = vmatpush1.bf16.msra.mxu0 0
    %1076 = vmatprep.subr.bf16.mxu0 0
    %1077 = vmatpush1.bf16.msra.mxu0 0
    %1078 = vmatprep.subr.bf16.mxu0 0
    %1079 = vmatpush1.bf16.msra.mxu0 0
    %1080 = vmatprep.subr.bf16.mxu0 0
    %1081 = vmatpush1.bf16.msra.mxu0 0
    %1082 = vmatprep.subr.bf16.mxu0 0
    %1083 = vmatpush1.bf16.msra.mxu0 0
    %1084 = vmatprep.subr.bf16.mxu0 0
    %1085 = vmatpush1.bf16.msra.mxu0 0
    %1086 = vmatprep.subr.bf16.mxu0 0
    %1087 = vmatpush1.bf16.msra.mxu0 0
    %1088 = vmatprep.subr.bf16.mxu0 0
    %1089 = vmatpush1.bf16.msra.mxu0 0
    %1090 = vmatprep.subr.bf16.mxu0 0
    %1091 = vmatpush1.bf16.msra.mxu0 0
    %1092 = vmatprep.subr.bf16.mxu0 0
    %1093 = vmatpush1.bf16.msra.mxu0 0
    %1094 = vmatprep.subr.bf16.mxu0 0
    %1095 = vmatpush1.bf16.msra.mxu0 0
    %1096 = vmatprep.subr.bf16.mxu0 0
    %1097 = vmatpush1.bf16.msra.mxu0 0
    %1098 = vmatprep.subr.bf16.mxu0 0
    %1099 = vmatpush1.bf16.msra.mxu0 0
    %1100 = vmatprep.subr.bf16.mxu0 0
    %1101 = vmatpush1.bf16.msra.mxu0 0
    %1102 = vmatprep.mubr.bf16.mxu0 0
    %1103 = vmatmul.mubr.bf16.gmra.mrb[0].mxu0 %v1065
    %v1104 = vpop.f32.mrb[0].mxu0
    %v1105 = vadd.f32 0.0, %v1104
    %v1106 = vpop.f32.mrb[0].mxu0
    %v1107 = vpop.f32.mrb[0].mxu0
    %v1108 = vpop.f32.mrb[0].mxu0
    %1109 = vdwg.mxu0
    %1110 = vrot.lane.b32.xlu0 %v398, 48
    %v1111 = vpop.permute.xlu0 %1110
    %v1113 = vsel %vm406, %v1061, 0
    %v1116 = vsel %vm165, %v1111, 0
    %1118 = vmatprep.subr.bf16.mxu0 0
    %1119 = vmatpush1.bf16.msra.mxu0 %v1116
    %1120 = vmatprep.subr.bf16.mxu0 0
    %1121 = vmatpush1.bf16.msra.mxu0 0
    %1122 = vmatprep.subr.bf16.mxu0 0
    %1123 = vmatpush1.bf16.msra.mxu0 0
    %1124 = vmatprep.subr.bf16.mxu0 0
    %1125 = vmatpush1.bf16.msra.mxu0 0
    %1126 = vmatprep.subr.bf16.mxu0 0
    %1127 = vmatpush1.bf16.msra.mxu0 0
    %1128 = vmatprep.subr.bf16.mxu0 0
    %1129 = vmatpush1.bf16.msra.mxu0 0
    %1130 = vmatprep.subr.bf16.mxu0 0
    %1131 = vmatpush1.bf16.msra.mxu0 0
    %1132 = vmatprep.subr.bf16.mxu0 0
    %1133 = vmatpush1.bf16.msra.mxu0 0
    %1134 = vmatprep.subr.bf16.mxu0 0
    %1135 = vmatpush1.bf16.msra.mxu0 0
    %1136 = vmatprep.subr.bf16.mxu0 0
    %1137 = vmatpush1.bf16.msra.mxu0 0
    %1138 = vmatprep.subr.bf16.mxu0 0
    %1139 = vmatpush1.bf16.msra.mxu0 0
    %1140 = vmatprep.subr.bf16.mxu0 0
    %1141 = vmatpush1.bf16.msra.mxu0 0
    %1142 = vmatprep.subr.bf16.mxu0 0
    %1143 = vmatpush1.bf16.msra.mxu0 0
    %1144 = vmatprep.subr.bf16.mxu0 0
    %1145 = vmatpush1.bf16.msra.mxu0 0
    %1146 = vmatprep.subr.bf16.mxu0 0
    %1147 = vmatpush1.bf16.msra.mxu0 0
    %1148 = vmatprep.subr.bf16.mxu0 0
    %1149 = vmatpush1.bf16.msra.mxu0 0
    %1150 = vmatprep.mubr.bf16.mxu0 0
    %1151 = vmatmul.mubr.bf16.gmra.mrb[0].mxu0 %v1113
    %v1152 = vpop.f32.mrb[0].mxu0
    %v1153 = vadd.f32 0.0, %v1152
    %v1154 = vpop.f32.mrb[0].mxu0
    %v1155 = vpop.f32.mrb[0].mxu0
    %v1156 = vpop.f32.mrb[0].mxu0
    %1157 = vdwg.mxu0
    %v1158 = vpack.c.bf16 %v1153, %v1105
    %v1160 = vsel %vm406, %v1158, 0
    %v1163 = vsel %vm165, %v401, 0
    %1165 = vmatprep.subr.bf16.mxu0 0
    %1166 = vmatpush1.bf16.msra.mxu0 %v1163
    %1167 = vmatprep.subr.bf16.mxu0 0
    %1168 = vmatpush1.bf16.msra.mxu0 0
    %1169 = vmatprep.subr.bf16.mxu0 0
    %1170 = vmatpush1.bf16.msra.mxu0 0
    %1171 = vmatprep.subr.bf16.mxu0 0
    %1172 = vmatpush1.bf16.msra.mxu0 0
    %1173 = vmatprep.subr.bf16.mxu0 0
    %1174 = vmatpush1.bf16.msra.mxu0 0
    %1175 = vmatprep.subr.bf16.mxu0 0
    %1176 = vmatpush1.bf16.msra.mxu0 0
    %1177 = vmatprep.subr.bf16.mxu0 0
    %1178 = vmatpush1.bf16.msra.mxu0 0
    %1179 = vmatprep.subr.bf16.mxu0 0
    %1180 = vmatpush1.bf16.msra.mxu0 0
    %1181 = vmatprep.subr.bf16.mxu0 0
    %1182 = vmatpush1.bf16.msra.mxu0 0
    %1183 = vmatprep.subr.bf16.mxu0 0
    %1184 = vmatpush1.bf16.msra.mxu0 0
    %1185 = vmatprep.subr.bf16.mxu0 0
    %1186 = vmatpush1.bf16.msra.mxu0 0
    %1187 = vmatprep.subr.bf16.mxu0 0
    %1188 = vmatpush1.bf16.msra.mxu0 0
    %1189 = vmatprep.subr.bf16.mxu0 0
    %1190 = vmatpush1.bf16.msra.mxu0 0
    %1191 = vmatprep.subr.bf16.mxu0 0
    %1192 = vmatpush1.bf16.msra.mxu0 0
    %1193 = vmatprep.subr.bf16.mxu0 0
    %1194 = vmatpush1.bf16.msra.mxu0 0
    %1195 = vmatprep.subr.bf16.mxu0 0
    %1196 = vmatpush1.bf16.msra.mxu0 0
    %1197 = vmatprep.mubr.bf16.mxu0 0
    %1198 = vmatmul.mubr.bf16.gmra.mrb[0].mxu0 %v1160
    %v1199 = vpop.f32.mrb[0].mxu0
    %v1200 = vadd.f32 0.0, %v1199
    %v1201 = vpop.f32.mrb[0].mxu0
    %v1202 = vpop.f32.mrb[0].mxu0
    %v1203 = vadd.f32 0.0, %v1202
    %v1204 = vpop.f32.mrb[0].mxu0
    %1205 = vdwg.mxu0
    %v1206 = vadd.f32 %v932, %v1200
    %v1207 = vadd.f32 %v935, %v1203
    %1208 = vrot.lane.b32.xlu0 %v397, 104
    %v1209 = vpop.permute.xlu0 %1208
    %1210 = vrot.lane.b32.xlu0 %v397, 72
    %v1211 = vpop.permute.xlu0 %1210
    %v1213 = vsel %vm406, %v1209, 0
    %v1216 = vsel %vm406, %v1211, 0
    %1218 = vmatprep.subr.bf16.mxu0 0
    %1219 = vmatpush1.bf16.xpose.msra.mxu0 %v1216
    %1220 = vmatprep.subr.bf16.mxu0 0
    %1221 = vmatpush1.bf16.xpose.msra.mxu0 0
    %1222 = vmatprep.subr.bf16.mxu0 0
    %1223 = vmatpush1.bf16.xpose.msra.mxu0 0
    %1224 = vmatprep.subr.bf16.mxu0 0
    %1225 = vmatpush1.bf16.xpose.msra.mxu0 0
    %1226 = vmatprep.subr.bf16.mxu0 0
    %1227 = vmatpush1.bf16.xpose.msra.mxu0 0
    %1228 = vmatprep.subr.bf16.mxu0 0
    %1229 = vmatpush1.bf16.xpose.msra.mxu0 0
    %1230 = vmatprep.subr.bf16.mxu0 0
    %1231 = vmatpush1.bf16.xpose.msra.mxu0 0
    %1232 = vmatprep.subr.bf16.mxu0 0
    %1233 = vmatpush1.bf16.xpose.msra.mxu0 0
    %1234 = vmatprep.subr.bf16.mxu0 0
    %1235 = vmatpush1.bf16.xpose.msra.mxu0 0
    %1236 = vmatprep.subr.bf16.mxu0 0
    %1237 = vmatpush1.bf16.xpose.msra.mxu0 0
    %1238 = vmatprep.subr.bf16.mxu0 0
    %1239 = vmatpush1.bf16.xpose.msra.mxu0 0
    %1240 = vmatprep.subr.bf16.mxu0 0
    %1241 = vmatpush1.bf16.xpose.msra.mxu0 0
    %1242 = vmatprep.subr.bf16.mxu0 0
    %1243 = vmatpush1.bf16.xpose.msra.mxu0 0
    %1244 = vmatprep.subr.bf16.mxu0 0
    %1245 = vmatpush1.bf16.xpose.msra.mxu0 0
    %1246 = vmatprep.subr.bf16.mxu0 0
    %1247 = vmatpush1.bf16.xpose.msra.mxu0 0
    %1248 = vmatprep.subr.bf16.mxu0 0
    %1249 = vmatpush1.bf16.xpose.msra.mxu0 0
    %1250 = vmatprep.mubr.bf16.mxu0 0
    %1251 = vmatmul.mubr.bf16.gmra.mrb[0].mxu0 %v1213
    %v1252 = vpop.f32.mrb[0].mxu0
    %v1253 = vadd.f32 %v322, %v1252
    %v1254 = vpop.f32.mrb[0].mxu0
    %v1255 = vpop.f32.mrb[0].mxu0
    %v1256 = vpop.f32.mrb[0].mxu0
    %1257 = vdwg.mxu0
    %1258 = vrot.lane.b32.xlu0 %v398, 104
    %v1259 = vpop.permute.xlu0 %1258
    %1260 = vrot.lane.b32.xlu0 %v398, 72
    %v1261 = vpop.permute.xlu0 %1260
    %v1263 = vsel %vm406, %v1259, 0
    %v1266 = vsel %vm406, %v1261, 0
    %1268 = vmatprep.subr.bf16.mxu0 0
    %1269 = vmatpush1.bf16.xpose.msra.mxu0 %v1266
    %1270 = vmatprep.subr.bf16.mxu0 0
    %1271 = vmatpush1.bf16.xpose.msra.mxu0 0
    %1272 = vmatprep.subr.bf16.mxu0 0
    %1273 = vmatpush1.bf16.xpose.msra.mxu0 0
    %1274 = vmatprep.subr.bf16.mxu0 0
    %1275 = vmatpush1.bf16.xpose.msra.mxu0 0
    %1276 = vmatprep.subr.bf16.mxu0 0
    %1277 = vmatpush1.bf16.xpose.msra.mxu0 0
    %1278 = vmatprep.subr.bf16.mxu0 0
    %1279 = vmatpush1.bf16.xpose.msra.mxu0 0
    %1280 = vmatprep.subr.bf16.mxu0 0
    %1281 = vmatpush1.bf16.xpose.msra.mxu0 0
    %1282 = vmatprep.subr.bf16.mxu0 0
    %1283 = vmatpush1.bf16.xpose.msra.mxu0 0
    %1284 = vmatprep.subr.bf16.mxu0 0
    %1285 = vmatpush1.bf16.xpose.msra.mxu0 0
    %1286 = vmatprep.subr.bf16.mxu0 0
    %1287 = vmatpush1.bf16.xpose.msra.mxu0 0
    %1288 = vmatprep.subr.bf16.mxu0 0
    %1289 = vmatpush1.bf16.xpose.msra.mxu0 0
    %1290 = vmatprep.subr.bf16.mxu0 0
    %1291 = vmatpush1.bf16.xpose.msra.mxu0 0
    %1292 = vmatprep.subr.bf16.mxu0 0
    %1293 = vmatpush1.bf16.xpose.msra.mxu0 0
    %1294 = vmatprep.subr.bf16.mxu0 0
    %1295 = vmatpush1.bf16.xpose.msra.mxu0 0
    %1296 = vmatprep.subr.bf16.mxu0 0
    %1297 = vmatpush1.bf16.xpose.msra.mxu0 0
    %1298 = vmatprep.subr.bf16.mxu0 0
    %1299 = vmatpush1.bf16.xpose.msra.mxu0 0
    %1300 = vmatprep.mubr.bf16.mxu0 0
    %1301 = vmatmul.mubr.bf16.gmra.mrb[0].mxu0 %v1263
    %v1302 = vpop.f32.mrb[0].mxu0
    %v1303 = vadd.f32 %v326, %v1302
    %v1304 = vpop.f32.mrb[0].mxu0
    %v1305 = vpop.f32.mrb[0].mxu0
    %v1306 = vpop.f32.mrb[0].mxu0
    %1307 = vdwg.mxu0
    %v1308 = vsel %vm406, %v1253, -inf
    %1309 = vmax.xlane.f32.xlu0 %v1308
    %v1310 = vpop.xlane.xlu0 %1309
    %v1311 = vsel %vm406, %v1303, -inf
    %1312 = vmax.xlane.f32.xlu0 %v1311
    %v1313 = vpop.xlane.xlu0 %1312
    %v1314 = vsub.f32 %v1253, %v1310
    %v1315 = vsub.f32 %v1303, %v1313
    %v1316 = vmul.f32 %v1314, 1.442695
    %v1317 = vpow.pop %v1316
    %v1318 = vmul.f32 %v1315, 1.442695
    %v1319 = vpow.pop %v1318
    %v1320 = vsel %vm406, %v1317, 0.0
    %1321 = vadd.xlane.f32.xlu0 %v1320
    %v1322 = vpop.xlane.xlu0 %1321
    %v1323 = vsel %vm406, %v1319, 0.0
    %1324 = vadd.xlane.f32.xlu0 %v1323
    %v1325 = vpop.xlane.xlu0 %1324
    %v1326 = vrcp.pop %v1322
    %v1327 = vrcp.pop %v1325
    %v1328 = vmul.f32 %v1317, %v1326
    %v1329 = vmul.f32 %v1319, %v1327
    %v1330 = vpack.c.bf16 %v1328, %v1328
    %v1331 = vpack.c.bf16 %v1329, %v1329
    %1332 = vrot.lane.b32.xlu0 %v397, 40
    %v1333 = vpop.permute.xlu0 %1332
    %v1335 = vsel %vm406, %v1330, 0
    %v1338 = vsel %vm165, %v1333, 0
    %1340 = vmatprep.subr.bf16.mxu0 0
    %1341 = vmatpush1.bf16.msra.mxu0 %v1338
    %1342 = vmatprep.subr.bf16.mxu0 0
    %1343 = vmatpush1.bf16.msra.mxu0 0
    %1344 = vmatprep.subr.bf16.mxu0 0
    %1345 = vmatpush1.bf16.msra.mxu0 0
    %1346 = vmatprep.subr.bf16.mxu0 0
    %1347 = vmatpush1.bf16.msra.mxu0 0
    %1348 = vmatprep.subr.bf16.mxu0 0
    %1349 = vmatpush1.bf16.msra.mxu0 0
    %1350 = vmatprep.subr.bf16.mxu0 0
    %1351 = vmatpush1.bf16.msra.mxu0 0
    %1352 = vmatprep.subr.bf16.mxu0 0
    %1353 = vmatpush1.bf16.msra.mxu0 0
    %1354 = vmatprep.subr.bf16.mxu0 0
    %1355 = vmatpush1.bf16.msra.mxu0 0
    %1356 = vmatprep.subr.bf16.mxu0 0
    %1357 = vmatpush1.bf16.msra.mxu0 0
    %1358 = vmatprep.subr.bf16.mxu0 0
    %1359 = vmatpush1.bf16.msra.mxu0 0
    %1360 = vmatprep.subr.bf16.mxu0 0
    %1361 = vmatpush1.bf16.msra.mxu0 0
    %1362 = vmatprep.subr.bf16.mxu0 0
    %1363 = vmatpush1.bf16.msra.mxu0 0
    %1364 = vmatprep.subr.bf16.mxu0 0
    %1365 = vmatpush1.bf16.msra.mxu0 0
    %1366 = vmatprep.subr.bf16.mxu0 0
    %1367 = vmatpush1.bf16.msra.mxu0 0
    %1368 = vmatprep.subr.bf16.mxu0 0
    %1369 = vmatpush1.bf16.msra.mxu0 0
    %1370 = vmatprep.subr.bf16.mxu0 0
    %1371 = vmatpush1.bf16.msra.mxu0 0
    %1372 = vmatprep.mubr.bf16.mxu0 0
    %1373 = vmatmul.mubr.bf16.gmra.mrb[0].mxu0 %v1335
    %v1374 = vpop.f32.mrb[0].mxu0
    %v1375 = vadd.f32 0.0, %v1374
    %v1376 = vpop.f32.mrb[0].mxu0
    %v1377 = vpop.f32.mrb[0].mxu0
    %v1378 = vpop.f32.mrb[0].mxu0
    %1379 = vdwg.mxu0
    %1380 = vrot.lane.b32.xlu0 %v398, 40
    %v1381 = vpop.permute.xlu0 %1380
    %v1383 = vsel %vm406, %v1331, 0
    %v1386 = vsel %vm165, %v1381, 0
    %1388 = vmatprep.subr.bf16.mxu0 0
    %1389 = vmatpush1.bf16.msra.mxu0 %v1386
    %1390 = vmatprep.subr.bf16.mxu0 0
    %1391 = vmatpush1.bf16.msra.mxu0 0
    %1392 = vmatprep.subr.bf16.mxu0 0
    %1393 = vmatpush1.bf16.msra.mxu0 0
    %1394 = vmatprep.subr.bf16.mxu0 0
    %1395 = vmatpush1.bf16.msra.mxu0 0
    %1396 = vmatprep.subr.bf16.mxu0 0
    %1397 = vmatpush1.bf16.msra.mxu0 0
    %1398 = vmatprep.subr.bf16.mxu0 0
    %1399 = vmatpush1.bf16.msra.mxu0 0
    %1400 = vmatprep.subr.bf16.mxu0 0
    %1401 = vmatpush1.bf16.msra.mxu0 0
    %1402 = vmatprep.subr.bf16.mxu0 0
    %1403 = vmatpush1.bf16.msra.mxu0 0
    %1404 = vmatprep.subr.bf16.mxu0 0
    %1405 = vmatpush1.bf16.msra.mxu0 0
    %1406 = vmatprep.subr.bf16.mxu0 0
    %1407 = vmatpush1.bf16.msra.mxu0 0
    %1408 = vmatprep.subr.bf16.mxu0 0
    %1409 = vmatpush1.bf16.msra.mxu0 0
    %1410 = vmatprep.subr.bf16.mxu0 0
    %1411 = vmatpush1.bf16.msra.mxu0 0
    %1412 = vmatprep.subr.bf16.mxu0 0
    %1413 = vmatpush1.bf16.msra.mxu0 0
    %1414 = vmatprep.subr.bf16.mxu0 0
    %1415 = vmatpush1.bf16.msra.mxu0 0
    %1416 = vmatprep.subr.bf16.mxu0 0
    %1417 = vmatpush1.bf16.msra.mxu0 0
    %1418 = vmatprep.subr.bf16.mxu0 0
    %1419 = vmatpush1.bf16.msra.mxu0 0
    %1420 = vmatprep.mubr.bf16.mxu0 0
    %1421 = vmatmul.mubr.bf16.gmra.mrb[0].mxu0 %v1383
    %v1422 = vpop.f32.mrb[0].mxu0
    %v1423 = vadd.f32 0.0, %v1422
    %v1424 = vpop.f32.mrb[0].mxu0
    %v1425 = vpop.f32.mrb[0].mxu0
    %v1426 = vpop.f32.mrb[0].mxu0
    %1427 = vdwg.mxu0
    %v1428 = vpack.c.bf16 %v1423, %v1375
    %v1430 = vsel %vm406, %v1428, 0
    %v1433 = vsel %vm165, %v402, 0
    %1435 = vmatprep.subr.bf16.mxu0 0
    %1436 = vmatpush1.bf16.msra.mxu0 %v1433
    %1437 = vmatprep.subr.bf16.mxu0 0
    %1438 = vmatpush1.bf16.msra.mxu0 0
    %1439 = vmatprep.subr.bf16.mxu0 0
    %1440 = vmatpush1.bf16.msra.mxu0 0
    %1441 = vmatprep.subr.bf16.mxu0 0
    %1442 = vmatpush1.bf16.msra.mxu0 0
    %1443 = vmatprep.subr.bf16.mxu0 0
    %1444 = vmatpush1.bf16.msra.mxu0 0
    %1445 = vmatprep.subr.bf16.mxu0 0
    %1446 = vmatpush1.bf16.msra.mxu0 0
    %1447 = vmatprep.subr.bf16.mxu0 0
    %1448 = vmatpush1.bf16.msra.mxu0 0
    %1449 = vmatprep.subr.bf16.mxu0 0
    %1450 = vmatpush1.bf16.msra.mxu0 0
    %1451 = vmatprep.subr.bf16.mxu0 0
    %1452 = vmatpush1.bf16.msra.mxu0 0
    %1453 = vmatprep.subr.bf16.mxu0 0
    %1454 = vmatpush1.bf16.msra.mxu0 0
    %1455 = vmatprep.subr.bf16.mxu0 0
    %1456 = vmatpush1.bf16.msra.mxu0 0
    %1457 = vmatprep.subr.bf16.mxu0 0
    %1458 = vmatpush1.bf16.msra.mxu0 0
    %1459 = vmatprep.subr.bf16.mxu0 0
    %1460 = vmatpush1.bf16.msra.mxu0 0
    %1461 = vmatprep.subr.bf16.mxu0 0
    %1462 = vmatpush1.bf16.msra.mxu0 0
    %1463 = vmatprep.subr.bf16.mxu0 0
    %1464 = vmatpush1.bf16.msra.mxu0 0
    %1465 = vmatprep.subr.bf16.mxu0 0
    %1466 = vmatpush1.bf16.msra.mxu0 0
    %1467 = vmatprep.mubr.bf16.mxu0 0
    %1468 = vmatmul.mubr.bf16.gmra.mrb[0].mxu0 %v1430
    %v1469 = vpop.f32.mrb[0].mxu0
    %v1470 = vadd.f32 0.0, %v1469
    %v1471 = vpop.f32.mrb[0].mxu0
    %v1472 = vpop.f32.mrb[0].mxu0
    %v1473 = vadd.f32 0.0, %v1472
    %v1474 = vpop.f32.mrb[0].mxu0
    %1475 = vdwg.mxu0
    %v1476 = vadd.f32 %v1206, %v1470
    %v1477 = vadd.f32 %v1207, %v1473
    %v1478 = vld [vmem:[%s11] sm:$0x1]
    %v1480 = vlaneseq
    %v1481 = vshrl.u32 %v1480, 7
    %v1482 = vsub.s32 0, %v1481
    %v1483 = vrot.slane %v1478, %v1482
    %v1485 = vadd.f32 %v1476, %v1483
    %v1486 = vadd.f32 %v1477, %v1483
    %v1487 = vadd.f32 %v291, %v1485
    %v1488 = vadd.f32 %v292, %v1486
    %v1489 = vld [vmem:[%s12] sm:$0x1]
    %v1490 = vld [vmem:[%s13] sm:$0x1]
    %v1491 = vsel %vm249, %v1487, 0.0
    %1492 = vadd.xlane.f32.xlu0 %v1491
    %v1493 = vpop.xlane.xlu0 %1492
    %v1494 = vsel %vm249, %v1488, 0.0
    %1495 = vadd.xlane.f32.xlu0 %v1494
    %v1496 = vpop.xlane.xlu0 %1495
    %v1497 = vmul.f32 %v1493, %v256
    %v1498 = vmul.f32 %v1496, %v256
    %v1499 = vsub.f32 %v1487, %v1497
    %v1500 = vsub.f32 %v1488, %v1498
    %v1501 = vmul.f32 %v1499, %v1499
    %v1502 = vmul.f32 %v1500, %v1500
    %v1503 = vsel %vm249, %v1501, 0.0
    %1504 = vadd.xlane.f32.xlu0 %v1503
    %v1505 = vpop.xlane.xlu0 %1504
    %v1506 = vsel %vm249, %v1502, 0.0
    %1507 = vadd.xlane.f32.xlu0 %v1506
    %v1508 = vpop.xlane.xlu0 %1507
    %v1509 = vmul.f32 %v1505, %v256
    %v1510 = vmul.f32 %v1508, %v256
    %v1511 = vadd.f32 %v1509, 1e-12
    %v1512 = vadd.f32 %v1510, 1e-12
    %v1513 = vrsqrt.pop %v1511
    %v1514 = vrsqrt.pop %v1512
    %v1515 = vmul.f32 %v1499, %v1513
    %v1516 = vmul.f32 %v1500, %v1514
    %v1518 = vlaneseq
    %v1519 = vshrl.u32 %v1518, 7
    %v1520 = vsub.s32 0, %v1519
    %v1521 = vrot.slane %v1489, %v1520
    %v1523 = vmul.f32 %v1515, %v1521
    %v1524 = vmul.f32 %v1516, %v1521
    %v1526 = vlaneseq
    %v1527 = vshrl.u32 %v1526, 7
    %v1528 = vsub.s32 0, %v1527
    %v1529 = vrot.slane %v1490, %v1528
    %v1531 = vadd.f32 %v1523, %v1529
    %v1532 = vadd.f32 %v1524, %v1529
    %v1533 = vpack.c.bf16 %v1532, %v1531
    %v1534 = vld [vmem:[%s14] sm:$0xf]
    %v1535 = vld [vmem:[%s14 + $0x4] sm:$0xf]
    %v1536 = vld [vmem:[%s14 + $0x8] sm:$0xf]
    %v1537 = vld [vmem:[%s14 + $0xc] sm:$0xf]
    %v1538 = vld [vmem:[%s15] sm:$0x1]
    %v1540 = vlaneseq
    %v1541 = vshrl.u32 %v1540, 7
    %v1542 = vsub.s32 0, %v1541
    %v1543 = vrot.slane %v1538, %v1542
    %v1549 = vunpack.c.l.b16 %v1534
    %v1550 = vunpack.c.l.b16 %v1535
    %v1551 = vunpack.c.l.b16 %v1536
    %v1552 = vunpack.c.l.b16 %v1537
    %v1553 = vpack.c.b16 %v1550, %v1549
    %v1554 = vpack.c.b16 %v1552, %v1551
    %v1558 = vsel %vm249, %v1533, 0
    %1560 = vmatprep.subr.bf16.mxu0 0
    %1561 = vmatpush1.bf16.msra.mxu0 %v1553
    %1562 = vmatprep.subr.bf16.mxu0 0
    %1563 = vmatpush1.bf16.msra.mxu0 %v1554
    %1564 = vmatprep.subr.bf16.mxu0 0
    %1565 = vmatpush1.bf16.msra.mxu0 0
    %1566 = vmatprep.subr.bf16.mxu0 0
    %1567 = vmatpush1.bf16.msra.mxu0 0
    %1568 = vmatprep.subr.bf16.mxu0 0
    %1569 = vmatpush1.bf16.msra.mxu0 0
    %1570 = vmatprep.subr.bf16.mxu0 0
    %1571 = vmatpush1.bf16.msra.mxu0 0
    %1572 = vmatprep.subr.bf16.mxu0 0
    %1573 = vmatpush1.bf16.msra.mxu0 0
    %1574 = vmatprep.subr.bf16.mxu0 0
    %1575 = vmatpush1.bf16.msra.mxu0 0
    %1576 = vmatprep.subr.bf16.mxu0 0
    %1577 = vmatpush1.bf16.msra.mxu0 0
    %1578 = vmatprep.subr.bf16.mxu0 0
    %1579 = vmatpush1.bf16.msra.mxu0 0
    %1580 = vmatprep.subr.bf16.mxu0 0
    %1581 = vmatpush1.bf16.msra.mxu0 0
    %1582 = vmatprep.subr.bf16.mxu0 0
    %1583 = vmatpush1.bf16.msra.mxu0 0
    %1584 = vmatprep.subr.bf16.mxu0 0
    %1585 = vmatpush1.bf16.msra.mxu0 0
    %1586 = vmatprep.subr.bf16.mxu0 0
    %1587 = vmatpush1.bf16.msra.mxu0 0
    %1588 = vmatprep.subr.bf16.mxu0 0
    %1589 = vmatpush1.bf16.msra.mxu0 0
    %1590 = vmatprep.subr.bf16.mxu0 0
    %1591 = vmatpush1.bf16.msra.mxu0 0
    %1592 = vmatprep.mubr.bf16.mxu0 0
    %1593 = vmatmul.mubr.bf16.gmra.mrb[0].mxu0 %v1558
    %v1594 = vpop.f32.mrb[0].mxu0
    %v1595 = vadd.f32 %v1543, %v1594
    %v1596 = vpop.f32.mrb[0].mxu0
    %v1597 = vpop.f32.mrb[0].mxu0
    %v1598 = vadd.f32 %v1543, %v1597
    %v1599 = vpop.f32.mrb[0].mxu0
    %1600 = vdwg.mxu0
    %v1601 = vmul.f32 %v1595, 0.5
    %v1602 = vmul.f32 %v1598, 0.5
    %v1603 = vmul.f32 %v1595, 0.044715
    %v1604 = vmul.f32 %v1598, 0.044715
    %v1605 = vmul.f32 %v1603, %v1595
    %v1606 = vmul.f32 %v1604, %v1598
    %v1607 = vmul.f32 %v1605, %v1595
    %v1608 = vmul.f32 %v1606, %v1598
    %v1609 = vadd.f32 %v1595, %v1607
    %v1610 = vadd.f32 %v1598, %v1608
    %v1611 = vmul.f32 %v1609, 0.7978846
    %v1612 = vmul.f32 %v1610, 0.7978846
    %v1613 = vtanh.pop %v1611
    %v1614 = vtanh.pop %v1612
    %v1615 = vadd.f32 %v1613, 1.0
    %v1616 = vadd.f32 %v1614, 1.0
    %v1617 = vmul.f32 %v1601, %v1615
    %v1618 = vmul.f32 %v1602, %v1616
    %v1619 = vpack.c.bf16 %v1618, %v1617
    %v1620 = vld [vmem:[%s16] sm:$0xf]
    %v1621 = vld [vmem:[%s16 + $0x4] sm:$0xf]
    %v1622 = vld [vmem:[%s16 + $0x8] sm:$0xf]
    %v1623 = vld [vmem:[%s16 + $0xc] sm:$0xf]
    %v1624 = vld [vmem:[%s16 + $0x10] sm:$0xf]
    %v1625 = vld [vmem:[%s16 + $0x14] sm:$0xf]
    %v1626 = vld [vmem:[%s16 + $0x18] sm:$0xf]
    %v1627 = vld [vmem:[%s16 + $0x1c] sm:$0xf]
    %v1628 = vld [vmem:[%s16 + $0x20] sm:$0xf]
    %v1629 = vld [vmem:[%s16 + $0x24] sm:$0xf]
    %v1630 = vld [vmem:[%s16 + $0x28] sm:$0xf]
    %v1631 = vld [vmem:[%s16 + $0x2c] sm:$0xf]
    %v1632 = vld [vmem:[%s16 + $0x30] sm:$0xf]
    %v1633 = vld [vmem:[%s16 + $0x34] sm:$0xf]
    %v1634 = vld [vmem:[%s16 + $0x38] sm:$0xf]
    %v1635 = vld [vmem:[%s16 + $0x3c] sm:$0xf]
    %v1636 = vld [vmem:[%s17] sm:$0x1]
    %v1638 = vlaneseq
    %v1639 = vshrl.u32 %v1638, 7
    %v1640 = vsub.s32 0, %v1639
    %v1641 = vrot.slane %v1636, %v1640
    %v1659 = vunpack.c.l.b16 %v1620
    %v1660 = vunpack.c.l.b16 %v1621
    %v1661 = vunpack.c.l.b16 %v1622
    %v1662 = vunpack.c.l.b16 %v1623
    %v1663 = vunpack.c.l.b16 %v1624
    %v1664 = vunpack.c.l.b16 %v1625
    %v1665 = vunpack.c.l.b16 %v1626
    %v1666 = vunpack.c.l.b16 %v1627
    %v1667 = vunpack.c.l.b16 %v1628
    %v1668 = vunpack.c.l.b16 %v1629
    %v1669 = vunpack.c.l.b16 %v1630
    %v1670 = vunpack.c.l.b16 %v1631
    %v1671 = vunpack.c.l.b16 %v1632
    %v1672 = vunpack.c.l.b16 %v1633
    %v1673 = vunpack.c.l.b16 %v1634
    %v1674 = vunpack.c.l.b16 %v1635
    %v1675 = vpack.c.b16 %v1660, %v1659
    %v1676 = vpack.c.b16 %v1662, %v1661
    %v1677 = vpack.c.b16 %v1664, %v1663
    %v1678 = vpack.c.b16 %v1666, %v1665
    %v1679 = vpack.c.b16 %v1668, %v1667
    %v1680 = vpack.c.b16 %v1670, %v1669
    %v1681 = vpack.c.b16 %v1672, %v1671
    %v1682 = vpack.c.b16 %v1674, %v1673
    %1691 = vmatprep.subr.bf16.mxu0 0
    %1692 = vmatpush1.bf16.msra.mxu0 %v1675
    %1693 = vmatprep.subr.bf16.mxu0 0
    %1694 = vmatpush1.bf16.msra.mxu0 %v1676
    %1695 = vmatprep.subr.bf16.mxu0 0
    %1696 = vmatpush1.bf16.msra.mxu0 %v1677
    %1697 = vmatprep.subr.bf16.mxu0 0
    %1698 = vmatpush1.bf16.msra.mxu0 %v1678
    %1699 = vmatprep.subr.bf16.mxu0 0
    %1700 = vmatpush1.bf16.msra.mxu0 %v1679
    %1701 = vmatprep.subr.bf16.mxu0 0
    %1702 = vmatpush1.bf16.msra.mxu0 %v1680
    %1703 = vmatprep.subr.bf16.mxu0 0
    %1704 = vmatpush1.bf16.msra.mxu0 %v1681
    %1705 = vmatprep.subr.bf16.mxu0 0
    %1706 = vmatpush1.bf16.msra.mxu0 %v1682
    %1707 = vmatprep.subr.bf16.mxu0 0
    %1708 = vmatpush1.bf16.msra.mxu0 0
    %1709 = vmatprep.subr.bf16.mxu0 0
    %1710 = vmatpush1.bf16.msra.mxu0 0
    %1711 = vmatprep.subr.bf16.mxu0 0
    %1712 = vmatpush1.bf16.msra.mxu0 0
    %1713 = vmatprep.subr.bf16.mxu0 0
    %1714 = vmatpush1.bf16.msra.mxu0 0
    %1715 = vmatprep.subr.bf16.mxu0 0
    %1716 = vmatpush1.bf16.msra.mxu0 0
    %1717 = vmatprep.subr.bf16.mxu0 0
    %1718 = vmatpush1.bf16.msra.mxu0 0
    %1719 = vmatprep.subr.bf16.mxu0 0
    %1720 = vmatpush1.bf16.msra.mxu0 0
    %1721 = vmatprep.subr.bf16.mxu0 0
    %1722 = vmatpush1.bf16.msra.mxu0 0
    %1723 = vmatprep.mubr.bf16.mxu0 0
    %1724 = vmatmul.mubr.bf16.gmra.mrb[0].mxu0 %v1619
    %v1725 = vpop.f32.mrb[0].mxu0
    %v1726 = vadd.f32 %v1641, %v1725
    %v1727 = vpop.f32.mrb[0].mxu0
    %v1728 = vpop.f32.mrb[0].mxu0
    %v1729 = vadd.f32 %v1641, %v1728
    %v1730 = vpop.f32.mrb[0].mxu0
    %1731 = vdwg.mxu0
    %v1732 = vadd.f32 %v1531, %v1726
    %v1733 = vadd.f32 %v1532, %v1729
    %v1734 = vld [vmem:[%s18] sm:$0x1]
    %v1735 = vld [vmem:[%s19] sm:$0x1]
    %v1736 = vsel %vm249, %v1732, 0.0
    %1737 = vadd.xlane.f32.xlu0 %v1736
    %v1738 = vpop.xlane.xlu0 %1737
    %v1739 = vsel %vm249, %v1733, 0.0
    %1740 = vadd.xlane.f32.xlu0 %v1739
    %v1741 = vpop.xlane.xlu0 %1740
    %v1742 = vmul.f32 %v1738, %v256
    %v1743 = vmul.f32 %v1741, %v256
    %v1744 = vsub.f32 %v1732, %v1742
    %v1745 = vsub.f32 %v1733, %v1743
    %v1746 = vmul.f32 %v1744, %v1744
    %v1747 = vmul.f32 %v1745, %v1745
    %v1748 = vsel %vm249, %v1746, 0.0
    %1749 = vadd.xlane.f32.xlu0 %v1748
    %v1750 = vpop.xlane.xlu0 %1749
    %v1751 = vsel %vm249, %v1747, 0.0
    %1752 = vadd.xlane.f32.xlu0 %v1751
    %v1753 = vpop.xlane.xlu0 %1752
    %v1754 = vmul.f32 %v1750, %v256
    %v1755 = vmul.f32 %v1753, %v256
    %v1756 = vadd.f32 %v1754, 1e-12
    %v1757 = vadd.f32 %v1755, 1e-12
    %v1758 = vrsqrt.pop %v1756
    %v1759 = vrsqrt.pop %v1757
    %v1760 = vmul.f32 %v1744, %v1758
    %v1761 = vmul.f32 %v1745, %v1759
    %v1763 = vlaneseq
    %v1764 = vshrl.u32 %v1763, 7
    %v1765 = vsub.s32 0, %v1764
    %v1766 = vrot.slane %v1734, %v1765
    %v1768 = vmul.f32 %v1760, %v1766
    %v1769 = vmul.f32 %v1761, %v1766
    %v1771 = vlaneseq
    %v1772 = vshrl.u32 %v1771, 7
    %v1773 = vsub.s32 0, %v1772
    %v1774 = vrot.slane %v1735, %v1773
    %v1776 = vadd.f32 %v1768, %v1774
    %v1777 = vadd.f32 %v1769, %v1774
    %v1778 = vpack.c.bf16 %v1777, %v1776
    %s1779 = scalar_lea.vmem %s8, 16
    %v1780 = vld [vmem:[%s1779] sm:$0xf]
    %v1781 = vld [vmem:[%s1779 + $0x4] sm:$0xf]
    %v1782 = vld [vmem:[%s1779 + $0x8] sm:$0xf]
    %v1783 = vld [vmem:[%s1779 + $0xc] sm:$0xf]
    %s1784 = scalar_lea.vmem %s9, 1
    %v1785 = vld [vmem:[%s1784] sm:$0x1]
    %v1787 = vlaneseq
    %v1788 = vshrl.u32 %v1787, 7
    %v1789 = vsub.s32 0, %v1788
    %v1790 = vrot.slane %v1785, %v1789
    %v1796 = vunpack.c.l.b16 %v1780
    %v1797 = vunpack.c.l.b16 %v1781
    %v1798 = vunpack.c.l.b16 %v1782
    %v1799 = vunpack.c.l.b16 %v1783
    %v1800 = vpack.c.b16 %v1797, %v1796
    %v1801 = vpack.c.b16 %v1799, %v1798
    %v1805 = vsel %vm249, %v1778, 0
    %1807 = vmatprep.subr.bf16.mxu0 0
    %1808 = vmatpush1.bf16.msra.mxu0 %v1800
    %1809 = vmatprep.subr.bf16.mxu0 0
    %1810 = vmatpush1.bf16.msra.mxu0 %v1801
    %1811 = vmatprep.subr.bf16.mxu0 0
    %1812 = vmatpush1.bf16.msra.mxu0 0
    %1813 = vmatprep.subr.bf16.mxu0 0
    %1814 = vmatpush1.bf16.msra.mxu0 0
    %1815 = vmatprep.subr.bf16.mxu0 0
    %1816 = vmatpush1.bf16.msra.mxu0 0
    %1817 = vmatprep.subr.bf16.mxu0 0
    %1818 = vmatpush1.bf16.msra.mxu0 0
    %1819 = vmatprep.subr.bf16.mxu0 0
    %1820 = vmatpush1.bf16.msra.mxu0 0
    %1821 = vmatprep.subr.bf16.mxu0 0
    %1822 = vmatpush1.bf16.msra.mxu0 0
    %1823 = vmatprep.subr.bf16.mxu0 0
    %1824 = vmatpush1.bf16.msra.mxu0 0
    %1825 = vmatprep.subr.bf16.mxu0 0
    %1826 = vmatpush1.bf16.msra.mxu0 0
    %1827 = vmatprep.subr.bf16.mxu0 0
    %1828 = vmatpush1.bf16.msra.mxu0 0
    %1829 = vmatprep.subr.bf16.mxu0 0
    %1830 = vmatpush1.bf16.msra.mxu0 0
    %1831 = vmatprep.subr.bf16.mxu0 0
    %1832 = vmatpush1.bf16.msra.mxu0 0
    %1833 = vmatprep.subr.bf16.mxu0 0
    %1834 = vmatpush1.bf16.msra.mxu0 0
    %1835 = vmatprep.subr.bf16.mxu0 0
    %1836 = vmatpush1.bf16.msra.mxu0 0
    %1837 = vmatprep.subr.bf16.mxu0 0
    %1838 = vmatpush1.bf16.msra.mxu0 0
    %1839 = vmatprep.mubr.bf16.mxu0 0
    %1840 = vmatmul.mubr.bf16.gmra.mrb[0].mxu0 %v1805
    %v1841 = vpop.f32.mrb[0].mxu0
    %v1842 = vadd.f32 %v1790, %v1841
    %v1843 = vpop.f32.mrb[0].mxu0
    %v1844 = vpop.f32.mrb[0].mxu0
    %v1845 = vadd.f32 %v1790, %v1844
    %v1846 = vpop.f32.mrb[0].mxu0
    %1847 = vdwg.mxu0
    %v1848 = vpack.c.bf16 %v1842, %v1842
    %v1849 = vpack.c.bf16 %v1845, %v1845
    %s1850 = scalar_lea.vmem %s10, 16
    %v1851 = vld [vmem:[%s1850] sm:$0xf]
    %v1852 = vld [vmem:[%s1850 + $0x4] sm:$0xf]
    %v1853 = vld [vmem:[%s1850 + $0x8] sm:$0xf]
    %v1854 = vld [vmem:[%s1850 + $0xc] sm:$0xf]
    %1856 = vrot.lane.b32.xlu0 %v1848, 96
    %v1857 = vpop.permute.xlu0 %1856
    %v1859 = vsel %vm406, %v1848, 0
    %v1862 = vsel %vm406, %v1857, 0
    %1864 = vmatprep.subr.bf16.mxu0 0
    %1865 = vmatpush1.bf16.xpose.msra.mxu0 %v1862
    %1866 = vmatprep.subr.bf16.mxu0 0
    %1867 = vmatpush1.bf16.xpose.msra.mxu0 0
    %1868 = vmatprep.subr.bf16.mxu0 0
    %1869 = vmatpush1.bf16.xpose.msra.mxu0 0
    %1870 = vmatprep.subr.bf16.mxu0 0
    %1871 = vmatpush1.bf16.xpose.msra.mxu0 0
    %1872 = vmatprep.subr.bf16.mxu0 0
    %1873 = vmatpush1.bf16.xpose.msra.mxu0 0
    %1874 = vmatprep.subr.bf16.mxu0 0
    %1875 = vmatpush1.bf16.xpose.msra.mxu0 0
    %1876 = vmatprep.subr.bf16.mxu0 0
    %1877 = vmatpush1.bf16.xpose.msra.mxu0 0
    %1878 = vmatprep.subr.bf16.mxu0 0
    %1879 = vmatpush1.bf16.xpose.msra.mxu0 0
    %1880 = vmatprep.subr.bf16.mxu0 0
    %1881 = vmatpush1.bf16.xpose.msra.mxu0 0
    %1882 = vmatprep.subr.bf16.mxu0 0
    %1883 = vmatpush1.bf16.xpose.msra.mxu0 0
    %1884 = vmatprep.subr.bf16.mxu0 0
    %1885 = vmatpush1.bf16.xpose.msra.mxu0 0
    %1886 = vmatprep.subr.bf16.mxu0 0
    %1887 = vmatpush1.bf16.xpose.msra.mxu0 0
    %1888 = vmatprep.subr.bf16.mxu0 0
    %1889 = vmatpush1.bf16.xpose.msra.mxu0 0
    %1890 = vmatprep.subr.bf16.mxu0 0
    %1891 = vmatpush1.bf16.xpose.msra.mxu0 0
    %1892 = vmatprep.subr.bf16.mxu0 0
    %1893 = vmatpush1.bf16.xpose.msra.mxu0 0
    %1894 = vmatprep.subr.bf16.mxu0 0
    %1895 = vmatpush1.bf16.xpose.msra.mxu0 0
    %1896 = vmatprep.mubr.bf16.mxu0 0
    %1897 = vmatmul.mubr.bf16.gmra.mrb[0].mxu0 %v1859
    %v1898 = vpop.f32.mrb[0].mxu0
    %v1899 = vadd.f32 %v322, %v1898
    %v1900 = vpop.f32.mrb[0].mxu0
    %v1901 = vpop.f32.mrb[0].mxu0
    %v1902 = vpop.f32.mrb[0].mxu0
    %1903 = vdwg.mxu0
    %1905 = vrot.lane.b32.xlu0 %v1849, 96
    %v1906 = vpop.permute.xlu0 %1905
    %v1908 = vsel %vm406, %v1849, 0
    %v1911 = vsel %vm406, %v1906, 0
    %1913 = vmatprep.subr.bf16.mxu0 0
    %1914 = vmatpush1.bf16.xpose.msra.mxu0 %v1911
    %1915 = vmatprep.subr.bf16.mxu0 0
    %1916 = vmatpush1.bf16.xpose.msra.mxu0 0
    %1917 = vmatprep.subr.bf16.mxu0 0
    %1918 = vmatpush1.bf16.xpose.msra.mxu0 0
    %1919 = vmatprep.subr.bf16.mxu0 0
    %1920 = vmatpush1.bf16.xpose.msra.mxu0 0
    %1921 = vmatprep.subr.bf16.mxu0 0
    %1922 = vmatpush1.bf16.xpose.msra.mxu0 0
    %1923 = vmatprep.subr.bf16.mxu0 0
    %1924 = vmatpush1.bf16.xpose.msra.mxu0 0
    %1925 = vmatprep.subr.bf16.mxu0 0
    %1926 = vmatpush1.bf16.xpose.msra.mxu0 0
    %1927 = vmatprep.subr.bf16.mxu0 0
    %1928 = vmatpush1.bf16.xpose.msra.mxu0 0
    %1929 = vmatprep.subr.bf16.mxu0 0
    %1930 = vmatpush1.bf16.xpose.msra.mxu0 0
    %1931 = vmatprep.subr.bf16.mxu0 0
    %1932 = vmatpush1.bf16.xpose.msra.mxu0 0
    %1933 = vmatprep.subr.bf16.mxu0 0
    %1934 = vmatpush1.bf16.xpose.msra.mxu0 0
    %1935 = vmatprep.subr.bf16.mxu0 0
    %1936 = vmatpush1.bf16.xpose.msra.mxu0 0
    %1937 = vmatprep.subr.bf16.mxu0 0
    %1938 = vmatpush1.bf16.xpose.msra.mxu0 0
    %1939 = vmatprep.subr.bf16.mxu0 0
    %1940 = vmatpush1.bf16.xpose.msra.mxu0 0
    %1941 = vmatprep.subr.bf16.mxu0 0
    %1942 = vmatpush1.bf16.xpose.msra.mxu0 0
    %1943 = vmatprep.subr.bf16.mxu0 0
    %1944 = vmatpush1.bf16.xpose.msra.mxu0 0
    %1945 = vmatprep.mubr.bf16.mxu0 0
    %1946 = vmatmul.mubr.bf16.gmra.mrb[0].mxu0 %v1908
    %v1947 = vpop.f32.mrb[0].mxu0
    %v1948 = vadd.f32 %v326, %v1947
    %v1949 = vpop.f32.mrb[0].mxu0
    %v1950 = vpop.f32.mrb[0].mxu0
    %v1951 = vpop.f32.mrb[0].mxu0
    %1952 = vdwg.mxu0
    %v1953 = vsel %vm406, %v1899, -inf
    %1954 = vmax.xlane.f32.xlu0 %v1953
    %v1955 = vpop.xlane.xlu0 %1954
    %v1956 = vsel %vm406, %v1948, -inf
    %1957 = vmax.xlane.f32.xlu0 %v1956
    %v1958 = vpop.xlane.xlu0 %1957
    %v1959 = vsub.f32 %v1899, %v1955
    %v1960 = vsub.f32 %v1948, %v1958
    %v1961 = vmul.f32 %v1959, 1.442695
    %v1962 = vpow.pop %v1961
    %v1963 = vmul.f32 %v1960, 1.442695
    %v1964 = vpow.pop %v1963
    %v1965 = vsel %vm406, %v1962, 0.0
    %1966 = vadd.xlane.f32.xlu0 %v1965
    %v1967 = vpop.xlane.xlu0 %1966
    %v1968 = vsel %vm406, %v1964, 0.0
    %1969 = vadd.xlane.f32.xlu0 %v1968
    %v1970 = vpop.xlane.xlu0 %1969
    %v1971 = vrcp.pop %v1967
    %v1972 = vrcp.pop %v1970
    %v1973 = vmul.f32 %v1962, %v1971
    %v1974 = vmul.f32 %v1964, %v1972
    %v1975 = vpack.c.bf16 %v1973, %v1973
    %v1976 = vpack.c.bf16 %v1974, %v1974
    %1977 = vrot.lane.b32.xlu0 %v1848, 64
    %v1978 = vpop.permute.xlu0 %1977
    %v1980 = vsel %vm406, %v1975, 0
    %v1983 = vsel %vm165, %v1978, 0
    %1985 = vmatprep.subr.bf16.mxu0 0
    %1986 = vmatpush1.bf16.msra.mxu0 %v1983
    %1987 = vmatprep.subr.bf16.mxu0 0
    %1988 = vmatpush1.bf16.msra.mxu0 0
    %1989 = vmatprep.subr.bf16.mxu0 0
    %1990 = vmatpush1.bf16.msra.mxu0 0
    %1991 = vmatprep.subr.bf16.mxu0 0
    %1992 = vmatpush1.bf16.msra.mxu0 0
    %1993 = vmatprep.subr.bf16.mxu0 0
    %1994 = vmatpush1.bf16.msra.mxu0 0
    %1995 = vmatprep.subr.bf16.mxu0 0
    %1996 = vmatpush1.bf16.msra.mxu0 0
    %1997 = vmatprep.subr.bf16.mxu0 0
    %1998 = vmatpush1.bf16.msra.mxu0 0
    %1999 = vmatprep.subr.bf16.mxu0 0
    %2000 = vmatpush1.bf16.msra.mxu0 0
    %2001 = vmatprep.subr.bf16.mxu0 0
    %2002 = vmatpush1.bf16.msra.mxu0 0
    %2003 = vmatprep.subr.bf16.mxu0 0
    %2004 = vmatpush1.bf16.msra.mxu0 0
    %2005 = vmatprep.subr.bf16.mxu0 0
    %2006 = vmatpush1.bf16.msra.mxu0 0
    %2007 = vmatprep.subr.bf16.mxu0 0
    %2008 = vmatpush1.bf16.msra.mxu0 0
    %2009 = vmatprep.subr.bf16.mxu0 0
    %2010 = vmatpush1.bf16.msra.mxu0 0
    %2011 = vmatprep.subr.bf16.mxu0 0
    %2012 = vmatpush1.bf16.msra.mxu0 0
    %2013 = vmatprep.subr.bf16.mxu0 0
    %2014 = vmatpush1.bf16.msra.mxu0 0
    %2015 = vmatprep.subr.bf16.mxu0 0
    %2016 = vmatpush1.bf16.msra.mxu0 0
    %2017 = vmatprep.mubr.bf16.mxu0 0
    %2018 = vmatmul.mubr.bf16.gmra.mrb[0].mxu0 %v1980
    %v2019 = vpop.f32.mrb[0].mxu0
    %v2020 = vadd.f32 0.0, %v2019
    %v2021 = vpop.f32.mrb[0].mxu0
    %v2022 = vpop.f32.mrb[0].mxu0
    %v2023 = vpop.f32.mrb[0].mxu0
    %2024 = vdwg.mxu0
    %2025 = vrot.lane.b32.xlu0 %v1849, 64
    %v2026 = vpop.permute.xlu0 %2025
    %v2028 = vsel %vm406, %v1976, 0
    %v2031 = vsel %vm165, %v2026, 0
    %2033 = vmatprep.subr.bf16.mxu0 0
    %2034 = vmatpush1.bf16.msra.mxu0 %v2031
    %2035 = vmatprep.subr.bf16.mxu0 0
    %2036 = vmatpush1.bf16.msra.mxu0 0
    %2037 = vmatprep.subr.bf16.mxu0 0
    %2038 = vmatpush1.bf16.msra.mxu0 0
    %2039 = vmatprep.subr.bf16.mxu0 0
    %2040 = vmatpush1.bf16.msra.mxu0 0
    %2041 = vmatprep.subr.bf16.mxu0 0
    %2042 = vmatpush1.bf16.msra.mxu0 0
    %2043 = vmatprep.subr.bf16.mxu0 0
    %2044 = vmatpush1.bf16.msra.mxu0 0
    %2045 = vmatprep.subr.bf16.mxu0 0
    %2046 = vmatpush1.bf16.msra.mxu0 0
    %2047 = vmatprep.subr.bf16.mxu0 0
    %2048 = vmatpush1.bf16.msra.mxu0 0
    %2049 = vmatprep.subr.bf16.mxu0 0
    %2050 = vmatpush1.bf16.msra.mxu0 0
    %2051 = vmatprep.subr.bf16.mxu0 0
    %2052 = vmatpush1.bf16.msra.mxu0 0
    %2053 = vmatprep.subr.bf16.mxu0 0
    %2054 = vmatpush1.bf16.msra.mxu0 0
    %2055 = vmatprep.subr.bf16.mxu0 0
    %2056 = vmatpush1.bf16.msra.mxu0 0
    %2057 = vmatprep.subr.bf16.mxu0 0
    %2058 = vmatpush1.bf16.msra.mxu0 0
    %2059 = vmatprep.subr.bf16.mxu0 0
    %2060 = vmatpush1.bf16.msra.mxu0 0
    %2061 = vmatprep.subr.bf16.mxu0 0
    %2062 = vmatpush1.bf16.msra.mxu0 0
    %2063 = vmatprep.subr.bf16.mxu0 0
    %2064 = vmatpush1.bf16.msra.mxu0 0
    %2065 = vmatprep.mubr.bf16.mxu0 0
    %2066 = vmatmul.mubr.bf16.gmra.mrb[0].mxu0 %v2028
    %v2067 = vpop.f32.mrb[0].mxu0
    %v2068 = vadd.f32 0.0, %v2067
    %v2069 = vpop.f32.mrb[0].mxu0
    %v2070 = vpop.f32.mrb[0].mxu0
    %v2071 = vpop.f32.mrb[0].mxu0
    %2072 = vdwg.mxu0
    %v2073 = vpack.c.bf16 %v2068, %v2020
    %2074 = vrot.lane.b32.xlu0 %v1848, 120
    %v2075 = vpop.permute.xlu0 %2074
    %2076 = vrot.lane.b32.xlu0 %v1848, 88
    %v2077 = vpop.permute.xlu0 %2076
    %v2079 = vsel %vm406, %v2075, 0
    %v2082 = vsel %vm406, %v2077, 0
    %2084 = vmatprep.subr.bf16.mxu0 0
    %2085 = vmatpush1.bf16.xpose.msra.mxu0 %v2082
    %2086 = vmatprep.subr.bf16.mxu0 0
    %2087 = vmatpush1.bf16.xpose.msra.mxu0 0
    %2088 = vmatprep.subr.bf16.mxu0 0
    %2089 = vmatpush1.bf16.xpose.msra.mxu0 0
    %2090 = vmatprep.subr.bf16.mxu0 0
    %2091 = vmatpush1.bf16.xpose.msra.mxu0 0
    %2092 = vmatprep.subr.bf16.mxu0 0
    %2093 = vmatpush1.bf16.xpose.msra.mxu0 0
    %2094 = vmatprep.subr.bf16.mxu0 0
    %2095 = vmatpush1.bf16.xpose.msra.mxu0 0
    %2096 = vmatprep.subr.bf16.mxu0 0
    %2097 = vmatpush1.bf16.xpose.msra.mxu0 0
    %2098 = vmatprep.subr.bf16.mxu0 0
    %2099 = vmatpush1.bf16.xpose.msra.mxu0 0
    %2100 = vmatprep.subr.bf16.mxu0 0
    %2101 = vmatpush1.bf16.xpose.msra.mxu0 0
    %2102 = vmatprep.subr.bf16.mxu0 0
    %2103 = vmatpush1.bf16.xpose.msra.mxu0 0
    %2104 = vmatprep.subr.bf16.mxu0 0
    %2105 = vmatpush1.bf16.xpose.msra.mxu0 0
    %2106 = vmatprep.subr.bf16.mxu0 0
    %2107 = vmatpush1.bf16.xpose.msra.mxu0 0
    %2108 = vmatprep.subr.bf16.mxu0 0
    %2109 = vmatpush1.bf16.xpose.msra.mxu0 0
    %2110 = vmatprep.subr.bf16.mxu0 0
    %2111 = vmatpush1.bf16.xpose.msra.mxu0 0
    %2112 = vmatprep.subr.bf16.mxu0 0
    %2113 = vmatpush1.bf16.xpose.msra.mxu0 0
    %2114 = vmatprep.subr.bf16.mxu0 0
    %2115 = vmatpush1.bf16.xpose.msra.mxu0 0
    %2116 = vmatprep.mubr.bf16.mxu0 0
    %2117 = vmatmul.mubr.bf16.gmra.mrb[0].mxu0 %v2079
    %v2118 = vpop.f32.mrb[0].mxu0
    %v2119 = vadd.f32 %v322, %v2118
    %v2120 = vpop.f32.mrb[0].mxu0
    %v2121 = vpop.f32.mrb[0].mxu0
    %v2122 = vpop.f32.mrb[0].mxu0
    %2123 = vdwg.mxu0
    %2124 = vrot.lane.b32.xlu0 %v1849, 120
    %v2125 = vpop.permute.xlu0 %2124
    %2126 = vrot.lane.b32.xlu0 %v1849, 88
    %v2127 = vpop.permute.xlu0 %2126
    %v2129 = vsel %vm406, %v2125, 0
    %v2132 = vsel %vm406, %v2127, 0
    %2134 = vmatprep.subr.bf16.mxu0 0
    %2135 = vmatpush1.bf16.xpose.msra.mxu0 %v2132
    %2136 = vmatprep.subr.bf16.mxu0 0
    %2137 = vmatpush1.bf16.xpose.msra.mxu0 0
    %2138 = vmatprep.subr.bf16.mxu0 0
    %2139 = vmatpush1.bf16.xpose.msra.mxu0 0
    %2140 = vmatprep.subr.bf16.mxu0 0
    %2141 = vmatpush1.bf16.xpose.msra.mxu0 0
    %2142 = vmatprep.subr.bf16.mxu0 0
    %2143 = vmatpush1.bf16.xpose.msra.mxu0 0
    %2144 = vmatprep.subr.bf16.mxu0 0
    %2145 = vmatpush1.bf16.xpose.msra.mxu0 0
    %2146 = vmatprep.subr.bf16.mxu0 0
    %2147 = vmatpush1.bf16.xpose.msra.mxu0 0
    %2148 = vmatprep.subr.bf16.mxu0 0
    %2149 = vmatpush1.bf16.xpose.msra.mxu0 0
    %2150 = vmatprep.subr.bf16.mxu0 0
    %2151 = vmatpush1.bf16.xpose.msra.mxu0 0
    %2152 = vmatprep.subr.bf16.mxu0 0
    %2153 = vmatpush1.bf16.xpose.msra.mxu0 0
    %2154 = vmatprep.subr.bf16.mxu0 0
    %2155 = vmatpush1.bf16.xpose.msra.mxu0 0
    %2156 = vmatprep.subr.bf16.mxu0 0
    %2157 = vmatpush1.bf16.xpose.msra.mxu0 0
    %2158 = vmatprep.subr.bf16.mxu0 0
    %2159 = vmatpush1.bf16.xpose.msra.mxu0 0
    %2160 = vmatprep.subr.bf16.mxu0 0
    %2161 = vmatpush1.bf16.xpose.msra.mxu0 0
    %2162 = vmatprep.subr.bf16.mxu0 0
    %2163 = vmatpush1.bf16.xpose.msra.mxu0 0
    %2164 = vmatprep.subr.bf16.mxu0 0
    %2165 = vmatpush1.bf16.xpose.msra.mxu0 0
    %2166 = vmatprep.mubr.bf16.mxu0 0
    %2167 = vmatmul.mubr.bf16.gmra.mrb[0].mxu0 %v2129
    %v2168 = vpop.f32.mrb[0].mxu0
    %v2169 = vadd.f32 %v326, %v2168
    %v2170 = vpop.f32.mrb[0].mxu0
    %v2171 = vpop.f32.mrb[0].mxu0
    %v2172 = vpop.f32.mrb[0].mxu0
    %2173 = vdwg.mxu0
    %v2174 = vsel %vm406, %v2119, -inf
    %2175 = vmax.xlane.f32.xlu0 %v2174
    %v2176 = vpop.xlane.xlu0 %2175
    %v2177 = vsel %vm406, %v2169, -inf
    %2178 = vmax.xlane.f32.xlu0 %v2177
    %v2179 = vpop.xlane.xlu0 %2178
    %v2180 = vsub.f32 %v2119, %v2176
    %v2181 = vsub.f32 %v2169, %v2179
    %v2182 = vmul.f32 %v2180, 1.442695
    %v2183 = vpow.pop %v2182
    %v2184 = vmul.f32 %v2181, 1.442695
    %v2185 = vpow.pop %v2184
    %v2186 = vsel %vm406, %v2183, 0.0
    %2187 = vadd.xlane.f32.xlu0 %v2186
    %v2188 = vpop.xlane.xlu0 %2187
    %v2189 = vsel %vm406, %v2185, 0.0
    %2190 = vadd.xlane.f32.xlu0 %v2189
    %v2191 = vpop.xlane.xlu0 %2190
    %v2192 = vrcp.pop %v2188
    %v2193 = vrcp.pop %v2191
    %v2194 = vmul.f32 %v2183, %v2192
    %v2195 = vmul.f32 %v2185, %v2193
    %v2196 = vpack.c.bf16 %v2194, %v2194
    %v2197 = vpack.c.bf16 %v2195, %v2195
    %2198 = vrot.lane.b32.xlu0 %v1848, 56
    %v2199 = vpop.permute.xlu0 %2198
    %v2201 = vsel %vm406, %v2196, 0
    %v2204 = vsel %vm165, %v2199, 0
    %2206 = vmatprep.subr.bf16.mxu0 0
    %2207 = vmatpush1.bf16.msra.mxu0 %v2204
    %2208 = vmatprep.subr.bf16.mxu0 0
    %2209 = vmatpush1.bf16.msra.mxu0 0
    %2210 = vmatprep.subr.bf16.mxu0 0
    %2211 = vmatpush1.bf16.msra.mxu0 0
    %2212 = vmatprep.subr.bf16.mxu0 0
    %2213 = vmatpush1.bf16.msra.mxu0 0
    %2214 = vmatprep.subr.bf16.mxu0 0
    %2215 = vmatpush1.bf16.msra.mxu0 0
    %2216 = vmatprep.subr.bf16.mxu0 0
    %2217 = vmatpush1.bf16.msra.mxu0 0
    %2218 = vmatprep.subr.bf16.mxu0 0
    %2219 = vmatpush1.bf16.msra.mxu0 0
    %2220 = vmatprep.subr.bf16.mxu0 0
    %2221 = vmatpush1.bf16.msra.mxu0 0
    %2222 = vmatprep.subr.bf16.mxu0 0
    %2223 = vmatpush1.bf16.msra.mxu0 0
    %2224 = vmatprep.subr.bf16.mxu0 0
    %2225 = vmatpush1.bf16.msra.mxu0 0
    %2226 = vmatprep.subr.bf16.mxu0 0
    %2227 = vmatpush1.bf16.msra.mxu0 0
    %2228 = vmatprep.subr.bf16.mxu0 0
    %2229 = vmatpush1.bf16.msra.mxu0 0
    %2230 = vmatprep.subr.bf16.mxu0 0
    %2231 = vmatpush1.bf16.msra.mxu0 0
    %2232 = vmatprep.subr.bf16.mxu0 0
    %2233 = vmatpush1.bf16.msra.mxu0 0
    %2234 = vmatprep.subr.bf16.mxu0 0
    %2235 = vmatpush1.bf16.msra.mxu0 0
    %2236 = vmatprep.subr.bf16.mxu0 0
    %2237 = vmatpush1.bf16.msra.mxu0 0
    %2238 = vmatprep.mubr.bf16.mxu0 0
    %2239 = vmatmul.mubr.bf16.gmra.mrb[0].mxu0 %v2201
    %v2240 = vpop.f32.mrb[0].mxu0
    %v2241 = vadd.f32 0.0, %v2240
    %v2242 = vpop.f32.mrb[0].mxu0
    %v2243 = vpop.f32.mrb[0].mxu0
    %v2244 = vpop.f32.mrb[0].mxu0
    %2245 = vdwg.mxu0
    %2246 = vrot.lane.b32.xlu0 %v1849, 56
    %v2247 = vpop.permute.xlu0 %2246
    %v2249 = vsel %vm406, %v2197, 0
    %v2252 = vsel %vm165, %v2247, 0
    %2254 = vmatprep.subr.bf16.mxu0 0
    %2255 = vmatpush1.bf16.msra.mxu0 %v2252
    %2256 = vmatprep.subr.bf16.mxu0 0
    %2257 = vmatpush1.bf16.msra.mxu0 0
    %2258 = vmatprep.subr.bf16.mxu0 0
    %2259 = vmatpush1.bf16.msra.mxu0 0
    %2260 = vmatprep.subr.bf16.mxu0 0
    %2261 = vmatpush1.bf16.msra.mxu0 0
    %2262 = vmatprep.subr.bf16.mxu0 0
    %2263 = vmatpush1.bf16.msra.mxu0 0
    %2264 = vmatprep.subr.bf16.mxu0 0
    %2265 = vmatpush1.bf16.msra.mxu0 0
    %2266 = vmatprep.subr.bf16.mxu0 0
    %2267 = vmatpush1.bf16.msra.mxu0 0
    %2268 = vmatprep.subr.bf16.mxu0 0
    %2269 = vmatpush1.bf16.msra.mxu0 0
    %2270 = vmatprep.subr.bf16.mxu0 0
    %2271 = vmatpush1.bf16.msra.mxu0 0
    %2272 = vmatprep.subr.bf16.mxu0 0
    %2273 = vmatpush1.bf16.msra.mxu0 0
    %2274 = vmatprep.subr.bf16.mxu0 0
    %2275 = vmatpush1.bf16.msra.mxu0 0
    %2276 = vmatprep.subr.bf16.mxu0 0
    %2277 = vmatpush1.bf16.msra.mxu0 0
    %2278 = vmatprep.subr.bf16.mxu0 0
    %2279 = vmatpush1.bf16.msra.mxu0 0
    %2280 = vmatprep.subr.bf16.mxu0 0
    %2281 = vmatpush1.bf16.msra.mxu0 0
    %2282 = vmatprep.subr.bf16.mxu0 0
    %2283 = vmatpush1.bf16.msra.mxu0 0
    %2284 = vmatprep.subr.bf16.mxu0 0
    %2285 = vmatpush1.bf16.msra.mxu0 0
    %2286 = vmatprep.mubr.bf16.mxu0 0
    %2287 = vmatmul.mubr.bf16.gmra.mrb[0].mxu0 %v2249
    %v2288 = vpop.f32.mrb[0].mxu0
    %v2289 = vadd.f32 0.0, %v2288
    %v2290 = vpop.f32.mrb[0].mxu0
    %v2291 = vpop.f32.mrb[0].mxu0
    %v2292 = vpop.f32.mrb[0].mxu0
    %2293 = vdwg.mxu0
    %v2294 = vpack.c.bf16 %v2289, %v2241
    %v2296 = vsel %vm406, %v2294, 0
    %v2299 = vsel %vm165, %v1852, 0
    %2301 = vmatprep.subr.bf16.mxu0 0
    %2302 = vmatpush1.bf16.msra.mxu0 %v2299
    %2303 = vmatprep.subr.bf16.mxu0 0
    %2304 = vmatpush1.bf16.msra.mxu0 0
    %2305 = vmatprep.subr.bf16.mxu0 0
    %2306 = vmatpush1.bf16.msra.mxu0 0
    %2307 = vmatprep.subr.bf16.mxu0 0
    %2308 = vmatpush1.bf16.msra.mxu0 0
    %2309 = vmatprep.subr.bf16.mxu0 0
    %2310 = vmatpush1.bf16.msra.mxu0 0
    %2311 = vmatprep.subr.bf16.mxu0 0
    %2312 = vmatpush1.bf16.msra.mxu0 0
    %2313 = vmatprep.subr.bf16.mxu0 0
    %2314 = vmatpush1.bf16.msra.mxu0 0
    %2315 = vmatprep.subr.bf16.mxu0 0
    %2316 = vmatpush1.bf16.msra.mxu0 0
    %2317 = vmatprep.subr.bf16.mxu0 0
    %2318 = vmatpush1.bf16.msra.mxu0 0
    %2319 = vmatprep.subr.bf16.mxu0 0
    %2320 = vmatpush1.bf16.msra.mxu0 0
    %2321 = vmatprep.subr.bf16.mxu0 0
    %2322 = vmatpush1.bf16.msra.mxu0 0
    %2323 = vmatprep.subr.bf16.mxu0 0
    %2324 = vmatpush1.bf16.msra.mxu0 0
    %2325 = vmatprep.subr.bf16.mxu0 0
    %2326 = vmatpush1.bf16.msra.mxu0 0
    %2327 = vmatprep.subr.bf16.mxu0 0
    %2328 = vmatpush1.bf16.msra.mxu0 0
    %2329 = vmatprep.subr.bf16.mxu0 0
    %2330 = vmatpush1.bf16.msra.mxu0 0
    %2331 = vmatprep.subr.bf16.mxu0 0
    %2332 = vmatpush1.bf16.msra.mxu0 0
    %2333 = vmatprep.mubr.bf16.mxu0 0
    %2334 = vmatmul.mubr.bf16.gmra.mrb[0].mxu0 %v2296
    %v2335 = vpop.f32.mrb[0].mxu0
    %v2336 = vadd.f32 0.0, %v2335
    %v2337 = vpop.f32.mrb[0].mxu0
    %v2338 = vpop.f32.mrb[0].mxu0
    %v2339 = vadd.f32 0.0, %v2338
    %v2340 = vpop.f32.mrb[0].mxu0
    %2341 = vdwg.mxu0
    %v2343 = vsel %vm406, %v2073, 0
    %v2346 = vsel %vm165, %v1851, 0
    %2348 = vmatprep.subr.bf16.mxu0 0
    %2349 = vmatpush1.bf16.msra.mxu0 %v2346
    %2350 = vmatprep.subr.bf16.mxu0 0
    %2351 = vmatpush1.bf16.msra.mxu0 0
    %2352 = vmatprep.subr.bf16.mxu0 0
    %2353 = vmatpush1.bf16.msra.mxu0 0
    %2354 = vmatprep.subr.bf16.mxu0 0
    %2355 = vmatpush1.bf16.msra.mxu0 0
    %2356 = vmatprep.subr.bf16.mxu0 0
    %2357 = vmatpush1.bf16.msra.mxu0 0
    %2358 = vmatprep.subr.bf16.mxu0 0
    %2359 = vmatpush1.bf16.msra.mxu0 0
    %2360 = vmatprep.subr.bf16.mxu0 0
    %2361 = vmatpush1.bf16.msra.mxu0 0
    %2362 = vmatprep.subr.bf16.mxu0 0
    %2363 = vmatpush1.bf16.msra.mxu0 0
    %2364 = vmatprep.subr.bf16.mxu0 0
    %2365 = vmatpush1.bf16.msra.mxu0 0
    %2366 = vmatprep.subr.bf16.mxu0 0
    %2367 = vmatpush1.bf16.msra.mxu0 0
    %2368 = vmatprep.subr.bf16.mxu0 0
    %2369 = vmatpush1.bf16.msra.mxu0 0
    %2370 = vmatprep.subr.bf16.mxu0 0
    %2371 = vmatpush1.bf16.msra.mxu0 0
    %2372 = vmatprep.subr.bf16.mxu0 0
    %2373 = vmatpush1.bf16.msra.mxu0 0
    %2374 = vmatprep.subr.bf16.mxu0 0
    %2375 = vmatpush1.bf16.msra.mxu0 0
    %2376 = vmatprep.subr.bf16.mxu0 0
    %2377 = vmatpush1.bf16.msra.mxu0 0
    %2378 = vmatprep.subr.bf16.mxu0 0
    %2379 = vmatpush1.bf16.msra.mxu0 0
    %2380 = vmatprep.mubr.bf16.mxu0 0
    %2381 = vmatmul.mubr.bf16.gmra.mrb[0].mxu0 %v2343
    %v2382 = vpop.f32.mrb[0].mxu0
    %v2383 = vadd.f32 %v2336, %v2382
    %v2384 = vpop.f32.mrb[0].mxu0
    %v2385 = vpop.f32.mrb[0].mxu0
    %v2386 = vadd.f32 %v2339, %v2385
    %v2387 = vpop.f32.mrb[0].mxu0
    %2388 = vdwg.mxu0
    %2389 = vrot.lane.b32.xlu0 %v1848, 112
    %v2390 = vpop.permute.xlu0 %2389
    %2391 = vrot.lane.b32.xlu0 %v1848, 80
    %v2392 = vpop.permute.xlu0 %2391
    %v2394 = vsel %vm406, %v2390, 0
    %v2397 = vsel %vm406, %v2392, 0
    %2399 = vmatprep.subr.bf16.mxu0 0
    %2400 = vmatpush1.bf16.xpose.msra.mxu0 %v2397
    %2401 = vmatprep.subr.bf16.mxu0 0
    %2402 = vmatpush1.bf16.xpose.msra.mxu0 0
    %2403 = vmatprep.subr.bf16.mxu0 0
    %2404 = vmatpush1.bf16.xpose.msra.mxu0 0
    %2405 = vmatprep.subr.bf16.mxu0 0
    %2406 = vmatpush1.bf16.xpose.msra.mxu0 0
    %2407 = vmatprep.subr.bf16.mxu0 0
    %2408 = vmatpush1.bf16.xpose.msra.mxu0 0
    %2409 = vmatprep.subr.bf16.mxu0 0
    %2410 = vmatpush1.bf16.xpose.msra.mxu0 0
    %2411 = vmatprep.subr.bf16.mxu0 0
    %2412 = vmatpush1.bf16.xpose.msra.mxu0 0
    %2413 = vmatprep.subr.bf16.mxu0 0
    %2414 = vmatpush1.bf16.xpose.msra.mxu0 0
    %2415 = vmatprep.subr.bf16.mxu0 0
    %2416 = vmatpush1.bf16.xpose.msra.mxu0 0
    %2417 = vmatprep.subr.bf16.mxu0 0
    %2418 = vmatpush1.bf16.xpose.msra.mxu0 0
    %2419 = vmatprep.subr.bf16.mxu0 0
    %2420 = vmatpush1.bf16.xpose.msra.mxu0 0
    %2421 = vmatprep.subr.bf16.mxu0 0
    %2422 = vmatpush1.bf16.xpose.msra.mxu0 0
    %2423 = vmatprep.subr.bf16.mxu0 0
    %2424 = vmatpush1.bf16.xpose.msra.mxu0 0
    %2425 = vmatprep.subr.bf16.mxu0 0
    %2426 = vmatpush1.bf16.xpose.msra.mxu0 0
    %2427 = vmatprep.subr.bf16.mxu0 0
    %2428 = vmatpush1.bf16.xpose.msra.mxu0 0
    %2429 = vmatprep.subr.bf16.mxu0 0
    %2430 = vmatpush1.bf16.xpose.msra.mxu0 0
    %2431 = vmatprep.mubr.bf16.mxu0 0
    %2432 = vmatmul.mubr.bf16.gmra.mrb[0].mxu0 %v2394
    %v2433 = vpop.f32.mrb[0].mxu0
    %v2434 = vadd.f32 %v322, %v2433
    %v2435 = vpop.f32.mrb[0].mxu0
    %v2436 = vpop.f32.mrb[0].mxu0
    %v2437 = vpop.f32.mrb[0].mxu0
    %2438 = vdwg.mxu0
    %2439 = vrot.lane.b32.xlu0 %v1849, 112
    %v2440 = vpop.permute.xlu0 %2439
    %2441 = vrot.lane.b32.xlu0 %v1849, 80
    %v2442 = vpop.permute.xlu0 %2441
    %v2444 = vsel %vm406, %v2440, 0
    %v2447 = vsel %vm406, %v2442, 0
    %2449 = vmatprep.subr.bf16.mxu0 0
    %2450 = vmatpush1.bf16.xpose.msra.mxu0 %v2447
    %2451 = vmatprep.subr.bf16.mxu0 0
    %2452 = vmatpush1.bf16.xpose.msra.mxu0 0
    %2453 = vmatprep.subr.bf16.mxu0 0
    %2454 = vmatpush1.bf16.xpose.msra.mxu0 0
    %2455 = vmatprep.subr.bf16.mxu0 0
    %2456 = vmatpush1.bf16.xpose.msra.mxu0 0
    %2457 = vmatprep.subr.bf16.mxu0 0
    %2458 = vmatpush1.bf16.xpose.msra.mxu0 0
    %2459 = vmatprep.subr.bf16.mxu0 0
    %2460 = vmatpush1.bf16.xpose.msra.mxu0 0
    %2461 = vmatprep.subr.bf16.mxu0 0
    %2462 = vmatpush1.bf16.xpose.msra.mxu0 0
    %2463 = vmatprep.subr.bf16.mxu0 0
    %2464 = vmatpush1.bf16.xpose.msra.mxu0 0
    %2465 = vmatprep.subr.bf16.mxu0 0
    %2466 = vmatpush1.bf16.xpose.msra.mxu0 0
    %2467 = vmatprep.subr.bf16.mxu0 0
    %2468 = vmatpush1.bf16.xpose.msra.mxu0 0
    %2469 = vmatprep.subr.bf16.mxu0 0
    %2470 = vmatpush1.bf16.xpose.msra.mxu0 0
    %2471 = vmatprep.subr.bf16.mxu0 0
    %2472 = vmatpush1.bf16.xpose.msra.mxu0 0
    %2473 = vmatprep.subr.bf16.mxu0 0
    %2474 = vmatpush1.bf16.xpose.msra.mxu0 0
    %2475 = vmatprep.subr.bf16.mxu0 0
    %2476 = vmatpush1.bf16.xpose.msra.mxu0 0
    %2477 = vmatprep.subr.bf16.mxu0 0
    %2478 = vmatpush1.bf16.xpose.msra.mxu0 0
    %2479 = vmatprep.subr.bf16.mxu0 0
    %2480 = vmatpush1.bf16.xpose.msra.mxu0 0
    %2481 = vmatprep.mubr.bf16.mxu0 0
    %2482 = vmatmul.mubr.bf16.gmra.mrb[0].mxu0 %v2444
    %v2483 = vpop.f32.mrb[0].mxu0
    %v2484 = vadd.f32 %v326, %v2483
    %v2485 = vpop.f32.mrb[0].mxu0
    %v2486 = vpop.f32.mrb[0].mxu0
    %v2487 = vpop.f32.mrb[0].mxu0
    %2488 = vdwg.mxu0
    %v2489 = vsel %vm406, %v2434, -inf
    %2490 = vmax.xlane.f32.xlu0 %v2489
    %v2491 = vpop.xlane.xlu0 %2490
    %v2492 = vsel %vm406, %v2484, -inf
    %2493 = vmax.xlane.f32.xlu0 %v2492
    %v2494 = vpop.xlane.xlu0 %2493
    %v2495 = vsub.f32 %v2434, %v2491
    %v2496 = vsub.f32 %v2484, %v2494
    %v2497 = vmul.f32 %v2495, 1.442695
    %v2498 = vpow.pop %v2497
    %v2499 = vmul.f32 %v2496, 1.442695
    %v2500 = vpow.pop %v2499
    %v2501 = vsel %vm406, %v2498, 0.0
    %2502 = vadd.xlane.f32.xlu0 %v2501
    %v2503 = vpop.xlane.xlu0 %2502
    %v2504 = vsel %vm406, %v2500, 0.0
    %2505 = vadd.xlane.f32.xlu0 %v2504
    %v2506 = vpop.xlane.xlu0 %2505
    %v2507 = vrcp.pop %v2503
    %v2508 = vrcp.pop %v2506
    %v2509 = vmul.f32 %v2498, %v2507
    %v2510 = vmul.f32 %v2500, %v2508
    %v2511 = vpack.c.bf16 %v2509, %v2509
    %v2512 = vpack.c.bf16 %v2510, %v2510
    %2513 = vrot.lane.b32.xlu0 %v1848, 48
    %v2514 = vpop.permute.xlu0 %2513
    %v2516 = vsel %vm406, %v2511, 0
    %v2519 = vsel %vm165, %v2514, 0
    %2521 = vmatprep.subr.bf16.mxu0 0
    %2522 = vmatpush1.bf16.msra.mxu0 %v2519
    %2523 = vmatprep.subr.bf16.mxu0 0
    %2524 = vmatpush1.bf16.msra.mxu0 0
    %2525 = vmatprep.subr.bf16.mxu0 0
    %2526 = vmatpush1.bf16.msra.mxu0 0
    %2527 = vmatprep.subr.bf16.mxu0 0
    %2528 = vmatpush1.bf16.msra.mxu0 0
    %2529 = vmatprep.subr.bf16.mxu0 0
    %2530 = vmatpush1.bf16.msra.mxu0 0
    %2531 = vmatprep.subr.bf16.mxu0 0
    %2532 = vmatpush1.bf16.msra.mxu0 0
    %2533 = vmatprep.subr.bf16.mxu0 0
    %2534 = vmatpush1.bf16.msra.mxu0 0
    %2535 = vmatprep.subr.bf16.mxu0 0
    %2536 = vmatpush1.bf16.msra.mxu0 0
    %2537 = vmatprep.subr.bf16.mxu0 0
    %2538 = vmatpush1.bf16.msra.mxu0 0
    %2539 = vmatprep.subr.bf16.mxu0 0
    %2540 = vmatpush1.bf16.msra.mxu0 0
    %2541 = vmatprep.subr.bf16.mxu0 0
    %2542 = vmatpush1.bf16.msra.mxu0 0
    %2543 = vmatprep.subr.bf16.mxu0 0
    %2544 = vmatpush1.bf16.msra.mxu0 0
    %2545 = vmatprep.subr.bf16.mxu0 0
    %2546 = vmatpush1.bf16.msra.mxu0 0
    %2547 = vmatprep.subr.bf16.mxu0 0
    %2548 = vmatpush1.bf16.msra.mxu0 0
    %2549 = vmatprep.subr.bf16.mxu0 0
    %2550 = vmatpush1.bf16.msra.mxu0 0
    %2551 = vmatprep.subr.bf16.mxu0 0
    %2552 = vmatpush1.bf16.msra.mxu0 0
    %2553 = vmatprep.mubr.bf16.mxu0 0
    %2554 = vmatmul.mubr.bf16.gmra.mrb[0].mxu0 %v2516
    %v2555 = vpop.f32.mrb[0].mxu0
    %v2556 = vadd.f32 0.0, %v2555
    %v2557 = vpop.f32.mrb[0].mxu0
    %v2558 = vpop.f32.mrb[0].mxu0
    %v2559 = vpop.f32.mrb[0].mxu0
    %2560 = vdwg.mxu0
    %2561 = vrot.lane.b32.xlu0 %v1849, 48
    %v2562 = vpop.permute.xlu0 %2561
    %v2564 = vsel %vm406, %v2512, 0
    %v2567 = vsel %vm165, %v2562, 0
    %2569 = vmatprep.subr.bf16.mxu0 0
    %2570 = vmatpush1.bf16.msra.mxu0 %v2567
    %2571 = vmatprep.subr.bf16.mxu0 0
    %2572 = vmatpush1.bf16.msra.mxu0 0
    %2573 = vmatprep.subr.bf16.mxu0 0
    %2574 = vmatpush1.bf16.msra.mxu0 0
    %2575 = vmatprep.subr.bf16.mxu0 0
    %2576 = vmatpush1.bf16.msra.mxu0 0
    %2577 = vmatprep.subr.bf16.mxu0 0
    %2578 = vmatpush1.bf16.msra.mxu0 0
    %2579 = vmatprep.subr.bf16.mxu0 0
    %2580 = vmatpush1.bf16.msra.mxu0 0
    %2581 = vmatprep.subr.bf16.mxu0 0
    %2582 = vmatpush1.bf16.msra.mxu0 0
    %2583 = vmatprep.subr.bf16.mxu0 0
    %2584 = vmatpush1.bf16.msra.mxu0 0
    %2585 = vmatprep.subr.bf16.mxu0 0
    %2586 = vmatpush1.bf16.msra.mxu0 0
    %2587 = vmatprep.subr.bf16.mxu0 0
    %2588 = vmatpush1.bf16.msra.mxu0 0
    %2589 = vmatprep.subr.bf16.mxu0 0
    %2590 = vmatpush1.bf16.msra.mxu0 0
    %2591 = vmatprep.subr.bf16.mxu0 0
    %2592 = vmatpush1.bf16.msra.mxu0 0
    %2593 = vmatprep.subr.bf16.mxu0 0
    %2594 = vmatpush1.bf16.msra.mxu0 0
    %2595 = vmatprep.subr.bf16.mxu0 0
    %2596 = vmatpush1.bf16.msra.mxu0 0
    %2597 = vmatprep.subr.bf16.mxu0 0
    %2598 = vmatpush1.bf16.msra.mxu0 0
    %2599 = vmatprep.subr.bf16.mxu0 0
    %2600 = vmatpush1.bf16.msra.mxu0 0
    %2601 = vmatprep.mubr.bf16.mxu0 0
    %2602 = vmatmul.mubr.bf16.gmra.mrb[0].mxu0 %v2564
    %v2603 = vpop.f32.mrb[0].mxu0
    %v2604 = vadd.f32 0.0, %v2603
    %v2605 = vpop.f32.mrb[0].mxu0
    %v2606 = vpop.f32.mrb[0].mxu0
    %v2607 = vpop.f32.mrb[0].mxu0
    %2608 = vdwg.mxu0
    %v2609 = vpack.c.bf16 %v2604, %v2556
    %v2611 = vsel %vm406, %v2609, 0
    %v2614 = vsel %vm165, %v1853, 0
    %2616 = vmatprep.subr.bf16.mxu0 0
    %2617 = vmatpush1.bf16.msra.mxu0 %v2614
    %2618 = vmatprep.subr.bf16.mxu0 0
    %2619 = vmatpush1.bf16.msra.mxu0 0
    %2620 = vmatprep.subr.bf16.mxu0 0
    %2621 = vmatpush1.bf16.msra.mxu0 0
    %2622 = vmatprep.subr.bf16.mxu0 0
    %2623 = vmatpush1.bf16.msra.mxu0 0
    %2624 = vmatprep.subr.bf16.mxu0 0
    %2625 = vmatpush1.bf16.msra.mxu0 0
    %2626 = vmatprep.subr.bf16.mxu0 0
    %2627 = vmatpush1.bf16.msra.mxu0 0
    %2628 = vmatprep.subr.bf16.mxu0 0
    %2629 = vmatpush1.bf16.msra.mxu0 0
    %2630 = vmatprep.subr.bf16.mxu0 0
    %2631 = vmatpush1.bf16.msra.mxu0 0
    %2632 = vmatprep.subr.bf16.mxu0 0
    %2633 = vmatpush1.bf16.msra.mxu0 0
    %2634 = vmatprep.subr.bf16.mxu0 0
    %2635 = vmatpush1.bf16.msra.mxu0 0
    %2636 = vmatprep.subr.bf16.mxu0 0
    %2637 = vmatpush1.bf16.msra.mxu0 0
    %2638 = vmatprep.subr.bf16.mxu0 0
    %2639 = vmatpush1.bf16.msra.mxu0 0
    %2640 = vmatprep.subr.bf16.mxu0 0
    %2641 = vmatpush1.bf16.msra.mxu0 0
    %2642 = vmatprep.subr.bf16.mxu0 0
    %2643 = vmatpush1.bf16.msra.mxu0 0
    %2644 = vmatprep.subr.bf16.mxu0 0
    %2645 = vmatpush1.bf16.msra.mxu0 0
    %2646 = vmatprep.subr.bf16.mxu0 0
    %2647 = vmatpush1.bf16.msra.mxu0 0
    %2648 = vmatprep.mubr.bf16.mxu0 0
    %2649 = vmatmul.mubr.bf16.gmra.mrb[0].mxu0 %v2611
    %v2650 = vpop.f32.mrb[0].mxu0
    %v2651 = vadd.f32 0.0, %v2650
    %v2652 = vpop.f32.mrb[0].mxu0
    %v2653 = vpop.f32.mrb[0].mxu0
    %v2654 = vadd.f32 0.0, %v2653
    %v2655 = vpop.f32.mrb[0].mxu0
    %2656 = vdwg.mxu0
    %v2657 = vadd.f32 %v2383, %v2651
    %v2658 = vadd.f32 %v2386, %v2654
    %2659 = vrot.lane.b32.xlu0 %v1848, 104
    %v2660 = vpop.permute.xlu0 %2659
    %2661 = vrot.lane.b32.xlu0 %v1848, 72
    %v2662 = vpop.permute.xlu0 %2661
    %v2664 = vsel %vm406, %v2660, 0
    %v2667 = vsel %vm406, %v2662, 0
    %2669 = vmatprep.subr.bf16.mxu0 0
    %2670 = vmatpush1.bf16.xpose.msra.mxu0 %v2667
    %2671 = vmatprep.subr.bf16.mxu0 0
    %2672 = vmatpush1.bf16.xpose.msra.mxu0 0
    %2673 = vmatprep.subr.bf16.mxu0 0
    %2674 = vmatpush1.bf16.xpose.msra.mxu0 0
    %2675 = vmatprep.subr.bf16.mxu0 0
    %2676 = vmatpush1.bf16.xpose.msra.mxu0 0
    %2677 = vmatprep.subr.bf16.mxu0 0
    %2678 = vmatpush1.bf16.xpose.msra.mxu0 0
    %2679 = vmatprep.subr.bf16.mxu0 0
    %2680 = vmatpush1.bf16.xpose.msra.mxu0 0
    %2681 = vmatprep.subr.bf16.mxu0 0
    %2682 = vmatpush1.bf16.xpose.msra.mxu0 0
    %2683 = vmatprep.subr.bf16.mxu0 0
    %2684 = vmatpush1.bf16.xpose.msra.mxu0 0
    %2685 = vmatprep.subr.bf16.mxu0 0
    %2686 = vmatpush1.bf16.xpose.msra.mxu0 0
    %2687 = vmatprep.subr.bf16.mxu0 0
    %2688 = vmatpush1.bf16.xpose.msra.mxu0 0
    %2689 = vmatprep.subr.bf16.mxu0 0
    %2690 = vmatpush1.bf16.xpose.msra.mxu0 0
    %2691 = vmatprep.subr.bf16.mxu0 0
    %2692 = vmatpush1.bf16.xpose.msra.mxu0 0
    %2693 = vmatprep.subr.bf16.mxu0 0
    %2694 = vmatpush1.bf16.xpose.msra.mxu0 0
    %2695 = vmatprep.subr.bf16.mxu0 0
    %2696 = vmatpush1.bf16.xpose.msra.mxu0 0
    %2697 = vmatprep.subr.bf16.mxu0 0
    %2698 = vmatpush1.bf16.xpose.msra.mxu0 0
    %2699 = vmatprep.subr.bf16.mxu0 0
    %2700 = vmatpush1.bf16.xpose.msra.mxu0 0
    %2701 = vmatprep.mubr.bf16.mxu0 0
    %2702 = vmatmul.mubr.bf16.gmra.mrb[0].mxu0 %v2664
    %v2703 = vpop.f32.mrb[0].mxu0
    %v2704 = vadd.f32 %v322, %v2703
    %v2705 = vpop.f32.mrb[0].mxu0
    %v2706 = vpop.f32.mrb[0].mxu0
    %v2707 = vpop.f32.mrb[0].mxu0
    %2708 = vdwg.mxu0
    %2709 = vrot.lane.b32.xlu0 %v1849, 104
    %v2710 = vpop.permute.xlu0 %2709
    %2711 = vrot.lane.b32.xlu0 %v1849, 72
    %v2712 = vpop.permute.xlu0 %2711
    %v2714 = vsel %vm406, %v2710, 0
    %v2717 = vsel %vm406, %v2712, 0
    %2719 = vmatprep.subr.bf16.mxu0 0
    %2720 = vmatpush1.bf16.xpose.msra.mxu0 %v2717
    %2721 = vmatprep.subr.bf16.mxu0 0
    %2722 = vmatpush1.bf16.xpose.msra.mxu0 0
    %2723 = vmatprep.subr.bf16.mxu0 0
    %2724 = vmatpush1.bf16.xpose.msra.mxu0 0
    %2725 = vmatprep.subr.bf16.mxu0 0
    %2726 = vmatpush1.bf16.xpose.msra.mxu0 0
    %2727 = vmatprep.subr.bf16.mxu0 0
    %2728 = vmatpush1.bf16.xpose.msra.mxu0 0
    %2729 = vmatprep.subr.bf16.mxu0 0
    %2730 = vmatpush1.bf16.xpose.msra.mxu0 0
    %2731 = vmatprep.subr.bf16.mxu0 0
    %2732 = vmatpush1.bf16.xpose.msra.mxu0 0
    %2733 = vmatprep.subr.bf16.mxu0 0
    %2734 = vmatpush1.bf16.xpose.msra.mxu0 0
    %2735 = vmatprep.subr.bf16.mxu0 0
    %2736 = vmatpush1.bf16.xpose.msra.mxu0 0
    %2737 = vmatprep.subr.bf16.mxu0 0
    %2738 = vmatpush1.bf16.xpose.msra.mxu0 0
    %2739 = vmatprep.subr.bf16.mxu0 0
    %2740 = vmatpush1.bf16.xpose.msra.mxu0 0
    %2741 = vmatprep.subr.bf16.mxu0 0
    %2742 = vmatpush1.bf16.xpose.msra.mxu0 0
    %2743 = vmatprep.subr.bf16.mxu0 0
    %2744 = vmatpush1.bf16.xpose.msra.mxu0 0
    %2745 = vmatprep.subr.bf16.mxu0 0
    %2746 = vmatpush1.bf16.xpose.msra.mxu0 0
    %2747 = vmatprep.subr.bf16.mxu0 0
    %2748 = vmatpush1.bf16.xpose.msra.mxu0 0
    %2749 = vmatprep.subr.bf16.mxu0 0
    %2750 = vmatpush1.bf16.xpose.msra.mxu0 0
    %2751 = vmatprep.mubr.bf16.mxu0 0
    %2752 = vmatmul.mubr.bf16.gmra.mrb[0].mxu0 %v2714
    %v2753 = vpop.f32.mrb[0].mxu0
    %v2754 = vadd.f32 %v326, %v2753
    %v2755 = vpop.f32.mrb[0].mxu0
    %v2756 = vpop.f32.mrb[0].mxu0
    %v2757 = vpop.f32.mrb[0].mxu0
    %2758 = vdwg.mxu0
    %v2759 = vsel %vm406, %v2704, -inf
    %2760 = vmax.xlane.f32.xlu0 %v2759
    %v2761 = vpop.xlane.xlu0 %2760
    %v2762 = vsel %vm406, %v2754, -inf
    %2763 = vmax.xlane.f32.xlu0 %v2762
    %v2764 = vpop.xlane.xlu0 %2763
    %v2765 = vsub.f32 %v2704, %v2761
    %v2766 = vsub.f32 %v2754, %v2764
    %v2767 = vmul.f32 %v2765, 1.442695
    %v2768 = vpow.pop %v2767
    %v2769 = vmul.f32 %v2766, 1.442695
    %v2770 = vpow.pop %v2769
    %v2771 = vsel %vm406, %v2768, 0.0
    %2772 = vadd.xlane.f32.xlu0 %v2771
    %v2773 = vpop.xlane.xlu0 %2772
    %v2774 = vsel %vm406, %v2770, 0.0
    %2775 = vadd.xlane.f32.xlu0 %v2774
    %v2776 = vpop.xlane.xlu0 %2775
    %v2777 = vrcp.pop %v2773
    %v2778 = vrcp.pop %v2776
    %v2779 = vmul.f32 %v2768, %v2777
    %v2780 = vmul.f32 %v2770, %v2778
    %v2781 = vpack.c.bf16 %v2779, %v2779
    %v2782 = vpack.c.bf16 %v2780, %v2780
    %2783 = vrot.lane.b32.xlu0 %v1848, 40
    %v2784 = vpop.permute.xlu0 %2783
    %v2786 = vsel %vm406, %v2781, 0
    %v2789 = vsel %vm165, %v2784, 0
    %2791 = vmatprep.subr.bf16.mxu0 0
    %2792 = vmatpush1.bf16.msra.mxu0 %v2789
    %2793 = vmatprep.subr.bf16.mxu0 0
    %2794 = vmatpush1.bf16.msra.mxu0 0
    %2795 = vmatprep.subr.bf16.mxu0 0
    %2796 = vmatpush1.bf16.msra.mxu0 0
    %2797 = vmatprep.subr.bf16.mxu0 0
    %2798 = vmatpush1.bf16.msra.mxu0 0
    %2799 = vmatprep.subr.bf16.mxu0 0
    %2800 = vmatpush1.bf16.msra.mxu0 0
    %2801 = vmatprep.subr.bf16.mxu0 0
    %2802 = vmatpush1.bf16.msra.mxu0 0
    %2803 = vmatprep.subr.bf16.mxu0 0
    %2804 = vmatpush1.bf16.msra.mxu0 0
    %2805 = vmatprep.subr.bf16.mxu0 0
    %2806 = vmatpush1.bf16.msra.mxu0 0
    %2807 = vmatprep.subr.bf16.mxu0 0
    %2808 = vmatpush1.bf16.msra.mxu0 0
    %2809 = vmatprep.subr.bf16.mxu0 0
    %2810 = vmatpush1.bf16.msra.mxu0 0
    %2811 = vmatprep.subr.bf16.mxu0 0
    %2812 = vmatpush1.bf16.msra.mxu0 0
    %2813 = vmatprep.subr.bf16.mxu0 0
    %2814 = vmatpush1.bf16.msra.mxu0 0
    %2815 = vmatprep.subr.bf16.mxu0 0
    %2816 = vmatpush1.bf16.msra.mxu0 0
    %2817 = vmatprep.subr.bf16.mxu0 0
    %2818 = vmatpush1.bf16.msra.mxu0 0
    %2819 = vmatprep.subr.bf16.mxu0 0
    %2820 = vmatpush1.bf16.msra.mxu0 0
    %2821 = vmatprep.subr.bf16.mxu0 0
    %2822 = vmatpush1.bf16.msra.mxu0 0
    %2823 = vmatprep.mubr.bf16.mxu0 0
    %2824 = vmatmul.mubr.bf16.gmra.mrb[0].mxu0 %v2786
    %v2825 = vpop.f32.mrb[0].mxu0
    %v2826 = vadd.f32 0.0, %v2825
    %v2827 = vpop.f32.mrb[0].mxu0
    %v2828 = vpop.f32.mrb[0].mxu0
    %v2829 = vpop.f32.mrb[0].mxu0
    %2830 = vdwg.mxu0
    %2831 = vrot.lane.b32.xlu0 %v1849, 40
    %v2832 = vpop.permute.xlu0 %2831
    %v2834 = vsel %vm406, %v2782, 0
    %v2837 = vsel %vm165, %v2832, 0
    %2839 = vmatprep.subr.bf16.mxu0 0
    %2840 = vmatpush1.bf16.msra.mxu0 %v2837
    %2841 = vmatprep.subr.bf16.mxu0 0
    %2842 = vmatpush1.bf16.msra.mxu0 0
    %2843 = vmatprep.subr.bf16.mxu0 0
    %2844 = vmatpush1.bf16.msra.mxu0 0
    %2845 = vmatprep.subr.bf16.mxu0 0
    %2846 = vmatpush1.bf16.msra.mxu0 0
    %2847 = vmatprep.subr.bf16.mxu0 0
    %2848 = vmatpush1.bf16.msra.mxu0 0
    %2849 = vmatprep.subr.bf16.mxu0 0
    %2850 = vmatpush1.bf16.msra.mxu0 0
    %2851 = vmatprep.subr.bf16.mxu0 0
    %2852 = vmatpush1.bf16.msra.mxu0 0
    %2853 = vmatprep.subr.bf16.mxu0 0
    %2854 = vmatpush1.bf16.msra.mxu0 0
    %2855 = vmatprep.subr.bf16.mxu0 0
    %2856 = vmatpush1.bf16.msra.mxu0 0
    %2857 = vmatprep.subr.bf16.mxu0 0
    %2858 = vmatpush1.bf16.msra.mxu0 0
    %2859 = vmatprep.subr.bf16.mxu0 0
    %2860 = vmatpush1.bf16.msra.mxu0 0
    %2861 = vmatprep.subr.bf16.mxu0 0
    %2862 = vmatpush1.bf16.msra.mxu0 0
    %2863 = vmatprep.subr.bf16.mxu0 0
    %2864 = vmatpush1.bf16.msra.mxu0 0
    %2865 = vmatprep.subr.bf16.mxu0 0
    %2866 = vmatpush1.bf16.msra.mxu0 0
    %2867 = vmatprep.subr.bf16.mxu0 0
    %2868 = vmatpush1.bf16.msra.mxu0 0
    %2869 = vmatprep.subr.bf16.mxu0 0
    %2870 = vmatpush1.bf16.msra.mxu0 0
    %2871 = vmatprep.mubr.bf16.mxu0 0
    %2872 = vmatmul.mubr.bf16.gmra.mrb[0].mxu0 %v2834
    %v2873 = vpop.f32.mrb[0].mxu0
    %v2874 = vadd.f32 0.0, %v2873
    %v2875 = vpop.f32.mrb[0].mxu0
    %v2876 = vpop.f32.mrb[0].mxu0
    %v2877 = vpop.f32.mrb[0].mxu0
    %2878 = vdwg.mxu0
    %v2879 = vpack.c.bf16 %v2874, %v2826
    %v2881 = vsel %vm406, %v2879, 0
    %v2884 = vsel %vm165, %v1854, 0
    %2886 = vmatprep.subr.bf16.mxu0 0
    %2887 = vmatpush1.bf16.msra.mxu0 %v2884
    %2888 = vmatprep.subr.bf16.mxu0 0
    %2889 = vmatpush1.bf16.msra.mxu0 0
    %2890 = vmatprep.subr.bf16.mxu0 0
    %2891 = vmatpush1.bf16.msra.mxu0 0
    %2892 = vmatprep.subr.bf16.mxu0 0
    %2893 = vmatpush1.bf16.msra.mxu0 0
    %2894 = vmatprep.subr.bf16.mxu0 0
    %2895 = vmatpush1.bf16.msra.mxu0 0
    %2896 = vmatprep.subr.bf16.mxu0 0
    %2897 = vmatpush1.bf16.msra.mxu0 0
    %2898 = vmatprep.subr.bf16.mxu0 0
    %2899 = vmatpush1.bf16.msra.mxu0 0
    %2900 = vmatprep.subr.bf16.mxu0 0
    %2901 = vmatpush1.bf16.msra.mxu0 0
    %2902 = vmatprep.subr.bf16.mxu0 0
    %2903 = vmatpush1.bf16.msra.mxu0 0
    %2904 = vmatprep.subr.bf16.mxu0 0
    %2905 = vmatpush1.bf16.msra.mxu0 0
    %2906 = vmatprep.subr.bf16.mxu0 0
    %2907 = vmatpush1.bf16.msra.mxu0 0
    %2908 = vmatprep.subr.bf16.mxu0 0
    %2909 = vmatpush1.bf16.msra.mxu0 0
    %2910 = vmatprep.subr.bf16.mxu0 0
    %2911 = vmatpush1.bf16.msra.mxu0 0
    %2912 = vmatprep.subr.bf16.mxu0 0
    %2913 = vmatpush1.bf16.msra.mxu0 0
    %2914 = vmatprep.subr.bf16.mxu0 0
    %2915 = vmatpush1.bf16.msra.mxu0 0
    %2916 = vmatprep.subr.bf16.mxu0 0
    %2917 = vmatpush1.bf16.msra.mxu0 0
    %2918 = vmatprep.mubr.bf16.mxu0 0
    %2919 = vmatmul.mubr.bf16.gmra.mrb[0].mxu0 %v2881
    %v2920 = vpop.f32.mrb[0].mxu0
    %v2921 = vadd.f32 0.0, %v2920
    %v2922 = vpop.f32.mrb[0].mxu0
    %v2923 = vpop.f32.mrb[0].mxu0
    %v2924 = vadd.f32 0.0, %v2923
    %v2925 = vpop.f32.mrb[0].mxu0
    %2926 = vdwg.mxu0
    %v2927 = vadd.f32 %v2657, %v2921
    %v2928 = vadd.f32 %v2658, %v2924
    %s2929 = scalar_lea.vmem %s11, 1
    %v2930 = vld [vmem:[%s2929] sm:$0x1]
    %v2932 = vlaneseq
    %v2933 = vshrl.u32 %v2932, 7
    %v2934 = vsub.s32 0, %v2933
    %v2935 = vrot.slane %v2930, %v2934
    %v2937 = vadd.f32 %v2927, %v2935
    %v2938 = vadd.f32 %v2928, %v2935
    %v2939 = vadd.f32 %v1776, %v2937
    %v2940 = vadd.f32 %v1777, %v2938
    %s2941 = scalar_lea.vmem %s12, 1
    %v2942 = vld [vmem:[%s2941] sm:$0x1]
    %s2943 = scalar_lea.vmem %s13, 1
    %v2944 = vld [vmem:[%s2943] sm:$0x1]
    %v2945 = vsel %vm249, %v2939, 0.0
    %2946 = vadd.xlane.f32.xlu0 %v2945
    %v2947 = vpop.xlane.xlu0 %2946
    %v2948 = vsel %vm249, %v2940, 0.0
    %2949 = vadd.xlane.f32.xlu0 %v2948
    %v2950 = vpop.xlane.xlu0 %2949
    %v2951 = vmul.f32 %v2947, %v256
    %v2952 = vmul.f32 %v2950, %v256
    %v2953 = vsub.f32 %v2939, %v2951
    %v2954 = vsub.f32 %v2940, %v2952
    %v2955 = vmul.f32 %v2953, %v2953
    %v2956 = vmul.f32 %v2954, %v2954
    %v2957 = vsel %vm249, %v2955, 0.0
    %2958 = vadd.xlane.f32.xlu0 %v2957
    %v2959 = vpop.xlane.xlu0 %2958
    %v2960 = vsel %vm249, %v2956, 0.0
    %2961 = vadd.xlane.f32.xlu0 %v2960
    %v2962 = vpop.xlane.xlu0 %2961
    %v2963 = vmul.f32 %v2959, %v256
    %v2964 = vmul.f32 %v2962, %v256
    %v2965 = vadd.f32 %v2963, 1e-12
    %v2966 = vadd.f32 %v2964, 1e-12
    %v2967 = vrsqrt.pop %v2965
    %v2968 = vrsqrt.pop %v2966
    %v2969 = vmul.f32 %v2953, %v2967
    %v2970 = vmul.f32 %v2954, %v2968
    %v2972 = vlaneseq
    %v2973 = vshrl.u32 %v2972, 7
    %v2974 = vsub.s32 0, %v2973
    %v2975 = vrot.slane %v2942, %v2974
    %v2977 = vmul.f32 %v2969, %v2975
    %v2978 = vmul.f32 %v2970, %v2975
    %v2980 = vlaneseq
    %v2981 = vshrl.u32 %v2980, 7
    %v2982 = vsub.s32 0, %v2981
    %v2983 = vrot.slane %v2944, %v2982
    %v2985 = vadd.f32 %v2977, %v2983
    %v2986 = vadd.f32 %v2978, %v2983
    %v2987 = vpack.c.bf16 %v2986, %v2985
    %s2988 = scalar_lea.vmem %s14, 16
    %v2989 = vld [vmem:[%s2988] sm:$0xf]
    %v2990 = vld [vmem:[%s2988 + $0x4] sm:$0xf]
    %v2991 = vld [vmem:[%s2988 + $0x8] sm:$0xf]
    %v2992 = vld [vmem:[%s2988 + $0xc] sm:$0xf]
    %s2993 = scalar_lea.vmem %s15, 1
    %v2994 = vld [vmem:[%s2993] sm:$0x1]
    %v2996 = vlaneseq
    %v2997 = vshrl.u32 %v2996, 7
    %v2998 = vsub.s32 0, %v2997
    %v2999 = vrot.slane %v2994, %v2998
    %v3005 = vunpack.c.l.b16 %v2989
    %v3006 = vunpack.c.l.b16 %v2990
    %v3007 = vunpack.c.l.b16 %v2991
    %v3008 = vunpack.c.l.b16 %v2992
    %v3009 = vpack.c.b16 %v3006, %v3005
    %v3010 = vpack.c.b16 %v3008, %v3007
    %v3014 = vsel %vm249, %v2987, 0
    %3016 = vmatprep.subr.bf16.mxu0 0
    %3017 = vmatpush1.bf16.msra.mxu0 %v3009
    %3018 = vmatprep.subr.bf16.mxu0 0
    %3019 = vmatpush1.bf16.msra.mxu0 %v3010
    %3020 = vmatprep.subr.bf16.mxu0 0
    %3021 = vmatpush1.bf16.msra.mxu0 0
    %3022 = vmatprep.subr.bf16.mxu0 0
    %3023 = vmatpush1.bf16.msra.mxu0 0
    %3024 = vmatprep.subr.bf16.mxu0 0
    %3025 = vmatpush1.bf16.msra.mxu0 0
    %3026 = vmatprep.subr.bf16.mxu0 0
    %3027 = vmatpush1.bf16.msra.mxu0 0
    %3028 = vmatprep.subr.bf16.mxu0 0
    %3029 = vmatpush1.bf16.msra.mxu0 0
    %3030 = vmatprep.subr.bf16.mxu0 0
    %3031 = vmatpush1.bf16.msra.mxu0 0
    %3032 = vmatprep.subr.bf16.mxu0 0
    %3033 = vmatpush1.bf16.msra.mxu0 0
    %3034 = vmatprep.subr.bf16.mxu0 0
    %3035 = vmatpush1.bf16.msra.mxu0 0
    %3036 = vmatprep.subr.bf16.mxu0 0
    %3037 = vmatpush1.bf16.msra.mxu0 0
    %3038 = vmatprep.subr.bf16.mxu0 0
    %3039 = vmatpush1.bf16.msra.mxu0 0
    %3040 = vmatprep.subr.bf16.mxu0 0
    %3041 = vmatpush1.bf16.msra.mxu0 0
    %3042 = vmatprep.subr.bf16.mxu0 0
    %3043 = vmatpush1.bf16.msra.mxu0 0
    %3044 = vmatprep.subr.bf16.mxu0 0
    %3045 = vmatpush1.bf16.msra.mxu0 0
    %3046 = vmatprep.subr.bf16.mxu0 0
    %3047 = vmatpush1.bf16.msra.mxu0 0
    %3048 = vmatprep.mubr.bf16.mxu0 0
    %3049 = vmatmul.mubr.bf16.gmra.mrb[0].mxu0 %v3014
    %v3050 = vpop.f32.mrb[0].mxu0
    %v3051 = vadd.f32 %v2999, %v3050
    %v3052 = vpop.f32.mrb[0].mxu0
    %v3053 = vpop.f32.mrb[0].mxu0
    %v3054 = vadd.f32 %v2999, %v3053
    %v3055 = vpop.f32.mrb[0].mxu0
    %3056 = vdwg.mxu0
    %v3057 = vmul.f32 %v3051, 0.5
    %v3058 = vmul.f32 %v3054, 0.5
    %v3059 = vmul.f32 %v3051, 0.044715
    %v3060 = vmul.f32 %v3054, 0.044715
    %v3061 = vmul.f32 %v3059, %v3051
    %v3062 = vmul.f32 %v3060, %v3054
    %v3063 = vmul.f32 %v3061, %v3051
    %v3064 = vmul.f32 %v3062, %v3054
    %v3065 = vadd.f32 %v3051, %v3063
    %v3066 = vadd.f32 %v3054, %v3064
    %v3067 = vmul.f32 %v3065, 0.7978846
    %v3068 = vmul.f32 %v3066, 0.7978846
    %v3069 = vtanh.pop %v3067
    %v3070 = vtanh.pop %v3068
    %v3071 = vadd.f32 %v3069, 1.0
    %v3072 = vadd.f32 %v3070, 1.0
    %v3073 = vmul.f32 %v3057, %v3071
    %v3074 = vmul.f32 %v3058, %v3072
    %v3075 = vpack.c.bf16 %v3074, %v3073
    %s3076 = scalar_lea.vmem %s16, 64
    %v3077 = vld [vmem:[%s3076] sm:$0xf]
    %v3078 = vld [vmem:[%s3076 + $0x4] sm:$0xf]
    %v3079 = vld [vmem:[%s3076 + $0x8] sm:$0xf]
    %v3080 = vld [vmem:[%s3076 + $0xc] sm:$0xf]
    %v3081 = vld [vmem:[%s3076 + $0x10] sm:$0xf]
    %v3082 = vld [vmem:[%s3076 + $0x14] sm:$0xf]
    %v3083 = vld [vmem:[%s3076 + $0x18] sm:$0xf]
    %v3084 = vld [vmem:[%s3076 + $0x1c] sm:$0xf]
    %v3085 = vld [vmem:[%s3076 + $0x20] sm:$0xf]
    %v3086 = vld [vmem:[%s3076 + $0x24] sm:$0xf]
    %v3087 = vld [vmem:[%s3076 + $0x28] sm:$0xf]
    %v3088 = vld [vmem:[%s3076 + $0x2c] sm:$0xf]
    %v3089 = vld [vmem:[%s3076 + $0x30] sm:$0xf]
    %v3090 = vld [vmem:[%s3076 + $0x34] sm:$0xf]
    %v3091 = vld [vmem:[%s3076 + $0x38] sm:$0xf]
    %v3092 = vld [vmem:[%s3076 + $0x3c] sm:$0xf]
    %s3093 = scalar_lea.vmem %s17, 1
    %v3094 = vld [vmem:[%s3093] sm:$0x1]
    %v3096 = vlaneseq
    %v3097 = vshrl.u32 %v3096, 7
    %v3098 = vsub.s32 0, %v3097
    %v3099 = vrot.slane %v3094, %v3098
    %v3117 = vunpack.c.l.b16 %v3077
    %v3118 = vunpack.c.l.b16 %v3078
    %v3119 = vunpack.c.l.b16 %v3079
    %v3120 = vunpack.c.l.b16 %v3080
    %v3121 = vunpack.c.l.b16 %v3081
    %v3122 = vunpack.c.l.b16 %v3082
    %v3123 = vunpack.c.l.b16 %v3083
    %v3124 = vunpack.c.l.b16 %v3084
    %v3125 = vunpack.c.l.b16 %v3085
    %v3126 = vunpack.c.l.b16 %v3086
    %v3127 = vunpack.c.l.b16 %v3087
    %v3128 = vunpack.c.l.b16 %v3088
    %v3129 = vunpack.c.l.b16 %v3089
    %v3130 = vunpack.c.l.b16 %v3090
    %v3131 = vunpack.c.l.b16 %v3091
    %v3132 = vunpack.c.l.b16 %v3092
    %v3133 = vpack.c.b16 %v3118, %v3117
    %v3134 = vpack.c.b16 %v3120, %v3119
    %v3135 = vpack.c.b16 %v3122, %v3121
    %v3136 = vpack.c.b16 %v3124, %v3123
    %v3137 = vpack.c.b16 %v3126, %v3125
    %v3138 = vpack.c.b16 %v3128, %v3127
    %v3139 = vpack.c.b16 %v3130, %v3129
    %v3140 = vpack.c.b16 %v3132, %v3131
    %3149 = vmatprep.subr.bf16.mxu0 0
    %3150 = vmatpush1.bf16.msra.mxu0 %v3133
    %3151 = vmatprep.subr.bf16.mxu0 0
    %3152 = vmatpush1.bf16.msra.mxu0 %v3134
    %3153 = vmatprep.subr.bf16.mxu0 0
    %3154 = vmatpush1.bf16.msra.mxu0 %v3135
    %3155 = vmatprep.subr.bf16.mxu0 0
    %3156 = vmatpush1.bf16.msra.mxu0 %v3136
    %3157 = vmatprep.subr.bf16.mxu0 0
    %3158 = vmatpush1.bf16.msra.mxu0 %v3137
    %3159 = vmatprep.subr.bf16.mxu0 0
    %3160 = vmatpush1.bf16.msra.mxu0 %v3138
    %3161 = vmatprep.subr.bf16.mxu0 0
    %3162 = vmatpush1.bf16.msra.mxu0 %v3139
    %3163 = vmatprep.subr.bf16.mxu0 0
    %3164 = vmatpush1.bf16.msra.mxu0 %v3140
    %3165 = vmatprep.subr.bf16.mxu0 0
    %3166 = vmatpush1.bf16.msra.mxu0 0
    %3167 = vmatprep.subr.bf16.mxu0 0
    %3168 = vmatpush1.bf16.msra.mxu0 0
    %3169 = vmatprep.subr.bf16.mxu0 0
    %3170 = vmatpush1.bf16.msra.mxu0 0
    %3171 = vmatprep.subr.bf16.mxu0 0
    %3172 = vmatpush1.bf16.msra.mxu0 0
    %3173 = vmatprep.subr.bf16.mxu0 0
    %3174 = vmatpush1.bf16.msra.mxu0 0
    %3175 = vmatprep.subr.bf16.mxu0 0
    %3176 = vmatpush1.bf16.msra.mxu0 0
    %3177 = vmatprep.subr.bf16.mxu0 0
    %3178 = vmatpush1.bf16.msra.mxu0 0
    %3179 = vmatprep.subr.bf16.mxu0 0
    %3180 = vmatpush1.bf16.msra.mxu0 0
    %3181 = vmatprep.mubr.bf16.mxu0 0
    %3182 = vmatmul.mubr.bf16.gmra.mrb[0].mxu0 %v3075
    %v3183 = vpop.f32.mrb[0].mxu0
    %v3184 = vadd.f32 %v3099, %v3183
    %v3185 = vpop.f32.mrb[0].mxu0
    %v3186 = vpop.f32.mrb[0].mxu0
    %v3187 = vadd.f32 %v3099, %v3186
    %v3188 = vpop.f32.mrb[0].mxu0
    %3189 = vdwg.mxu0
    %v3190 = vadd.f32 %v2985, %v3184
    %v3191 = vadd.f32 %v2986, %v3187
    %s3192 = scalar_lea.vmem %s18, 1
    %v3193 = vld [vmem:[%s3192] sm:$0x1]
    %s3194 = scalar_lea.vmem %s19, 1
    %v3195 = vld [vmem:[%s3194] sm:$0x1]
    %v3196 = vsel %vm249, %v3190, 0.0
    %3197 = vadd.xlane.f32.xlu0 %v3196
    %v3198 = vpop.xlane.xlu0 %3197
    %v3199 = vsel %vm249, %v3191, 0.0
    %3200 = vadd.xlane.f32.xlu0 %v3199
    %v3201 = vpop.xlane.xlu0 %3200
    %v3202 = vmul.f32 %v3198, %v256
    %v3203 = vmul.f32 %v3201, %v256
    %v3204 = vsub.f32 %v3190, %v3202
    %v3205 = vsub.f32 %v3191, %v3203
    %v3206 = vmul.f32 %v3204, %v3204
    %v3207 = vmul.f32 %v3205, %v3205
    %v3208 = vsel %vm249, %v3206, 0.0
    %3209 = vadd.xlane.f32.xlu0 %v3208
    %v3210 = vpop.xlane.xlu0 %3209
    %v3211 = vsel %vm249, %v3207, 0.0
    %3212 = vadd.xlane.f32.xlu0 %v3211
    %v3213 = vpop.xlane.xlu0 %3212
    %v3214 = vmul.f32 %v3210, %v256
    %v3215 = vmul.f32 %v3213, %v256
    %v3216 = vadd.f32 %v3214, 1e-12
    %v3217 = vadd.f32 %v3215, 1e-12
    %v3218 = vrsqrt.pop %v3216
    %v3219 = vrsqrt.pop %v3217
    %v3220 = vmul.f32 %v3204, %v3218
    %v3221 = vmul.f32 %v3205, %v3219
    %v3223 = vlaneseq
    %v3224 = vshrl.u32 %v3223, 7
    %v3225 = vsub.s32 0, %v3224
    %v3226 = vrot.slane %v3193, %v3225
    %v3228 = vmul.f32 %v3220, %v3226
    %v3229 = vmul.f32 %v3221, %v3226
    %v3231 = vlaneseq
    %v3232 = vshrl.u32 %v3231, 7
    %v3233 = vsub.s32 0, %v3232
    %v3234 = vrot.slane %v3195, %v3233
    %v3236 = vadd.f32 %v3228, %v3234
    %v3237 = vadd.f32 %v3229, %v3234
    %v3238 = vld [vmem:[%s20] sm:$0x3]
    %v3239 = vld [vmem:[%s21] sm:$0x3]
    %3241 = vset.pattern.permute.xlu0 0
    %3242 = vperm.xlu0 %3241, %v3239
    %v3243 = vpop.permute.xlu0 %3242
    %v3246 = vsel %vm249, %v3238, 0
    %v3249 = vsel %vm249, %v3236, 0
    %v3252 = vsel %vm249, %v3237, 0
    %3254 = vmatprep.subr.mxu0 0.0
    %3255 = vmatpush1.xpose.msra.mxu0 %v3249
    %3256 = vmatprep.subr.mxu0 0.0
    %3257 = vmatpush1.xpose.msra.mxu0 %v3252
    %3258 = vmatprep.subr.mxu0 0.0
    %3259 = vmatpush1.xpose.msra.mxu0 0.0
    %3260 = vmatprep.subr.mxu0 0.0
    %3261 = vmatpush1.xpose.msra.mxu0 0.0
    %3262 = vmatprep.subr.mxu0 0.0
    %3263 = vmatpush1.xpose.msra.mxu0 0.0
    %3264 = vmatprep.subr.mxu0 0.0
    %3265 = vmatpush1.xpose.msra.mxu0 0.0
    %3266 = vmatprep.subr.mxu0 0.0
    %3267 = vmatpush1.xpose.msra.mxu0 0.0
    %3268 = vmatprep.subr.mxu0 0.0
    %3269 = vmatpush1.xpose.msra.mxu0 0.0
    %3270 = vmatprep.subr.mxu0 0.0
    %3271 = vmatpush1.xpose.msra.mxu0 0.0
    %3272 = vmatprep.subr.mxu0 0.0
    %3273 = vmatpush1.xpose.msra.mxu0 0.0
    %3274 = vmatprep.subr.mxu0 0.0
    %3275 = vmatpush1.xpose.msra.mxu0 0.0
    %3276 = vmatprep.subr.mxu0 0.0
    %3277 = vmatpush1.xpose.msra.mxu0 0.0
    %3278 = vmatprep.subr.mxu0 0.0
    %3279 = vmatpush1.xpose.msra.mxu0 0.0
    %3280 = vmatprep.subr.mxu0 0.0
    %3281 = vmatpush1.xpose.msra.mxu0 0.0
    %3282 = vmatprep.subr.mxu0 0.0
    %3283 = vmatpush1.xpose.msra.mxu0 0.0
    %3284 = vmatprep.subr.mxu0 0.0
    %3285 = vmatpush1.xpose.msra.mxu0 0.0
    %3286 = vmatprep.subr.mxu0 0.0
    %3287 = vmatpush1.xpose.msra.mxu0 0.0
    %3288 = vmatprep.subr.mxu0 0.0
    %3289 = vmatpush1.xpose.msra.mxu0 0.0
    %3290 = vmatprep.subr.mxu0 0.0
    %3291 = vmatpush1.xpose.msra.mxu0 0.0
    %3292 = vmatprep.subr.mxu0 0.0
    %3293 = vmatpush1.xpose.msra.mxu0 0.0
    %3294 = vmatprep.subr.mxu0 0.0
    %3295 = vmatpush1.xpose.msra.mxu0 0.0
    %3296 = vmatprep.subr.mxu0 0.0
    %3297 = vmatpush1.xpose.msra.mxu0 0.0
    %3298 = vmatprep.subr.mxu0 0.0
    %3299 = vmatpush1.xpose.msra.mxu0 0.0
    %3300 = vmatprep.subr.mxu0 0.0
    %3301 = vmatpush1.xpose.msra.mxu0 0.0
    %3302 = vmatprep.subr.mxu0 0.0
    %3303 = vmatpush1.xpose.msra.mxu0 0.0
    %3304 = vmatprep.subr.mxu0 0.0
    %3305 = vmatpush1.xpose.msra.mxu0 0.0
    %3306 = vmatprep.subr.mxu0 0.0
    %3307 = vmatpush1.xpose.msra.mxu0 0.0
    %3308 = vmatprep.subr.mxu0 0.0
    %3309 = vmatpush1.xpose.msra.mxu0 0.0
    %3310 = vmatprep.subr.mxu0 0.0
    %3311 = vmatpush1.xpose.msra.mxu0 0.0
    %3312 = vmatprep.subr.mxu0 0.0
    %3313 = vmatpush1.xpose.msra.mxu0 0.0
    %3314 = vmatprep.subr.mxu0 0.0
    %3315 = vmatpush1.xpose.msra.mxu0 0.0
    %3316 = vmatprep.subr.mxu0 0.0
    %3317 = vmatpush1.xpose.msra.mxu0 0.0
    %3318 = vmatprep.mubr.f32.mxu0 0.0
    %3319 = vmatmul.mubr.f32.gmra.mrb[0].mxu0 %v3246
    %v3320 = vpop.f32.mrb[0].mxu0
    %v3321 = vadd.f32 %v3243, %v3320
    %v3322 = vpop.f32.mrb[0].mxu0
    %3323 = vdwg.mxu0
    %vm3324 = vcmask 123904
    %3325 = vst.msk [vmem:[%s24] sm:$0x3] %vm3324, %v3321
    %s3326 = sld [smem:[#allocation2]]
    %p3327 = scmp.gt.s32.totalorder %s3326, 0
    %s3328 = scalar_select %p3327, %s3326, 0
    %p3329 = scmp.lt.s32.totalorder %s3328, 8
    %s3330 = scalar_select %p3329, %s3328, 8
    %p3331 = scmp.lt.s32.totalorder %s3330, 8
    %s3332 = scalar_select %p3331, 1.0, 0.0
    %p3333 = scmp.lt.s32.totalorder %s3330, 7
    %s3334 = scalar_select %p3333, %s3330, 7
    %vm3335 = vcmask 57344
    %v3336 = vsel %vm3335, %v3321, -inf
    %3337 = vmax.xlane.f32.xlu0 %v3336
    %v3338 = vpop.xlane.xlu0 %3337
    %v3339 = vsub.f32 %v3321, %v3338
    %v3340 = vmul.f32 %v3339, 1.442695
    %v3341 = vpow.pop %v3340
    %v3342 = vsel %vm3335, %v3341, 0.0
    %3343 = vadd.xlane.f32.xlu0 %v3342
    %v3344 = vpop.xlane.xlu0 %3343
    %v3345 = vlog2.pop %v3344
    %v3346 = vmul.f32 %v3345, 0.6931472
    %v3347 = vadd.f32 %v3338, %v3346
    %v3348 = vstv %s3334
    %vm3349 = vcmp.eq.s32.totalorder %v109, %v3348
    %v3350 = vsel %vm3349, %v3321, 0.0
    %v3351 = vsel %vm3335, %v3350, 0.0
    %3352 = vadd.xlane.f32.xlu0 %v3351
    %v3353 = vpop.xlane.xlu0 %3352
    %v3354 = vsub.f32 %v3347, %v3353
    %v3355 = vstv %s3332
    %v3356 = vmul.f32 %v3355, %v3354
    %v3357 = vadd.f32 %v3356, 0.0
    %v3358 = vadd.f32 %v3355, 0.0
    %s3359 = sld [smem:[#allocation2 + $0x1]]
    %p3360 = scmp.gt.s32.totalorder %s3359, 0
    %s3361 = scalar_select %p3360, %s3359, 0
    %p3362 = scmp.lt.s32.totalorder %s3361, 8
    %s3363 = scalar_select %p3362, %s3361, 8
    %p3364 = scmp.lt.s32.totalorder %s3363, 8
    %s3365 = scalar_select %p3364, 1.0, 0.0
    %p3366 = scmp.lt.s32.totalorder %s3363, 7
    %s3367 = scalar_select %p3366, %s3363, 7
    %vm3368 = vcmask 122944
    %v3369 = vsel %vm3368, %v3321, -inf
    %3370 = vmax.xlane.f32.xlu0 %v3369
    %v3371 = vpop.xlane.xlu0 %3370
    %v3372 = vsub.f32 %v3321, %v3371
    %v3373 = vmul.f32 %v3372, 1.442695
    %v3374 = vpow.pop %v3373
    %3376 = vrot.lane.b32.xlu0 %v3374, 120
    %v3377 = vpop.permute.xlu0 %3376
    %v3379 = vsel %vm3335, %v3377, 0.0
    %3380 = vadd.xlane.f32.xlu0 %v3379
    %v3381 = vpop.xlane.xlu0 %3380
    %v3382 = vlog2.pop %v3381
    %v3383 = vmul.f32 %v3382, 0.6931472
    %v3384 = vadd.f32 %v3371, %v3383
    %v3385 = vstv %s3367
    %vm3386 = vcmp.eq.s32.totalorder %v109, %v3385
    %3388 = vrot.lane.b32.xlu0 %v3321, 120
    %v3389 = vpop.permute.xlu0 %3388
    %v3391 = vsel %vm3386, %v3389, 0.0
    %v3392 = vsel %vm3335, %v3391, 0.0
    %3393 = vadd.xlane.f32.xlu0 %v3392
    %v3394 = vpop.xlane.xlu0 %3393
    %v3395 = vsub.f32 %v3384, %v3394
    %v3396 = vstv %s3365
    %v3397 = vmul.f32 %v3396, %v3395
    %v3398 = vadd.f32 %v3357, %v3397
    %v3399 = vadd.f32 %v3358, %v3396
    %v3400 = vmax.f32 %v3399, 1.0
    %v3401 = vrcp.pop %v3400
    %v3402 = vmul.f32 %v3398, %v3401
    %s3403 = sld [smem:[#allocation5]]
    %p3404 = scmp.gt.s32.totalorder %s3403, 0
    %s3405 = scalar_select %p3404, %s3403, 0
    %p3406 = scmp.lt.s32.totalorder %s3405, 8
    %s3407 = scalar_select %p3406, %s3405, 8
    %p3408 = scmp.lt.s32.totalorder %s3407, 8
    %s3409 = scalar_select %p3408, 1.0, 0.0
    %p3410 = scmp.lt.s32.totalorder %s3407, 7
    %s3411 = scalar_select %p3410, %s3407, 7
    %vm3412 = vcmask 58369
    %v3413 = vsel %vm3412, %v3321, -inf
    %3414 = vmax.xlane.f32.xlu0 %v3413
    %v3415 = vpop.xlane.xlu0 %3414
    %v3416 = vsub.f32 %v3321, %v3415
    %v3417 = vmul.f32 %v3416, 1.442695
    %v3418 = vpow.pop %v3417
    %v3419 = vsel %vm3412, %v3418, 0.0
    %3420 = vadd.xlane.f32.xlu0 %v3419
    %v3421 = vpop.xlane.xlu0 %3420
    %v3422 = vlog2.pop %v3421
    %v3423 = vmul.f32 %v3422, 0.6931472
    %v3424 = vadd.f32 %v3415, %v3423
    %v3425 = vstv %s3411
    %vm3426 = vcmp.eq.s32.totalorder %v109, %v3425
    %v3427 = vsel %vm3426, %v3321, 0.0
    %v3428 = vsel %vm3412, %v3427, 0.0
    %3429 = vadd.xlane.f32.xlu0 %v3428
    %v3430 = vpop.xlane.xlu0 %3429
    %v3431 = vsub.f32 %v3424, %v3430
    %v3432 = vstv %s3409
    %v3433 = vmul.f32 %v3432, %v3431
    %v3434 = vadd.f32 %v3433, 0.0
    %v3435 = vadd.f32 %v3432, 0.0
    %s3436 = sld [smem:[#allocation5 + $0x1]]
    %p3437 = scmp.gt.s32.totalorder %s3436, 0
    %s3438 = scalar_select %p3437, %s3436, 0
    %p3439 = scmp.lt.s32.totalorder %s3438, 8
    %s3440 = scalar_select %p3439, %s3438, 8
    %p3441 = scmp.lt.s32.totalorder %s3440, 8
    %s3442 = scalar_select %p3441, 1.0, 0.0
    %p3443 = scmp.lt.s32.totalorder %s3440, 7
    %s3444 = scalar_select %p3443, %s3440, 7
    %vm3445 = vcmask 123969
    %v3446 = vsel %vm3445, %v3321, -inf
    %3447 = vmax.xlane.f32.xlu0 %v3446
    %v3448 = vpop.xlane.xlu0 %3447
    %v3449 = vsub.f32 %v3321, %v3448
    %v3450 = vmul.f32 %v3449, 1.442695
    %v3451 = vpow.pop %v3450
    %3453 = vrot.lane.b32.xlu0 %v3451, 120
    %v3454 = vpop.permute.xlu0 %3453
    %v3456 = vsel %vm3412, %v3454, 0.0
    %3457 = vadd.xlane.f32.xlu0 %v3456
    %v3458 = vpop.xlane.xlu0 %3457
    %v3459 = vlog2.pop %v3458
    %v3460 = vmul.f32 %v3459, 0.6931472
    %v3461 = vadd.f32 %v3448, %v3460
    %v3462 = vstv %s3444
    %vm3463 = vcmp.eq.s32.totalorder %v109, %v3462
    %v3464 = vrot.slane %v3321, 1
    %3465 = vrot.lane.b32.xlu0 %v3464, 120
    %v3466 = vpop.permute.xlu0 %3465
    %v3468 = vsel %vm3463, %v3466, 0.0
    %v3469 = vsel %vm3335, %v3468, 0.0
    %3470 = vadd.xlane.f32.xlu0 %v3469
    %v3471 = vpop.xlane.xlu0 %3470
    %v3473 = vrot.slane %v3471, 7
    %v3475 = vsub.f32 %v3461, %v3473
    %v3476 = vstv %s3442
    %v3477 = vmul.f32 %v3476, %v3475
    %v3478 = vadd.f32 %v3434, %v3477
    %v3479 = vadd.f32 %v3435, %v3476
    %v3480 = vmax.f32 %v3479, 1.0
    %v3481 = vrcp.pop %v3480
    %v3482 = vmul.f32 %v3478, %v3481
    %v3484 = vrot.slane %v3482, 1
    %v3486 = vadd.f32 %v3402, %v3484
    %v3487 = vmul.f32 %v3486, 0.5
    %vm3488 = vcmask 0
    %3489 = vst.msk [vmem:[#allocation7] sm:$0x1] %vm3488, %v3487
    // Predicated region
    $region106: #{bert_qa_fused_forward.1} parent=1 // pred_check
      _
    $region107: #{bert_qa_fused_forward.1} parent=1 // pred_check_branch
      %3491 = sbr.rel (0) target = $region109
    $region108: #{bert_qa_fused_forward.1} parent=1 // pred_region
      _
    $region109: #{bert_qa_fused_forward.1} parent=1 // pred_fallthru
      _
    // Predicated region
    $region110: #{bert_qa_fused_forward.1} parent=1 // pred_check
      _
    $region111: #{bert_qa_fused_forward.1} parent=1 // pred_check_branch
      %3493 = sbr.rel (0) target = $region113
    $region112: #{bert_qa_fused_forward.1} parent=1 // pred_region
      %s3495 = ssub.s32 16, 16
      %3496 = vsyncadd [#allocation3], %s3495
      %s3498 = sshll.u32 [#allocation7], 4
      %s3499 = int_to_ptr.vmem [resolvable:$true] %s3498
      %3501 = dma.vmem_to_hbm [thread:$0]  %s3499, 16, %s25, [#allocation3]
    $region113: #{bert_qa_fused_forward.1} parent=1 // pred_fallthru
      _
    // Predicated region
    $region114: #{bert_qa_fused_forward.1} parent=1 // pred_check
      _
    $region115: #{bert_qa_fused_forward.1} parent=1 // pred_check_branch
      %3503 = sbr.rel (0) target = $region117
    $region116: #{bert_qa_fused_forward.1} parent=1 // pred_region
      _
    $region117: #{bert_qa_fused_forward.1} parent=1 // pred_fallthru
      _
    // Predicated region
    $region118: #{bert_qa_fused_forward.1} parent=1 // pred_check
      _
    $region119: #{bert_qa_fused_forward.1} parent=1 // pred_check_branch
      %3505 = sbr.rel (0) target = $region121
    $region120: #{bert_qa_fused_forward.1} parent=1 // pred_region
      %3506 = dma.done [#allocation3], 16
    $region121: #{bert_qa_fused_forward.1} parent=1 // pred_fallthru
      _
    %3507 = vsyncpa [#allocation3], 1
    %3508 = vsyncpa [#allocation4], 1
    %3509 = vsyncpa [#allocation6], 1

</llo_original>
